<compile_context>
chip_gen: v7x
topology: tpu7x:2x2x1
jax: 0.10.0
libtpu: 0.0.40
codegen_flags: <defaults>
</compile_context>

<pallas_src>
import functools

import numpy as np
import jax
import jax.numpy as jnp
from jax import lax
from jax.experimental import pallas as pl
from jax.experimental.pallas import tpu as pltpu


# ----------------------- fixed CNNCifar geometry -----------------------------
H0, W0, C0 = 32, 32, 3             # input image
K = 5                              # conv kernel size (VALID padding)
C1, C2 = 6, 16                     # conv output channels
H1, W1 = H0 - K + 1, W0 - K + 1    # 28, 28   conv1 out
H1P, W1P = H1 // 2, W1 // 2        # 14, 14   pool1 out
H2, W2 = H1P - K + 1, W1P - K + 1  # 10, 10   conv2 out
H2P, W2P = H2 // 2, W2 // 2        # 5, 5     pool2 out
F_IN = H2P * W2P * C2              # 400
F1, F2 = 120, 84


# --------------------- host-side operand preparation -------------------------

def _conv_row_toeplitz(w_hwio, w_in):
    """(KH, KW, Ci, Co) conv weights -> (KH, w_in*Ci, w_out*Co) banded matrices.

    mats[dy, x*Ci+ci, ox*Co+co] = w[dy, x-ox, ci, co]  for 0 <= x-ox < KW.
    """
    kh, kw, ci, co = w_hwio.shape
    w_out = w_in - kw + 1
    mats = []
    for dy in range(kh):
        m = jnp.zeros((w_in * ci, w_out * co), jnp.float32)
        for dx in range(kw):
            s = np.zeros((w_in, w_out), np.float32)
            s[np.arange(w_out) + dx, np.arange(w_out)] = 1.0
            m = m + jnp.kron(jnp.asarray(s), w_hwio[dy, dx].astype(jnp.float32))
        mats.append(m)
    return jnp.stack(mats)


def _pool_col_selectors(w_in, c):
    """0/1 selectors picking even / odd spatial columns (right-multiplies)."""
    w_out = w_in // 2
    ce = np.zeros((w_in * c, w_out * c), np.float32)
    co = np.zeros((w_in * c, w_out * c), np.float32)
    eye = np.eye(c, dtype=np.float32)
    for ox in range(w_out):
        ce[(2 * ox) * c:(2 * ox) * c + c, ox * c:ox * c + c] = eye
        co[(2 * ox + 1) * c:(2 * ox + 1) * c + c, ox * c:ox * c + c] = eye
    return jnp.asarray(ce), jnp.asarray(co)


def prepare_operands(p, bt):
    """One-time conversion of model params into the kernel operand set."""
    ops = {}
    w1t = _conv_row_toeplitz(p["w1"], W0)                   # (5, 96, 168)
    w2t = _conv_row_toeplitz(p["w2"], W1P)                  # (5, 84, 160)
    # Stack the 5 per-dy Toeplitz blocks along K so each conv is ONE matmul.
    ops["w1c"] = w1t.reshape(K * W0 * C0, W1 * C1)          # (480, 168)
    ops["w2c"] = w2t.reshape(K * W1P * C1, W2 * C2)         # (420, 160)
    ops["b1r"] = jnp.tile(p["b1"], W1).reshape(1, W1 * C1)  # (1, 168)
    ops["b2r"] = jnp.tile(p["b2"], W2).reshape(1, W2 * C2)  # (1, 160)
    ops["pc1e"], ops["pc1o"] = _pool_col_selectors(W1, C1)  # (168, 84) x2
    ops["pc2e"], ops["pc2o"] = _pool_col_selectors(W2, C2)  # (160, 80) x2
    # 0/1 row-picker: selects row b*32 of a slab for every sample b of a tile.
    rsel = (bt - 1) * H0 + 1
    s0 = np.zeros((bt, rsel), np.float32)
    s0[np.arange(bt), np.arange(bt) * H0] = 1.0
    ops["s0"] = jnp.asarray(s0)                             # (bt, rsel)
    ops["wf1"] = p["wf1"]                                   # (400, 120)
    ops["bf1"] = p["bf1"].reshape(1, F1)
    ops["wf2"] = p["wf2"]                                   # (120, 84)
    ops["bf2"] = p["bf2"].reshape(1, F2)
    ops["wf3"] = p["wf3"]                                   # (84, num_classes)
    ops["bf3"] = p["bf3"].reshape(1, -1)
    return ops


# ------------------------------ fused kernel --------------------------------

def _lenet_kernel(bt,
                  x_ref, w1c_ref, b1r_ref, pc1e_ref, pc1o_ref,
                  w2c_ref, b2r_ref, pc2e_ref, pc2o_ref, s0_ref,
                  wf1_ref, bf1_ref, wf2_ref, bf2_ref, wf3_ref, bf3_ref,
                  o_ref):
    f32 = jnp.float32
    dot = functools.partial(jnp.dot, preferred_element_type=f32)

    # Frame row counts.  Per-sample row stride stays 32 throughout; valid data
    # sits at in-sample rows {y}, {2*y'}, {4*hh}; trailing rows are unused.
    N = bt * H0                   # input slab rows
    R1 = N - (K - 1)              # conv1 frame rows
    Rp1 = R1 - 1                  # pool1(row) frame rows
    R2 = Rp1 - 2 * (K - 1)        # conv2 frame rows
    Rp2 = R2 - 2                  # pool2(row) frame rows
    Rsel = N - 31                 # fc1 gather frame rows  (= (bt-1)*32 + 1)

    x = x_ref[...]                                               # (N, 96)

    # ---- conv1 + bias + ReLU: one wide-K matmul over lane-concat shifts ----
    xcat = jnp.concatenate([x[dy:dy + R1, :] for dy in range(K)], axis=-1)
    y1 = jnp.maximum(dot(xcat, w1c_ref[...]) + b1r_ref[...], 0.0)   # (R1, 168)

    # ---- maxpool 2x2 #1: rows via shift+max, columns via 0/1 selectors ----
    r1 = jnp.maximum(y1[:Rp1, :], y1[1:Rp1 + 1, :])                 # (Rp1, 168)
    p1 = jnp.maximum(dot(r1, pc1e_ref[...]), dot(r1, pc1o_ref[...]))  # (Rp1, 84)

    # ---- conv2 + bias + ReLU (pooled rows live at even frame rows -> 2*dy) --
    pcat = jnp.concatenate(
        [p1[2 * dy:2 * dy + R2, :] for dy in range(K)], axis=-1)
    y2 = jnp.maximum(dot(pcat, w2c_ref[...]) + b2r_ref[...], 0.0)   # (R2, 160)

    # ---- maxpool 2x2 #2 ----
    r2 = jnp.maximum(y2[:Rp2, :], y2[2:Rp2 + 2, :])                 # (Rp2, 160)
    p2 = jnp.maximum(dot(r2, pc2e_ref[...]), dot(r2, pc2o_ref[...]))  # (Rp2, 80)

    # ---- flatten (h, w, c) via the row-picker, then the batched FC stack ----
    s0 = s0_ref[...]                                                 # (bt, Rsel)
    feat = jnp.concatenate(
        [dot(s0, p2[4 * hh:4 * hh + Rsel, :]) for hh in range(H2P)],
        axis=-1)                                                     # (bt, 400)
    h1 = jnp.maximum(dot(feat, wf1_ref[...]) + bf1_ref[...], 0.0)    # (bt, 120)
    h2 = jnp.maximum(dot(h1, wf2_ref[...]) + bf2_ref[...], 0.0)      # (bt, 84)
    logits = dot(h2, wf3_ref[...]) + bf3_ref[...]                    # (bt, NC)

    # ---- batched log_softmax, single store ----
    m = jnp.max(logits, axis=-1, keepdims=True)
    z = logits - m
    lse = jnp.log(jnp.sum(jnp.exp(z), axis=-1, keepdims=True))
    o_ref[...] = (z - lse).astype(o_ref.dtype)


# -------------------------------- wrapper ------------------------------------

def _round_up(a, m):
    return ((a + m - 1) // m) * m


def cnn_cifar_forward(x_nchw, params, *, batch_tile=32):
    """x_nchw: (B, 3, 32, 32) f32 -> (B, num_classes) log-probabilities."""
    B = x_nchw.shape[0]
    nc = params["wf3"].shape[1]

    # Tile size: multiple of 8 (keeps blocks (8,128)-friendly), capped by the
    # 8-rounded batch.  Larger tiles amortize per-grid-step overhead.
    bt = min(max(int(batch_tile), 1), _round_up(B, 8))
    bt = _round_up(bt, 8)
    b_pad = _round_up(B, bt)

    ops = prepare_operands(params, bt)

    # NCHW -> NHWC -> (B*32, 96): sample-major image rows, lanes = W*C.
    x2d = jnp.transpose(x_nchw, (0, 2, 3, 1)).reshape(B, H0, W0 * C0)
    x2d = x2d.astype(jnp.float32)
    if b_pad != B:
        x2d = jnp.concatenate(
            [x2d, jnp.zeros((b_pad - B, H0, W0 * C0), jnp.float32)], axis=0)
    x2d = x2d.reshape(b_pad * H0, W0 * C0)

    operand_list = [
        ops["w1c"], ops["b1r"], ops["pc1e"], ops["pc1o"],
        ops["w2c"], ops["b2r"], ops["pc2e"], ops["pc2o"],
        ops["s0"],
        ops["wf1"], ops["bf1"], ops["wf2"], ops["bf2"], ops["wf3"], ops["bf3"],
    ]

    def full_spec(a):
        nd = a.ndim
        return pl.BlockSpec(a.shape, lambda i, _nd=nd: (0,) * _nd)

    in_specs = [pl.BlockSpec((bt * H0, W0 * C0), lambda i: (i, 0))]
    in_specs += [full_spec(a) for a in operand_list]

    out = pl.pallas_call(
        functools.partial(_lenet_kernel, bt),
        out_shape=jax.ShapeDtypeStruct((b_pad, nc), jnp.float32),
        grid=(b_pad // bt,),
        in_specs=in_specs,
        out_specs=pl.BlockSpec((bt, nc), lambda i: (i, 0)),
        compiler_params=pltpu.CompilerParams(
            dimension_semantics=("parallel",)),
    )(x2d, *operand_list)
    return out[:B]


# ------------------------- pure-JAX reference (check) ------------------------

def reference_forward(x_nchw, p):
    w1 = jnp.transpose(p["w1"], (3, 2, 0, 1))       # (Co, Ci, KH, KW)
    w2 = jnp.transpose(p["w2"], (3, 2, 0, 1))

    def conv(x, w, b):
        y = lax.conv_general_dilated(
            x, w, (1, 1), "VALID",
            dimension_numbers=("NCHW", "OIHW", "NCHW"))
        return jax.nn.relu(y + b.reshape(1, -1, 1, 1))

    def pool(x):
        bsz, c, h, w = x.shape
        return x.reshape(bsz, c, h // 2, 2, w // 2, 2).max(axis=(3, 5))

    y = pool(conv(x_nchw, w1, p["b1"]))
    y = pool(conv(y, w2, p["b2"]))
    # Flatten the pooled map in (h, w, c) order -- matches the kernel's fc1.
    feat = jnp.transpose(y, (0, 2, 3, 1)).reshape(x_nchw.shape[0], F_IN)
    h1 = jax.nn.relu(feat @ p["wf1"] + p["bf1"])
    h2 = jax.nn.relu(h1 @ p["wf2"] + p["bf2"])
    logits = h2 @ p["wf3"] + p["bf3"]
    return jax.nn.log_softmax(logits, axis=-1)


# --------------------------------- params ------------------------------------

def init_params(key, num_classes=10):
    ks = jax.random.split(key, 10)
    p = {}
    p["w1"] = 0.15 * jax.random.normal(ks[0], (K, K, C0, C1), jnp.float32)
    p["b1"] = 0.10 * jax.random.normal(ks[1], (C1,), jnp.float32)
    p["w2"] = 0.08 * jax.random.normal(ks[2], (K, K, C1, C2), jnp.float32)
    p["b2"] = 0.10 * jax.random.normal(ks[3], (C2,), jnp.float32)
    p["wf1"] = 0.05 * jax.random.normal(ks[4], (F_IN, F1), jnp.float32)
    p["bf1"] = 0.10 * jax.random.normal(ks[5], (F1,), jnp.float32)
    p["wf2"] = 0.08 * jax.random.normal(ks[6], (F1, F2), jnp.float32)
    p["bf2"] = 0.10 * jax.random.normal(ks[7], (F2,), jnp.float32)
    p["wf3"] = 0.10 * jax.random.normal(ks[8], (F2, num_classes), jnp.float32)
    p["bf3"] = 0.10 * jax.random.normal(ks[9], (num_classes,), jnp.float32)
    return p


if __name__ == "__main__":
    key = jax.random.PRNGKey(0)
    kx, kp = jax.random.split(key)
    # CIFAR-shaped input: NCHW, 3x32x32 (spatial size fixed by fc1 = 16*5*5).
    # B=10 with batch_tile=8 exercises a 2-step grid plus batch padding.
    x = jax.random.normal(kx, (10, 3, 32, 32), jnp.float32)
    params = init_params(kp, num_classes=10)

    out = jax.block_until_ready(cnn_cifar_forward(x, params, batch_tile=8))
    assert out.shape == (10, 10)

    ref = jax.block_until_ready(reference_forward(x, params))
    assert jnp.allclose(out, ref, atol=1e-3, rtol=1e-3), "mismatch vs reference"

    print("KERNEL_OK")
</pallas_src>

<mosaic_0001>
module attributes {stable_mosaic.version = 11 : i64} {
  func.func @_lenet_kernel(%arg0: i32, %arg1: memref<256x96xf32, #tpu.memory_space<vmem>>, %arg2: memref<480x168xf32, #tpu.memory_space<vmem>>, %arg3: memref<1x168xf32, #tpu.memory_space<vmem>>, %arg4: memref<168x84xf32, #tpu.memory_space<vmem>>, %arg5: memref<168x84xf32, #tpu.memory_space<vmem>>, %arg6: memref<420x160xf32, #tpu.memory_space<vmem>>, %arg7: memref<1x160xf32, #tpu.memory_space<vmem>>, %arg8: memref<160x80xf32, #tpu.memory_space<vmem>>, %arg9: memref<160x80xf32, #tpu.memory_space<vmem>>, %arg10: memref<8x225xf32, #tpu.memory_space<vmem>>, %arg11: memref<400x120xf32, #tpu.memory_space<vmem>>, %arg12: memref<1x120xf32, #tpu.memory_space<vmem>>, %arg13: memref<120x84xf32, #tpu.memory_space<vmem>>, %arg14: memref<1x84xf32, #tpu.memory_space<vmem>>, %arg15: memref<84x10xf32, #tpu.memory_space<vmem>>, %arg16: memref<1x10xf32, #tpu.memory_space<vmem>>, %arg17: memref<8x10xf32, #tpu.memory_space<vmem>>) attributes {dimension_semantics = [#tpu.dimension_semantics<parallel>], iteration_bounds = array<i64: 2>, scalar_prefetch = 0 : i64, scratch_operands = 0 : i64, tpu.core_type = #tpu.core_type<tc>, window_params = [{transform_indices = @transform_0, window_bounds = array<i64: 256, 96>}, {pipeline_mode = #tpu.pipeline_mode<synchronous>, transform_indices = @transform_1, window_bounds = array<i64: 480, 168>}, {pipeline_mode = #tpu.pipeline_mode<synchronous>, transform_indices = @transform_2, window_bounds = array<i64: 1, 168>}, {pipeline_mode = #tpu.pipeline_mode<synchronous>, transform_indices = @transform_3, window_bounds = array<i64: 168, 84>}, {pipeline_mode = #tpu.pipeline_mode<synchronous>, transform_indices = @transform_4, window_bounds = array<i64: 168, 84>}, {pipeline_mode = #tpu.pipeline_mode<synchronous>, transform_indices = @transform_5, window_bounds = array<i64: 420, 160>}, {pipeline_mode = #tpu.pipeline_mode<synchronous>, transform_indices = @transform_6, window_bounds = array<i64: 1, 160>}, {pipeline_mode = #tpu.pipeline_mode<synchronous>, transform_indices = @transform_7, window_bounds = array<i64: 160, 80>}, {pipeline_mode = #tpu.pipeline_mode<synchronous>, transform_indices = @transform_8, window_bounds = array<i64: 160, 80>}, {pipeline_mode = #tpu.pipeline_mode<synchronous>, transform_indices = @transform_9, window_bounds = array<i64: 8, 225>}, {pipeline_mode = #tpu.pipeline_mode<synchronous>, transform_indices = @transform_10, window_bounds = array<i64: 400, 120>}, {pipeline_mode = #tpu.pipeline_mode<synchronous>, transform_indices = @transform_11, window_bounds = array<i64: 1, 120>}, {pipeline_mode = #tpu.pipeline_mode<synchronous>, transform_indices = @transform_12, window_bounds = array<i64: 120, 84>}, {pipeline_mode = #tpu.pipeline_mode<synchronous>, transform_indices = @transform_13, window_bounds = array<i64: 1, 84>}, {pipeline_mode = #tpu.pipeline_mode<synchronous>, transform_indices = @transform_14, window_bounds = array<i64: 84, 10>}, {pipeline_mode = #tpu.pipeline_mode<synchronous>, transform_indices = @transform_15, window_bounds = array<i64: 1, 10>}, {transform_indices = @transform_16, window_bounds = array<i64: 8, 10>}]} {
    %c0 = arith.constant 0 : index
    %c0_0 = arith.constant 0 : index
    %0 = vector.load %arg1[%c0, %c0_0] : memref<256x96xf32, #tpu.memory_space<vmem>>, vector<256x96xf32>
    %1 = vector.extract_strided_slice %0 {offsets = [0, 0], sizes = [252, 96], strides = [1, 1]} : vector<256x96xf32> to vector<252x96xf32>
    %2 = vector.extract_strided_slice %0 {offsets = [1, 0], sizes = [252, 96], strides = [1, 1]} : vector<256x96xf32> to vector<252x96xf32>
    %3 = vector.extract_strided_slice %0 {offsets = [2, 0], sizes = [252, 96], strides = [1, 1]} : vector<256x96xf32> to vector<252x96xf32>
    %4 = vector.extract_strided_slice %0 {offsets = [3, 0], sizes = [252, 96], strides = [1, 1]} : vector<256x96xf32> to vector<252x96xf32>
    %5 = vector.extract_strided_slice %0 {offsets = [4, 0], sizes = [252, 96], strides = [1, 1]} : vector<256x96xf32> to vector<252x96xf32>
    %6 = tpu.concatenate %1, %2, %3, %4, %5 in 1 : vector<252x96xf32>, vector<252x96xf32>, vector<252x96xf32>, vector<252x96xf32>, vector<252x96xf32> -> vector<252x480xf32>
    %c0_1 = arith.constant 0 : index
    %c0_2 = arith.constant 0 : index
    %7 = vector.load %arg2[%c0_1, %c0_2] : memref<480x168xf32, #tpu.memory_space<vmem>>, vector<480x168xf32>
    %cst = arith.constant dense<0.000000e+00> : vector<252x168xf32>
    %8 = tpu.matmul %6, %7, %cst {dimension_numbers = #tpu.dot_dimension_numbers<[1], [0], [0], [1], [0, 0, 1, 1], [], []>} : vector<252x480xf32>, vector<480x168xf32>, vector<252x168xf32> -> vector<252x168xf32>
    %c0_3 = arith.constant 0 : index
    %c0_4 = arith.constant 0 : index
    %9 = vector.load %arg3[%c0_3, %c0_4] : memref<1x168xf32, #tpu.memory_space<vmem>>, vector<1x168xf32>
    %10 = vector.broadcast %9 : vector<1x168xf32> to vector<252x168xf32>
    %11 = arith.addf %8, %10 : vector<252x168xf32>
    %cst_5 = arith.constant 0.000000e+00 : f32
    %12 = vector.broadcast %cst_5 : f32 to vector<252x168xf32>
    %13 = arith.maximumf %11, %12 : vector<252x168xf32>
    %14 = vector.extract_strided_slice %13 {offsets = [0, 0], sizes = [251, 168], strides = [1, 1]} : vector<252x168xf32> to vector<251x168xf32>
    %15 = vector.extract_strided_slice %13 {offsets = [1, 0], sizes = [251, 168], strides = [1, 1]} : vector<252x168xf32> to vector<251x168xf32>
    %16 = arith.maximumf %14, %15 : vector<251x168xf32>
    %c0_6 = arith.constant 0 : index
    %c0_7 = arith.constant 0 : index
    %17 = vector.load %arg4[%c0_6, %c0_7] : memref<168x84xf32, #tpu.memory_space<vmem>>, vector<168x84xf32>
    %cst_8 = arith.constant dense<0.000000e+00> : vector<251x84xf32>
    %18 = tpu.matmul %16, %17, %cst_8 {dimension_numbers = #tpu.dot_dimension_numbers<[1], [0], [0], [1], [0, 0, 1, 1], [], []>} : vector<251x168xf32>, vector<168x84xf32>, vector<251x84xf32> -> vector<251x84xf32>
    %c0_9 = arith.constant 0 : index
    %c0_10 = arith.constant 0 : index
    %19 = vector.load %arg5[%c0_9, %c0_10] : memref<168x84xf32, #tpu.memory_space<vmem>>, vector<168x84xf32>
    %cst_11 = arith.constant dense<0.000000e+00> : vector<251x84xf32>
    %20 = tpu.matmul %16, %19, %cst_11 {dimension_numbers = #tpu.dot_dimension_numbers<[1], [0], [0], [1], [0, 0, 1, 1], [], []>} : vector<251x168xf32>, vector<168x84xf32>, vector<251x84xf32> -> vector<251x84xf32>
    %21 = arith.maximumf %18, %20 : vector<251x84xf32>
    %22 = vector.extract_strided_slice %21 {offsets = [0, 0], sizes = [243, 84], strides = [1, 1]} : vector<251x84xf32> to vector<243x84xf32>
    %23 = vector.extract_strided_slice %21 {offsets = [2, 0], sizes = [243, 84], strides = [1, 1]} : vector<251x84xf32> to vector<243x84xf32>
    %24 = vector.extract_strided_slice %21 {offsets = [4, 0], sizes = [243, 84], strides = [1, 1]} : vector<251x84xf32> to vector<243x84xf32>
    %25 = vector.extract_strided_slice %21 {offsets = [6, 0], sizes = [243, 84], strides = [1, 1]} : vector<251x84xf32> to vector<243x84xf32>
    %26 = vector.extract_strided_slice %21 {offsets = [8, 0], sizes = [243, 84], strides = [1, 1]} : vector<251x84xf32> to vector<243x84xf32>
    %27 = tpu.concatenate %22, %23, %24, %25, %26 in 1 : vector<243x84xf32>, vector<243x84xf32>, vector<243x84xf32>, vector<243x84xf32>, vector<243x84xf32> -> vector<243x420xf32>
    %c0_12 = arith.constant 0 : index
    %c0_13 = arith.constant 0 : index
    %28 = vector.load %arg6[%c0_12, %c0_13] : memref<420x160xf32, #tpu.memory_space<vmem>>, vector<420x160xf32>
    %cst_14 = arith.constant dense<0.000000e+00> : vector<243x160xf32>
    %29 = tpu.matmul %27, %28, %cst_14 {dimension_numbers = #tpu.dot_dimension_numbers<[1], [0], [0], [1], [0, 0, 1, 1], [], []>} : vector<243x420xf32>, vector<420x160xf32>, vector<243x160xf32> -> vector<243x160xf32>
    %c0_15 = arith.constant 0 : index
    %c0_16 = arith.constant 0 : index
    %30 = vector.load %arg7[%c0_15, %c0_16] : memref<1x160xf32, #tpu.memory_space<vmem>>, vector<1x160xf32>
    %31 = vector.broadcast %30 : vector<1x160xf32> to vector<243x160xf32>
    %32 = arith.addf %29, %31 : vector<243x160xf32>
    %cst_17 = arith.constant 0.000000e+00 : f32
    %33 = vector.broadcast %cst_17 : f32 to vector<243x160xf32>
    %34 = arith.maximumf %32, %33 : vector<243x160xf32>
    %35 = vector.extract_strided_slice %34 {offsets = [0, 0], sizes = [241, 160], strides = [1, 1]} : vector<243x160xf32> to vector<241x160xf32>
    %36 = vector.extract_strided_slice %34 {offsets = [2, 0], sizes = [241, 160], strides = [1, 1]} : vector<243x160xf32> to vector<241x160xf32>
    %37 = arith.maximumf %35, %36 : vector<241x160xf32>
    %c0_18 = arith.constant 0 : index
    %c0_19 = arith.constant 0 : index
    %38 = vector.load %arg8[%c0_18, %c0_19] : memref<160x80xf32, #tpu.memory_space<vmem>>, vector<160x80xf32>
    %cst_20 = arith.constant dense<0.000000e+00> : vector<241x80xf32>
    %39 = tpu.matmul %37, %38, %cst_20 {dimension_numbers = #tpu.dot_dimension_numbers<[1], [0], [0], [1], [0, 0, 1, 1], [], []>} : vector<241x160xf32>, vector<160x80xf32>, vector<241x80xf32> -> vector<241x80xf32>
    %c0_21 = arith.constant 0 : index
    %c0_22 = arith.constant 0 : index
    %40 = vector.load %arg9[%c0_21, %c0_22] : memref<160x80xf32, #tpu.memory_space<vmem>>, vector<160x80xf32>
    %cst_23 = arith.constant dense<0.000000e+00> : vector<241x80xf32>
    %41 = tpu.matmul %37, %40, %cst_23 {dimension_numbers = #tpu.dot_dimension_numbers<[1], [0], [0], [1], [0, 0, 1, 1], [], []>} : vector<241x160xf32>, vector<160x80xf32>, vector<241x80xf32> -> vector<241x80xf32>
    %42 = arith.maximumf %39, %41 : vector<241x80xf32>
    %c0_24 = arith.constant 0 : index
    %c0_25 = arith.constant 0 : index
    %43 = vector.load %arg10[%c0_24, %c0_25] : memref<8x225xf32, #tpu.memory_space<vmem>>, vector<8x225xf32>
    %44 = vector.extract_strided_slice %42 {offsets = [0, 0], sizes = [225, 80], strides = [1, 1]} : vector<241x80xf32> to vector<225x80xf32>
    %cst_26 = arith.constant dense<0.000000e+00> : vector<8x80xf32>
    %45 = tpu.matmul %43, %44, %cst_26 {dimension_numbers = #tpu.dot_dimension_numbers<[1], [0], [0], [1], [0, 0, 1, 1], [], []>} : vector<8x225xf32>, vector<225x80xf32>, vector<8x80xf32> -> vector<8x80xf32>
    %46 = vector.extract_strided_slice %42 {offsets = [4, 0], sizes = [225, 80], strides = [1, 1]} : vector<241x80xf32> to vector<225x80xf32>
    %cst_27 = arith.constant dense<0.000000e+00> : vector<8x80xf32>
    %47 = tpu.matmul %43, %46, %cst_27 {dimension_numbers = #tpu.dot_dimension_numbers<[1], [0], [0], [1], [0, 0, 1, 1], [], []>} : vector<8x225xf32>, vector<225x80xf32>, vector<8x80xf32> -> vector<8x80xf32>
    %48 = vector.extract_strided_slice %42 {offsets = [8, 0], sizes = [225, 80], strides = [1, 1]} : vector<241x80xf32> to vector<225x80xf32>
    %cst_28 = arith.constant dense<0.000000e+00> : vector<8x80xf32>
    %49 = tpu.matmul %43, %48, %cst_28 {dimension_numbers = #tpu.dot_dimension_numbers<[1], [0], [0], [1], [0, 0, 1, 1], [], []>} : vector<8x225xf32>, vector<225x80xf32>, vector<8x80xf32> -> vector<8x80xf32>
    %50 = vector.extract_strided_slice %42 {offsets = [12, 0], sizes = [225, 80], strides = [1, 1]} : vector<241x80xf32> to vector<225x80xf32>
    %cst_29 = arith.constant dense<0.000000e+00> : vector<8x80xf32>
    %51 = tpu.matmul %43, %50, %cst_29 {dimension_numbers = #tpu.dot_dimension_numbers<[1], [0], [0], [1], [0, 0, 1, 1], [], []>} : vector<8x225xf32>, vector<225x80xf32>, vector<8x80xf32> -> vector<8x80xf32>
    %52 = vector.extract_strided_slice %42 {offsets = [16, 0], sizes = [225, 80], strides = [1, 1]} : vector<241x80xf32> to vector<225x80xf32>
    %cst_30 = arith.constant dense<0.000000e+00> : vector<8x80xf32>
    %53 = tpu.matmul %43, %52, %cst_30 {dimension_numbers = #tpu.dot_dimension_numbers<[1], [0], [0], [1], [0, 0, 1, 1], [], []>} : vector<8x225xf32>, vector<225x80xf32>, vector<8x80xf32> -> vector<8x80xf32>
    %54 = tpu.concatenate %45, %47, %49, %51, %53 in 1 : vector<8x80xf32>, vector<8x80xf32>, vector<8x80xf32>, vector<8x80xf32>, vector<8x80xf32> -> vector<8x400xf32>
    %c0_31 = arith.constant 0 : index
    %c0_32 = arith.constant 0 : index
    %55 = vector.load %arg11[%c0_31, %c0_32] : memref<400x120xf32, #tpu.memory_space<vmem>>, vector<400x120xf32>
    %cst_33 = arith.constant dense<0.000000e+00> : vector<8x120xf32>
    %56 = tpu.matmul %54, %55, %cst_33 {dimension_numbers = #tpu.dot_dimension_numbers<[1], [0], [0], [1], [0, 0, 1, 1], [], []>} : vector<8x400xf32>, vector<400x120xf32>, vector<8x120xf32> -> vector<8x120xf32>
    %c0_34 = arith.constant 0 : index
    %c0_35 = arith.constant 0 : index
    %57 = vector.load %arg12[%c0_34, %c0_35] : memref<1x120xf32, #tpu.memory_space<vmem>>, vector<1x120xf32>
    %58 = vector.broadcast %57 : vector<1x120xf32> to vector<8x120xf32>
    %59 = arith.addf %56, %58 : vector<8x120xf32>
    %cst_36 = arith.constant 0.000000e+00 : f32
    %60 = vector.broadcast %cst_36 : f32 to vector<8x120xf32>
    %61 = arith.maximumf %59, %60 : vector<8x120xf32>
    %c0_37 = arith.constant 0 : index
    %c0_38 = arith.constant 0 : index
    %62 = vector.load %arg13[%c0_37, %c0_38] : memref<120x84xf32, #tpu.memory_space<vmem>>, vector<120x84xf32>
    %cst_39 = arith.constant dense<0.000000e+00> : vector<8x84xf32>
    %63 = tpu.matmul %61, %62, %cst_39 {dimension_numbers = #tpu.dot_dimension_numbers<[1], [0], [0], [1], [0, 0, 1, 1], [], []>} : vector<8x120xf32>, vector<120x84xf32>, vector<8x84xf32> -> vector<8x84xf32>
    %c0_40 = arith.constant 0 : index
    %c0_41 = arith.constant 0 : index
    %64 = vector.load %arg14[%c0_40, %c0_41] : memref<1x84xf32, #tpu.memory_space<vmem>>, vector<1x84xf32>
    %65 = vector.broadcast %64 : vector<1x84xf32> to vector<8x84xf32>
    %66 = arith.addf %63, %65 : vector<8x84xf32>
    %cst_42 = arith.constant 0.000000e+00 : f32
    %67 = vector.broadcast %cst_42 : f32 to vector<8x84xf32>
    %68 = arith.maximumf %66, %67 : vector<8x84xf32>
    %c0_43 = arith.constant 0 : index
    %c0_44 = arith.constant 0 : index
    %69 = vector.load %arg15[%c0_43, %c0_44] : memref<84x10xf32, #tpu.memory_space<vmem>>, vector<84x10xf32>
    %cst_45 = arith.constant dense<0.000000e+00> : vector<8x10xf32>
    %70 = tpu.matmul %68, %69, %cst_45 {dimension_numbers = #tpu.dot_dimension_numbers<[1], [0], [0], [1], [0, 0, 1, 1], [], []>} : vector<8x84xf32>, vector<84x10xf32>, vector<8x10xf32> -> vector<8x10xf32>
    %c0_46 = arith.constant 0 : index
    %c0_47 = arith.constant 0 : index
    %71 = vector.load %arg16[%c0_46, %c0_47] : memref<1x10xf32, #tpu.memory_space<vmem>>, vector<1x10xf32>
    %72 = vector.broadcast %71 : vector<1x10xf32> to vector<8x10xf32>
    %73 = arith.addf %70, %72 : vector<8x10xf32>
    %cst_48 = arith.constant dense<0xFF800000> : vector<8xf32>
    %74 = vector.multi_reduction <maximumf>, %73, %cst_48 [1] : vector<8x10xf32> to vector<8xf32>
    %75 = vector.shape_cast %74 : vector<8xf32> to vector<8x1xf32>
    %76 = vector.broadcast %75 : vector<8x1xf32> to vector<8x10xf32>
    %77 = arith.subf %73, %76 : vector<8x10xf32>
    %78 = math.exp %77 : vector<8x10xf32>
    %cst_49 = arith.constant dense<0.000000e+00> : vector<8xf32>
    %79 = vector.multi_reduction <add>, %78, %cst_49 [1] : vector<8x10xf32> to vector<8xf32>
    %80 = vector.shape_cast %79 : vector<8xf32> to vector<8x1xf32>
    %81 = math.log %80 : vector<8x1xf32>
    %82 = vector.broadcast %81 : vector<8x1xf32> to vector<8x10xf32>
    %83 = arith.subf %77, %82 : vector<8x10xf32>
    %c0_50 = arith.constant 0 : index
    %c0_51 = arith.constant 0 : index
    %84 = vector.load %arg17[%c0_50, %c0_51] : memref<8x10xf32, #tpu.memory_space<vmem>>, vector<8x10xf32>
    tpu.vector_store %arg17[%c0_50, %c0_51], %83 {strides = array<i32>} : memref<8x10xf32, #tpu.memory_space<vmem>>, vector<8x10xf32>,
    return
  }
  func.func @transform_0(%arg0: i32) -> (i32, i32) {
    %c0_i32 = arith.constant 0 : i32
    %c0_i32_0 = arith.constant 0 : i32
    return %arg0, %c0_i32 : i32, i32
  }
  func.func @transform_1(%arg0: i32) -> (i32, i32) {
    %c0_i32 = arith.constant 0 : i32
    %c0_i32_0 = arith.constant 0 : i32
    %c0_i32_1 = arith.constant 0 : i32
    return %c0_i32, %c0_i32_0 : i32, i32
  }
  func.func @transform_2(%arg0: i32) -> (i32, i32) {
    %c0_i32 = arith.constant 0 : i32
    %c0_i32_0 = arith.constant 0 : i32
    %c0_i32_1 = arith.constant 0 : i32
    return %c0_i32, %c0_i32_0 : i32, i32
  }
  func.func @transform_3(%arg0: i32) -> (i32, i32) {
    %c0_i32 = arith.constant 0 : i32
    %c0_i32_0 = arith.constant 0 : i32
    %c0_i32_1 = arith.constant 0 : i32
    return %c0_i32, %c0_i32_0 : i32, i32
  }
  func.func @transform_4(%arg0: i32) -> (i32, i32) {
    %c0_i32 = arith.constant 0 : i32
    %c0_i32_0 = arith.constant 0 : i32
    %c0_i32_1 = arith.constant 0 : i32
    return %c0_i32, %c0_i32_0 : i32, i32
  }
  func.func @transform_5(%arg0: i32) -> (i32, i32) {
    %c0_i32 = arith.constant 0 : i32
    %c0_i32_0 = arith.constant 0 : i32
    %c0_i32_1 = arith.constant 0 : i32
    return %c0_i32, %c0_i32_0 : i32, i32
  }
  func.func @transform_6(%arg0: i32) -> (i32, i32) {
    %c0_i32 = arith.constant 0 : i32
    %c0_i32_0 = arith.constant 0 : i32
    %c0_i32_1 = arith.constant 0 : i32
    return %c0_i32, %c0_i32_0 : i32, i32
  }
  func.func @transform_7(%arg0: i32) -> (i32, i32) {
    %c0_i32 = arith.constant 0 : i32
    %c0_i32_0 = arith.constant 0 : i32
    %c0_i32_1 = arith.constant 0 : i32
    return %c0_i32, %c0_i32_0 : i32, i32
  }
  func.func @transform_8(%arg0: i32) -> (i32, i32) {
    %c0_i32 = arith.constant 0 : i32
    %c0_i32_0 = arith.constant 0 : i32
    %c0_i32_1 = arith.constant 0 : i32
    return %c0_i32, %c0_i32_0 : i32, i32
  }
  func.func @transform_9(%arg0: i32) -> (i32, i32) {
    %c0_i32 = arith.constant 0 : i32
    %c0_i32_0 = arith.constant 0 : i32
    %c0_i32_1 = arith.constant 0 : i32
    return %c0_i32, %c0_i32_0 : i32, i32
  }
  func.func @transform_10(%arg0: i32) -> (i32, i32) {
    %c0_i32 = arith.constant 0 : i32
    %c0_i32_0 = arith.constant 0 : i32
    %c0_i32_1 = arith.constant 0 : i32
    return %c0_i32, %c0_i32_0 : i32, i32
  }
  func.func @transform_11(%arg0: i32) -> (i32, i32) {
    %c0_i32 = arith.constant 0 : i32
    %c0_i32_0 = arith.constant 0 : i32
    %c0_i32_1 = arith.constant 0 : i32
    return %c0_i32, %c0_i32_0 : i32, i32
  }
  func.func @transform_12(%arg0: i32) -> (i32, i32) {
    %c0_i32 = arith.constant 0 : i32
    %c0_i32_0 = arith.constant 0 : i32
    %c0_i32_1 = arith.constant 0 : i32
    return %c0_i32, %c0_i32_0 : i32, i32
  }
  func.func @transform_13(%arg0: i32) -> (i32, i32) {
    %c0_i32 = arith.constant 0 : i32
    %c0_i32_0 = arith.constant 0 : i32
    %c0_i32_1 = arith.constant 0 : i32
    return %c0_i32, %c0_i32_0 : i32, i32
  }
  func.func @transform_14(%arg0: i32) -> (i32, i32) {
    %c0_i32 = arith.constant 0 : i32
    %c0_i32_0 = arith.constant 0 : i32
    %c0_i32_1 = arith.constant 0 : i32
    return %c0_i32, %c0_i32_0 : i32, i32
  }
  func.func @transform_15(%arg0: i32) -> (i32, i32) {
    %c0_i32 = arith.constant 0 : i32
    %c0_i32_0 = arith.constant 0 : i32
    %c0_i32_1 = arith.constant 0 : i32
    return %c0_i32, %c0_i32_0 : i32, i32
  }
  func.func @transform_16(%arg0: i32) -> (i32, i32) {
    %c0_i32 = arith.constant 0 : i32
    %c0_i32_0 = arith.constant 0 : i32
    return %arg0, %c0_i32 : i32, i32
  }
}

</mosaic_0001>

<llo_original>
// kernel: tpu_custom_call.1
$region0: #{tpu_custom_call.1}
  #allocation0 [shape = 'u32[]', space=smem, size = 0x4, offset = 0x4, fixed_abs, tag = 'smem constant byte address 0x4 - core index']
  #allocation1 [shape = 'u32[144,128]{1,0:T(1,128)}', space=vmem, size = 0x12000, scoped, tag = 'internal scratch']
  %s0 = inlined_call_operand.vmem [shape: f32[512,96], index: 0, kind: input, shape index: {}]
  %s1 = inlined_call_operand.vmem [shape: f32[480,168], index: 1, kind: input, shape index: {}]
  %s2 = inlined_call_operand.vmem [shape: f32[1,168], index: 2, kind: input, shape index: {}]
  %s3 = inlined_call_operand.vmem [shape: f32[168,84], index: 3, kind: input, shape index: {}]
  %s4 = inlined_call_operand.vmem [shape: f32[168,84], index: 4, kind: input, shape index: {}]
  %s5 = inlined_call_operand.vmem [shape: f32[420,160], index: 5, kind: input, shape index: {}]
  %s6 = inlined_call_operand.vmem [shape: f32[1,160], index: 6, kind: input, shape index: {}]
  %s7 = inlined_call_operand.vmem [shape: f32[160,80], index: 7, kind: input, shape index: {}]
  %s8 = inlined_call_operand.vmem [shape: f32[160,80], index: 8, kind: input, shape index: {}]
  %s9 = inlined_call_operand.vmem [shape: f32[8,225], index: 9, kind: input, shape index: {}]
  %s10 = inlined_call_operand.vmem [shape: f32[400,120], index: 10, kind: input, shape index: {}]
  %s11 = inlined_call_operand.vmem [shape: f32[1,120], index: 11, kind: input, shape index: {}]
  %s12 = inlined_call_operand.vmem [shape: f32[120,84], index: 12, kind: input, shape index: {}]
  %s13 = inlined_call_operand.vmem [shape: f32[1,84], index: 13, kind: input, shape index: {}]
  %s14 = inlined_call_operand.vmem [shape: f32[84,10], index: 14, kind: input, shape index: {}]
  %s15 = inlined_call_operand.vmem [shape: f32[1,10], index: 15, kind: input, shape index: {}]
  %s16 = inlined_call_operand.hbm [shape: f32[16,10], index: 16, kind: output, shape index: {}]
  %s17 = sld [smem:[#allocation0]]
  $region97: #{tpu_custom_call.1} parent=0
    _
  %s19 = ssub.s32 1, %s17
  %s20 = scalar_select 0, %s19, %s17
  $region1: #{tpu_custom_call.1} parent=0
    #allocation2 [shape = 'u8[8192]{0}', space=vmem, size = 0x2000, scoped, tag = 'output window, operand 0']
    #allocation3 [shape = 's32[2]{0}', space=sflag, size = 0x8, scoped, tag = 'scoped memory for tpu_custom_call.1']
    %21 = vsyncpa [#allocation3], 0
    %s22 = scalar_lea.sflag [#allocation3], 1
    %23 = vsyncpa %s22, 0
    loop: start=0, step=1, limit=4
    $region2: #{tpu_custom_call.1} parent=1 // loop_pre_header
      _
    $region3: #{tpu_custom_call.1} parent=1 // loop_header
      %s25 = sphi 0, %s29
      %p26 = scmp.ge.s32.totalorder %s25, 4
      %s35 = sphi 0, %s37
      %s38 = sphi 0, %s35
      %s39 = sphi 0, %s38
      %s55 = sphi 0, %s39
      %s59 = sphi 0, %s59
      %s61 = sphi 0, %s59
      %s62 = sphi 0, %s61
      %s76 = sphi 0, %s62
      %s80 = sphi 0, %s80
      %s82 = sphi 0, %s80
      %s83 = sphi 0, %s82
      %s97 = sphi 0, %s83
      %s101 = sphi 0, %s101
      %s103 = sphi 0, %s101
      %s104 = sphi 0, %s103
      %s118 = sphi 0, %s104
      %s122 = sphi 0, %s122
      %s124 = sphi 0, %s122
      %s125 = sphi 0, %s124
      %s139 = sphi 0, %s125
      %s143 = sphi 0, %s143
      %s145 = sphi 0, %s143
      %s146 = sphi 0, %s145
      %s160 = sphi 0, %s146
      %s164 = sphi 0, %s164
      %s166 = sphi 0, %s164
      %s167 = sphi 0, %s166
      %s181 = sphi 0, %s167
      %s185 = sphi 0, %s185
      %s187 = sphi 0, %s185
      %s188 = sphi 0, %s187
      %s202 = sphi 0, %s188
      %s206 = sphi 0, %s206
      %s208 = sphi 0, %s206
      %s209 = sphi 0, %s208
      %s223 = sphi 0, %s209
      %s227 = sphi 0, %s227
      %s229 = sphi 0, %s227
      %s230 = sphi 0, %s229
      %s244 = sphi 0, %s230
      %s248 = sphi 0, %s248
      %s250 = sphi 0, %s248
      %s251 = sphi 0, %s250
      %s265 = sphi 0, %s251
      %s269 = sphi 0, %s269
      %s271 = sphi 0, %s269
      %s272 = sphi 0, %s271
      %s286 = sphi 0, %s272
      %s290 = sphi 0, %s290
      %s292 = sphi 0, %s290
      %s293 = sphi 0, %s292
      %s307 = sphi 0, %s293
      %s311 = sphi 0, %s311
      %s313 = sphi 0, %s311
      %s314 = sphi 0, %s313
      %s328 = sphi 0, %s314
      %s332 = sphi 0, %s332
      %s334 = sphi 0, %s332
      %s335 = sphi 0, %s334
      %s349 = sphi 0, %s335
      %s353 = sphi 0, %s353
      %s355 = sphi 0, %s353
      %s356 = sphi 0, %s355
      %s370 = sphi 0, %s356
      %s376 = sphi 0, %s378
      %s379 = sphi 0, %s376
      %s380 = sphi 0, %s379
      %s396 = sphi 0, %s380
    $region4: #{tpu_custom_call.1} parent=1 // loop_header_branch
      %28 = sbr.rel (%p26) target = $region8
    $region5: #{tpu_custom_call.1} parent=1 // loop_body
      %s30 = ssub.s32 %s25, 1
      %s31 = ssub.s32 %s25, 2
      %s32 = sadd.s32 %s25, 1
      %s33 = ssub.s32 %s25, %s32
      %p34 = scmp.eq.s32.totalorder %s33, 0
      %s36 = sadd.s32 %s35, 1
      %s37 = scalar_select %p34, %s35, %s36
      %p40 = pneg %p34
      %p41 = scmp.eq.s32.totalorder %s25, 1
      %p42 = por %p40, %p41
      %p43 = scmp.ne.s32.totalorder %s35, %s38
      %p44 = scmp.eq.s32.totalorder %s25, 0
      %p45 = por %p43, %p44
      %p46 = scmp.ne.s32.totalorder %s35, %s38
      %p47 = scmp.eq.s32.totalorder %s30, 1
      %p48 = por %p46, %p47
      %p49 = scmp.ne.s32.totalorder %s38, %s39
      %p50 = scmp.eq.s32.totalorder %s30, 0
      %p51 = por %p49, %p50
      %p52 = scmp.ne.s32.totalorder %s38, %s39
      %p53 = scmp.eq.s32.totalorder %s31, 1
      %p54 = por %p52, %p53
      %p56 = scmp.ne.s32.totalorder %s39, %s55
      %p57 = scmp.eq.s32.totalorder %s31, 0
      %p58 = por %p56, %p57
      %s60 = sadd.s32 %s59, 1
      %p63 = scmp.eq.s32.totalorder %s25, 1
      %p64 = scmp.ne.s32.totalorder %s59, %s61
      %p65 = scmp.eq.s32.totalorder %s25, 0
      %p66 = por %p64, %p65
      %p67 = scmp.ne.s32.totalorder %s59, %s61
      %p68 = scmp.eq.s32.totalorder %s30, 1
      %p69 = por %p67, %p68
      %p70 = scmp.ne.s32.totalorder %s61, %s62
      %p71 = scmp.eq.s32.totalorder %s30, 0
      %p72 = por %p70, %p71
      %p73 = scmp.ne.s32.totalorder %s61, %s62
      %p74 = scmp.eq.s32.totalorder %s31, 1
      %p75 = por %p73, %p74
      %p77 = scmp.ne.s32.totalorder %s62, %s76
      %p78 = scmp.eq.s32.totalorder %s31, 0
      %p79 = por %p77, %p78
      %s81 = sadd.s32 %s80, 1
      %p84 = scmp.eq.s32.totalorder %s25, 1
      %p85 = scmp.ne.s32.totalorder %s80, %s82
      %p86 = scmp.eq.s32.totalorder %s25, 0
      %p87 = por %p85, %p86
      %p88 = scmp.ne.s32.totalorder %s80, %s82
      %p89 = scmp.eq.s32.totalorder %s30, 1
      %p90 = por %p88, %p89
      %p91 = scmp.ne.s32.totalorder %s82, %s83
      %p92 = scmp.eq.s32.totalorder %s30, 0
      %p93 = por %p91, %p92
      %p94 = scmp.ne.s32.totalorder %s82, %s83
      %p95 = scmp.eq.s32.totalorder %s31, 1
      %p96 = por %p94, %p95
      %p98 = scmp.ne.s32.totalorder %s83, %s97
      %p99 = scmp.eq.s32.totalorder %s31, 0
      %p100 = por %p98, %p99
      %s102 = sadd.s32 %s101, 1
      %p105 = scmp.eq.s32.totalorder %s25, 1
      %p106 = scmp.ne.s32.totalorder %s101, %s103
      %p107 = scmp.eq.s32.totalorder %s25, 0
      %p108 = por %p106, %p107
      %p109 = scmp.ne.s32.totalorder %s101, %s103
      %p110 = scmp.eq.s32.totalorder %s30, 1
      %p111 = por %p109, %p110
      %p112 = scmp.ne.s32.totalorder %s103, %s104
      %p113 = scmp.eq.s32.totalorder %s30, 0
      %p114 = por %p112, %p113
      %p115 = scmp.ne.s32.totalorder %s103, %s104
      %p116 = scmp.eq.s32.totalorder %s31, 1
      %p117 = por %p115, %p116
      %p119 = scmp.ne.s32.totalorder %s104, %s118
      %p120 = scmp.eq.s32.totalorder %s31, 0
      %p121 = por %p119, %p120
      %s123 = sadd.s32 %s122, 1
      %p126 = scmp.eq.s32.totalorder %s25, 1
      %p127 = scmp.ne.s32.totalorder %s122, %s124
      %p128 = scmp.eq.s32.totalorder %s25, 0
      %p129 = por %p127, %p128
      %p130 = scmp.ne.s32.totalorder %s122, %s124
      %p131 = scmp.eq.s32.totalorder %s30, 1
      %p132 = por %p130, %p131
      %p133 = scmp.ne.s32.totalorder %s124, %s125
      %p134 = scmp.eq.s32.totalorder %s30, 0
      %p135 = por %p133, %p134
      %p136 = scmp.ne.s32.totalorder %s124, %s125
      %p137 = scmp.eq.s32.totalorder %s31, 1
      %p138 = por %p136, %p137
      %p140 = scmp.ne.s32.totalorder %s125, %s139
      %p141 = scmp.eq.s32.totalorder %s31, 0
      %p142 = por %p140, %p141
      %s144 = sadd.s32 %s143, 1
      %p147 = scmp.eq.s32.totalorder %s25, 1
      %p148 = scmp.ne.s32.totalorder %s143, %s145
      %p149 = scmp.eq.s32.totalorder %s25, 0
      %p150 = por %p148, %p149
      %p151 = scmp.ne.s32.totalorder %s143, %s145
      %p152 = scmp.eq.s32.totalorder %s30, 1
      %p153 = por %p151, %p152
      %p154 = scmp.ne.s32.totalorder %s145, %s146
      %p155 = scmp.eq.s32.totalorder %s30, 0
      %p156 = por %p154, %p155
      %p157 = scmp.ne.s32.totalorder %s145, %s146
      %p158 = scmp.eq.s32.totalorder %s31, 1
      %p159 = por %p157, %p158
      %p161 = scmp.ne.s32.totalorder %s146, %s160
      %p162 = scmp.eq.s32.totalorder %s31, 0
      %p163 = por %p161, %p162
      %s165 = sadd.s32 %s164, 1
      %p168 = scmp.eq.s32.totalorder %s25, 1
      %p169 = scmp.ne.s32.totalorder %s164, %s166
      %p170 = scmp.eq.s32.totalorder %s25, 0
      %p171 = por %p169, %p170
      %p172 = scmp.ne.s32.totalorder %s164, %s166
      %p173 = scmp.eq.s32.totalorder %s30, 1
      %p174 = por %p172, %p173
      %p175 = scmp.ne.s32.totalorder %s166, %s167
      %p176 = scmp.eq.s32.totalorder %s30, 0
      %p177 = por %p175, %p176
      %p178 = scmp.ne.s32.totalorder %s166, %s167
      %p179 = scmp.eq.s32.totalorder %s31, 1
      %p180 = por %p178, %p179
      %p182 = scmp.ne.s32.totalorder %s167, %s181
      %p183 = scmp.eq.s32.totalorder %s31, 0
      %p184 = por %p182, %p183
      %s186 = sadd.s32 %s185, 1
      %p189 = scmp.eq.s32.totalorder %s25, 1
      %p190 = scmp.ne.s32.totalorder %s185, %s187
      %p191 = scmp.eq.s32.totalorder %s25, 0
      %p192 = por %p190, %p191
      %p193 = scmp.ne.s32.totalorder %s185, %s187
      %p194 = scmp.eq.s32.totalorder %s30, 1
      %p195 = por %p193, %p194
      %p196 = scmp.ne.s32.totalorder %s187, %s188
      %p197 = scmp.eq.s32.totalorder %s30, 0
      %p198 = por %p196, %p197
      %p199 = scmp.ne.s32.totalorder %s187, %s188
      %p200 = scmp.eq.s32.totalorder %s31, 1
      %p201 = por %p199, %p200
      %p203 = scmp.ne.s32.totalorder %s188, %s202
      %p204 = scmp.eq.s32.totalorder %s31, 0
      %p205 = por %p203, %p204
      %s207 = sadd.s32 %s206, 1
      %p210 = scmp.eq.s32.totalorder %s25, 1
      %p211 = scmp.ne.s32.totalorder %s206, %s208
      %p212 = scmp.eq.s32.totalorder %s25, 0
      %p213 = por %p211, %p212
      %p214 = scmp.ne.s32.totalorder %s206, %s208
      %p215 = scmp.eq.s32.totalorder %s30, 1
      %p216 = por %p214, %p215
      %p217 = scmp.ne.s32.totalorder %s208, %s209
      %p218 = scmp.eq.s32.totalorder %s30, 0
      %p219 = por %p217, %p218
      %p220 = scmp.ne.s32.totalorder %s208, %s209
      %p221 = scmp.eq.s32.totalorder %s31, 1
      %p222 = por %p220, %p221
      %p224 = scmp.ne.s32.totalorder %s209, %s223
      %p225 = scmp.eq.s32.totalorder %s31, 0
      %p226 = por %p224, %p225
      %s228 = sadd.s32 %s227, 1
      %p231 = scmp.eq.s32.totalorder %s25, 1
      %p232 = scmp.ne.s32.totalorder %s227, %s229
      %p233 = scmp.eq.s32.totalorder %s25, 0
      %p234 = por %p232, %p233
      %p235 = scmp.ne.s32.totalorder %s227, %s229
      %p236 = scmp.eq.s32.totalorder %s30, 1
      %p237 = por %p235, %p236
      %p238 = scmp.ne.s32.totalorder %s229, %s230
      %p239 = scmp.eq.s32.totalorder %s30, 0
      %p240 = por %p238, %p239
      %p241 = scmp.ne.s32.totalorder %s229, %s230
      %p242 = scmp.eq.s32.totalorder %s31, 1
      %p243 = por %p241, %p242
      %p245 = scmp.ne.s32.totalorder %s230, %s244
      %p246 = scmp.eq.s32.totalorder %s31, 0
      %p247 = por %p245, %p246
      %s249 = sadd.s32 %s248, 1
      %p252 = scmp.eq.s32.totalorder %s25, 1
      %p253 = scmp.ne.s32.totalorder %s248, %s250
      %p254 = scmp.eq.s32.totalorder %s25, 0
      %p255 = por %p253, %p254
      %p256 = scmp.ne.s32.totalorder %s248, %s250
      %p257 = scmp.eq.s32.totalorder %s30, 1
      %p258 = por %p256, %p257
      %p259 = scmp.ne.s32.totalorder %s250, %s251
      %p260 = scmp.eq.s32.totalorder %s30, 0
      %p261 = por %p259, %p260
      %p262 = scmp.ne.s32.totalorder %s250, %s251
      %p263 = scmp.eq.s32.totalorder %s31, 1
      %p264 = por %p262, %p263
      %p266 = scmp.ne.s32.totalorder %s251, %s265
      %p267 = scmp.eq.s32.totalorder %s31, 0
      %p268 = por %p266, %p267
      %s270 = sadd.s32 %s269, 1
      %p273 = scmp.eq.s32.totalorder %s25, 1
      %p274 = scmp.ne.s32.totalorder %s269, %s271
      %p275 = scmp.eq.s32.totalorder %s25, 0
      %p276 = por %p274, %p275
      %p277 = scmp.ne.s32.totalorder %s269, %s271
      %p278 = scmp.eq.s32.totalorder %s30, 1
      %p279 = por %p277, %p278
      %p280 = scmp.ne.s32.totalorder %s271, %s272
      %p281 = scmp.eq.s32.totalorder %s30, 0
      %p282 = por %p280, %p281
      %p283 = scmp.ne.s32.totalorder %s271, %s272
      %p284 = scmp.eq.s32.totalorder %s31, 1
      %p285 = por %p283, %p284
      %p287 = scmp.ne.s32.totalorder %s272, %s286
      %p288 = scmp.eq.s32.totalorder %s31, 0
      %p289 = por %p287, %p288
      %s291 = sadd.s32 %s290, 1
      %p294 = scmp.eq.s32.totalorder %s25, 1
      %p295 = scmp.ne.s32.totalorder %s290, %s292
      %p296 = scmp.eq.s32.totalorder %s25, 0
      %p297 = por %p295, %p296
      %p298 = scmp.ne.s32.totalorder %s290, %s292
      %p299 = scmp.eq.s32.totalorder %s30, 1
      %p300 = por %p298, %p299
      %p301 = scmp.ne.s32.totalorder %s292, %s293
      %p302 = scmp.eq.s32.totalorder %s30, 0
      %p303 = por %p301, %p302
      %p304 = scmp.ne.s32.totalorder %s292, %s293
      %p305 = scmp.eq.s32.totalorder %s31, 1
      %p306 = por %p304, %p305
      %p308 = scmp.ne.s32.totalorder %s293, %s307
      %p309 = scmp.eq.s32.totalorder %s31, 0
      %p310 = por %p308, %p309
      %s312 = sadd.s32 %s311, 1
      %p315 = scmp.eq.s32.totalorder %s25, 1
      %p316 = scmp.ne.s32.totalorder %s311, %s313
      %p317 = scmp.eq.s32.totalorder %s25, 0
      %p318 = por %p316, %p317
      %p319 = scmp.ne.s32.totalorder %s311, %s313
      %p320 = scmp.eq.s32.totalorder %s30, 1
      %p321 = por %p319, %p320
      %p322 = scmp.ne.s32.totalorder %s313, %s314
      %p323 = scmp.eq.s32.totalorder %s30, 0
      %p324 = por %p322, %p323
      %p325 = scmp.ne.s32.totalorder %s313, %s314
      %p326 = scmp.eq.s32.totalorder %s31, 1
      %p327 = por %p325, %p326
      %p329 = scmp.ne.s32.totalorder %s314, %s328
      %p330 = scmp.eq.s32.totalorder %s31, 0
      %p331 = por %p329, %p330
      %s333 = sadd.s32 %s332, 1
      %p336 = scmp.eq.s32.totalorder %s25, 1
      %p337 = scmp.ne.s32.totalorder %s332, %s334
      %p338 = scmp.eq.s32.totalorder %s25, 0
      %p339 = por %p337, %p338
      %p340 = scmp.ne.s32.totalorder %s332, %s334
      %p341 = scmp.eq.s32.totalorder %s30, 1
      %p342 = por %p340, %p341
      %p343 = scmp.ne.s32.totalorder %s334, %s335
      %p344 = scmp.eq.s32.totalorder %s30, 0
      %p345 = por %p343, %p344
      %p346 = scmp.ne.s32.totalorder %s334, %s335
      %p347 = scmp.eq.s32.totalorder %s31, 1
      %p348 = por %p346, %p347
      %p350 = scmp.ne.s32.totalorder %s335, %s349
      %p351 = scmp.eq.s32.totalorder %s31, 0
      %p352 = por %p350, %p351
      %s354 = sadd.s32 %s353, 1
      %p357 = scmp.eq.s32.totalorder %s25, 1
      %p358 = scmp.ne.s32.totalorder %s353, %s355
      %p359 = scmp.eq.s32.totalorder %s25, 0
      %p360 = por %p358, %p359
      %p361 = scmp.ne.s32.totalorder %s353, %s355
      %p362 = scmp.eq.s32.totalorder %s30, 1
      %p363 = por %p361, %p362
      %p364 = scmp.ne.s32.totalorder %s355, %s356
      %p365 = scmp.eq.s32.totalorder %s30, 0
      %p366 = por %p364, %p365
      %p367 = scmp.ne.s32.totalorder %s355, %s356
      %p368 = scmp.eq.s32.totalorder %s31, 1
      %p369 = por %p367, %p368
      %p371 = scmp.ne.s32.totalorder %s356, %s370
      %p372 = scmp.eq.s32.totalorder %s31, 0
      %p373 = por %p371, %p372
      %s374 = ssub.s32 %s25, %s32
      %p375 = scmp.eq.s32.totalorder %s374, 0
      %s377 = sadd.s32 %s376, 1
      %s378 = scalar_select %p375, %s376, %s377
      %p381 = pneg %p375
      %p382 = scmp.eq.s32.totalorder %s25, 1
      %p383 = por %p381, %p382
      %p384 = scmp.ne.s32.totalorder %s376, %s379
      %p385 = scmp.eq.s32.totalorder %s25, 0
      %p386 = por %p384, %p385
      %p387 = scmp.ne.s32.totalorder %s376, %s379
      %p388 = scmp.eq.s32.totalorder %s30, 1
      %p389 = por %p387, %p388
      %p390 = scmp.ne.s32.totalorder %s379, %s380
      %p391 = scmp.eq.s32.totalorder %s30, 0
      %p392 = por %p390, %p391
      %p393 = scmp.ne.s32.totalorder %s379, %s380
      %p394 = scmp.eq.s32.totalorder %s31, 1
      %p395 = por %p393, %p394
      %p397 = scmp.ne.s32.totalorder %s380, %s396
      %p398 = scmp.eq.s32.totalorder %s31, 0
      %p399 = por %p397, %p398
      %p400 = scmp.le.s32.totalorder 1, %s25
      %p401 = scmp.lt.s32.totalorder %s25, 3
      %p402 = pnand %p400, %p401
      %p403 = pneg %p402
      // Predicated region
      $region9: #{tpu_custom_call.1} parent=5 // pred_check
        _
      $region10: #{tpu_custom_call.1} parent=5 // pred_check_branch
        %405 = sbr.rel (%p402) target = $region12
      $region11: #{tpu_custom_call.1} parent=5 // pred_region
        %s406 = ssub.s32 %s25, 1
        // Predicated region
        $region13: #{tpu_custom_call.1} parent=11 // pred_check
          %p407 = pneg %p72
        $region14: #{tpu_custom_call.1} parent=11 // pred_check_branch
          %409 = sbr.rel (%p407) target = $region16
        $region15: #{tpu_custom_call.1} parent=11 // pred_region
          _
        $region16: #{tpu_custom_call.1} parent=11 // pred_fallthru
          _
        // Predicated region
        $region17: #{tpu_custom_call.1} parent=11 // pred_check
          %p410 = pneg %p93
        $region18: #{tpu_custom_call.1} parent=11 // pred_check_branch
          %412 = sbr.rel (%p410) target = $region20
        $region19: #{tpu_custom_call.1} parent=11 // pred_region
          _
        $region20: #{tpu_custom_call.1} parent=11 // pred_fallthru
          _
        // Predicated region
        $region21: #{tpu_custom_call.1} parent=11 // pred_check
          %p413 = pneg %p114
        $region22: #{tpu_custom_call.1} parent=11 // pred_check_branch
          %415 = sbr.rel (%p413) target = $region24
        $region23: #{tpu_custom_call.1} parent=11 // pred_region
          _
        $region24: #{tpu_custom_call.1} parent=11 // pred_fallthru
          _
        // Predicated region
        $region25: #{tpu_custom_call.1} parent=11 // pred_check
          %p416 = pneg %p135
        $region26: #{tpu_custom_call.1} parent=11 // pred_check_branch
          %418 = sbr.rel (%p416) target = $region28
        $region27: #{tpu_custom_call.1} parent=11 // pred_region
          _
        $region28: #{tpu_custom_call.1} parent=11 // pred_fallthru
          _
        // Predicated region
        $region29: #{tpu_custom_call.1} parent=11 // pred_check
          %p419 = pneg %p156
        $region30: #{tpu_custom_call.1} parent=11 // pred_check_branch
          %421 = sbr.rel (%p419) target = $region32
        $region31: #{tpu_custom_call.1} parent=11 // pred_region
          _
        $region32: #{tpu_custom_call.1} parent=11 // pred_fallthru
          _
        // Predicated region
        $region33: #{tpu_custom_call.1} parent=11 // pred_check
          %p422 = pneg %p177
        $region34: #{tpu_custom_call.1} parent=11 // pred_check_branch
          %424 = sbr.rel (%p422) target = $region36
        $region35: #{tpu_custom_call.1} parent=11 // pred_region
          _
        $region36: #{tpu_custom_call.1} parent=11 // pred_fallthru
          _
        // Predicated region
        $region37: #{tpu_custom_call.1} parent=11 // pred_check
          %p425 = pneg %p198
        $region38: #{tpu_custom_call.1} parent=11 // pred_check_branch
          %427 = sbr.rel (%p425) target = $region40
        $region39: #{tpu_custom_call.1} parent=11 // pred_region
          _
        $region40: #{tpu_custom_call.1} parent=11 // pred_fallthru
          _
        // Predicated region
        $region41: #{tpu_custom_call.1} parent=11 // pred_check
          %p428 = pneg %p219
        $region42: #{tpu_custom_call.1} parent=11 // pred_check_branch
          %430 = sbr.rel (%p428) target = $region44
        $region43: #{tpu_custom_call.1} parent=11 // pred_region
          _
        $region44: #{tpu_custom_call.1} parent=11 // pred_fallthru
          _
        // Predicated region
        $region45: #{tpu_custom_call.1} parent=11 // pred_check
          %p431 = pneg %p240
        $region46: #{tpu_custom_call.1} parent=11 // pred_check_branch
          %433 = sbr.rel (%p431) target = $region48
        $region47: #{tpu_custom_call.1} parent=11 // pred_region
          _
        $region48: #{tpu_custom_call.1} parent=11 // pred_fallthru
          _
        // Predicated region
        $region49: #{tpu_custom_call.1} parent=11 // pred_check
          %p434 = pneg %p261
        $region50: #{tpu_custom_call.1} parent=11 // pred_check_branch
          %436 = sbr.rel (%p434) target = $region52
        $region51: #{tpu_custom_call.1} parent=11 // pred_region
          _
        $region52: #{tpu_custom_call.1} parent=11 // pred_fallthru
          _
        // Predicated region
        $region53: #{tpu_custom_call.1} parent=11 // pred_check
          %p437 = pneg %p282
        $region54: #{tpu_custom_call.1} parent=11 // pred_check_branch
          %439 = sbr.rel (%p437) target = $region56
        $region55: #{tpu_custom_call.1} parent=11 // pred_region
          _
        $region56: #{tpu_custom_call.1} parent=11 // pred_fallthru
          _
        // Predicated region
        $region57: #{tpu_custom_call.1} parent=11 // pred_check
          %p440 = pneg %p303
        $region58: #{tpu_custom_call.1} parent=11 // pred_check_branch
          %442 = sbr.rel (%p440) target = $region60
        $region59: #{tpu_custom_call.1} parent=11 // pred_region
          _
        $region60: #{tpu_custom_call.1} parent=11 // pred_fallthru
          _
        // Predicated region
        $region61: #{tpu_custom_call.1} parent=11 // pred_check
          %p443 = pneg %p324
        $region62: #{tpu_custom_call.1} parent=11 // pred_check_branch
          %445 = sbr.rel (%p443) target = $region64
        $region63: #{tpu_custom_call.1} parent=11 // pred_region
          _
        $region64: #{tpu_custom_call.1} parent=11 // pred_fallthru
          _
        // Predicated region
        $region65: #{tpu_custom_call.1} parent=11 // pred_check
          %p446 = pneg %p345
        $region66: #{tpu_custom_call.1} parent=11 // pred_check_branch
          %448 = sbr.rel (%p446) target = $region68
        $region67: #{tpu_custom_call.1} parent=11 // pred_region
          _
        $region68: #{tpu_custom_call.1} parent=11 // pred_fallthru
          _
        // Predicated region
        $region69: #{tpu_custom_call.1} parent=11 // pred_check
          %p449 = pneg %p366
        $region70: #{tpu_custom_call.1} parent=11 // pred_check_branch
          %451 = sbr.rel (%p449) target = $region72
        $region71: #{tpu_custom_call.1} parent=11 // pred_region
          _
        $region72: #{tpu_custom_call.1} parent=11 // pred_fallthru
          _
      $region12: #{tpu_custom_call.1} parent=5 // pred_fallthru
        _
      %p452 = scmp.lt.s32.totalorder %s25, 2
      // Predicated region
      $region73: #{tpu_custom_call.1} parent=5 // pred_check
        %p453 = pneg %p452
      $region74: #{tpu_custom_call.1} parent=5 // pred_check_branch
        %455 = sbr.rel (%p453) target = $region76
      $region75: #{tpu_custom_call.1} parent=5 // pred_region
        // Predicated region
        $region77: #{tpu_custom_call.1} parent=75 // pred_check
          %p456 = pneg %p45
        $region78: #{tpu_custom_call.1} parent=75 // pred_check_branch
          %458 = sbr.rel (%p456) target = $region80
        $region79: #{tpu_custom_call.1} parent=75 // pred_region
          %s459 = smul.u32 32, %s25
          %p460 = scmp.lt.s32.totalorder %s459, 63
          %s461 = scalar_select %p460, %s459, 63
          %s462 = smul.addr %s461, 8
          %s463 = scalar_lea.vmem %s0, %s462
          %s464 = smul.u32 32, %s25
        $region80: #{tpu_custom_call.1} parent=75 // pred_fallthru
          _
      $region76: #{tpu_custom_call.1} parent=5 // pred_fallthru
        _
      %p465 = scmp.le.s32.totalorder 1, %s25
      %p466 = scmp.lt.s32.totalorder %s25, 3
      %p467 = pnand %p465, %p466
      %p468 = pneg %p467
      // Predicated region
      $region81: #{tpu_custom_call.1} parent=5 // pred_check
        _
      $region82: #{tpu_custom_call.1} parent=5 // pred_check_branch
        %470 = sbr.rel (%p467) target = $region84
      $region83: #{tpu_custom_call.1} parent=5 // pred_region
        %s471 = ssub.s32 %s25, 1
        %s472 = smul.u32 32, %s30
        %p473 = scmp.lt.s32.totalorder %s472, 63
        %s474 = scalar_select %p473, %s472, 63
        %s475 = smul.addr %s474, 8
        %s476 = scalar_lea.vmem %s0, %s475
        %p477 = pneg %p51
        %p478 = pneg %p48
        %p479 = pneg %p72
        %p480 = pneg %p69
        %p481 = pneg %p93
        %p482 = pneg %p90
        %p483 = pneg %p114
        %p484 = pneg %p111
        %p485 = pneg %p135
        %p486 = pneg %p132
        %p487 = pneg %p156
        %p488 = pneg %p153
        %p489 = pneg %p177
        %p490 = pneg %p174
        %p491 = pneg %p198
        %p492 = pneg %p195
        %p493 = pneg %p219
        %p494 = pneg %p216
        %p495 = pneg %p240
        %p496 = pneg %p237
        %p497 = pneg %p261
        %p498 = pneg %p258
        %p499 = pneg %p282
        %p500 = pneg %p279
        %p501 = pneg %p303
        %p502 = pneg %p300
        %p503 = pneg %p324
        %p504 = pneg %p321
        %p505 = pneg %p345
        %p506 = pneg %p342
        %p507 = pneg %p366
        %p508 = pneg %p363
        %p509 = pneg %p392
        %p510 = pneg %p389
        %s511 = sand.u32 %s379, 1
        %s512 = scalar_lea.sflag [#allocation3], %s511
        %s513 = sand.u32 %s379, 1
        %s514 = smul.addr %s513, 8
        %s515 = scalar_lea.vmem [#allocation2], %s514
        %s516 = smul.u32 32, %s30
        %p517 = scmp.lt.s32.totalorder %s516, 63
        %s518 = scalar_select %p517, %s516, 63
        %s519 = smul.addr %s518, 8
        %s520 = scalar_lea.vmem %s0, %s519
        %s521 = smul.u32 32, %s30
        %v522 = vld [vmem:[%s520] sm:$0xff]
        %v523 = vld [vmem:[%s520 + $0x8] sm:$0xff]
        %v524 = vld [vmem:[%s520 + $0x10] sm:$0xff]
        %v525 = vld [vmem:[%s520 + $0x18] sm:$0xff]
        %v526 = vld [vmem:[%s520 + $0x20] sm:$0xff]
        %v527 = vld [vmem:[%s520 + $0x28] sm:$0xff]
        %v528 = vld [vmem:[%s520 + $0x30] sm:$0xff]
        %v529 = vld [vmem:[%s520 + $0x38] sm:$0xff]
        %v530 = vld [vmem:[%s520 + $0x40] sm:$0xff]
        %v531 = vld [vmem:[%s520 + $0x48] sm:$0xff]
        %v532 = vld [vmem:[%s520 + $0x50] sm:$0xff]
        %v533 = vld [vmem:[%s520 + $0x58] sm:$0xff]
        %v534 = vld [vmem:[%s520 + $0x60] sm:$0xff]
        %v535 = vld [vmem:[%s520 + $0x68] sm:$0xff]
        %v536 = vld [vmem:[%s520 + $0x70] sm:$0xff]
        %v537 = vld [vmem:[%s520 + $0x78] sm:$0xff]
        %v538 = vld [vmem:[%s520 + $0x80] sm:$0xff]
        %v539 = vld [vmem:[%s520 + $0x88] sm:$0xff]
        %v540 = vld [vmem:[%s520 + $0x90] sm:$0xff]
        %v541 = vld [vmem:[%s520 + $0x98] sm:$0xff]
        %v542 = vld [vmem:[%s520 + $0xa0] sm:$0xff]
        %v543 = vld [vmem:[%s520 + $0xa8] sm:$0xff]
        %v544 = vld [vmem:[%s520 + $0xb0] sm:$0xff]
        %v545 = vld [vmem:[%s520 + $0xb8] sm:$0xff]
        %v546 = vld [vmem:[%s520 + $0xc0] sm:$0xff]
        %v547 = vld [vmem:[%s520 + $0xc8] sm:$0xff]
        %v548 = vld [vmem:[%s520 + $0xd0] sm:$0xff]
        %v549 = vld [vmem:[%s520 + $0xd8] sm:$0xff]
        %v550 = vld [vmem:[%s520 + $0xe0] sm:$0xff]
        %v551 = vld [vmem:[%s520 + $0xe8] sm:$0xff]
        %v552 = vld [vmem:[%s520 + $0xf0] sm:$0xff]
        %v553 = vld [vmem:[%s520 + $0xf8] sm:$0xff]
        %vm586 = vcmask 1046528
        %v587 = vrot.slane %v522, 1
        %v588 = vrot.slane %v523, 1
        %v589 = vsel %vm586, %v587, %v588
        %v590 = vrot.slane %v524, 1
        %v591 = vsel %vm586, %v588, %v590
        %v592 = vrot.slane %v525, 1
        %v593 = vsel %vm586, %v590, %v592
        %v594 = vrot.slane %v526, 1
        %v595 = vsel %vm586, %v592, %v594
        %v596 = vrot.slane %v527, 1
        %v597 = vsel %vm586, %v594, %v596
        %v598 = vrot.slane %v528, 1
        %v599 = vsel %vm586, %v596, %v598
        %v600 = vrot.slane %v529, 1
        %v601 = vsel %vm586, %v598, %v600
        %v602 = vrot.slane %v530, 1
        %v603 = vsel %vm586, %v600, %v602
        %v604 = vrot.slane %v531, 1
        %v605 = vsel %vm586, %v602, %v604
        %v606 = vrot.slane %v532, 1
        %v607 = vsel %vm586, %v604, %v606
        %v608 = vrot.slane %v533, 1
        %v609 = vsel %vm586, %v606, %v608
        %v610 = vrot.slane %v534, 1
        %v611 = vsel %vm586, %v608, %v610
        %v612 = vrot.slane %v535, 1
        %v613 = vsel %vm586, %v610, %v612
        %v614 = vrot.slane %v536, 1
        %v615 = vsel %vm586, %v612, %v614
        %v616 = vrot.slane %v537, 1
        %v617 = vsel %vm586, %v614, %v616
        %v618 = vrot.slane %v538, 1
        %v619 = vsel %vm586, %v616, %v618
        %v620 = vrot.slane %v539, 1
        %v621 = vsel %vm586, %v618, %v620
        %v622 = vrot.slane %v540, 1
        %v623 = vsel %vm586, %v620, %v622
        %v624 = vrot.slane %v541, 1
        %v625 = vsel %vm586, %v622, %v624
        %v626 = vrot.slane %v542, 1
        %v627 = vsel %vm586, %v624, %v626
        %v628 = vrot.slane %v543, 1
        %v629 = vsel %vm586, %v626, %v628
        %v630 = vrot.slane %v544, 1
        %v631 = vsel %vm586, %v628, %v630
        %v632 = vrot.slane %v545, 1
        %v633 = vsel %vm586, %v630, %v632
        %v634 = vrot.slane %v546, 1
        %v635 = vsel %vm586, %v632, %v634
        %v636 = vrot.slane %v547, 1
        %v637 = vsel %vm586, %v634, %v636
        %v638 = vrot.slane %v548, 1
        %v639 = vsel %vm586, %v636, %v638
        %v640 = vrot.slane %v549, 1
        %v641 = vsel %vm586, %v638, %v640
        %v642 = vrot.slane %v550, 1
        %v643 = vsel %vm586, %v640, %v642
        %v644 = vrot.slane %v551, 1
        %v645 = vsel %vm586, %v642, %v644
        %v646 = vrot.slane %v552, 1
        %v647 = vsel %vm586, %v644, %v646
        %v648 = vrot.slane %v553, 1
        %v649 = vsel %vm586, %v646, %v648
        %650 = vrot.lane.b32.xlu0 %v589, 96
        %v651 = vpop.permute.xlu0 %650
        %652 = vrot.lane.b32.xlu0 %v591, 96
        %v653 = vpop.permute.xlu0 %652
        %654 = vrot.lane.b32.xlu0 %v593, 96
        %v655 = vpop.permute.xlu0 %654
        %656 = vrot.lane.b32.xlu0 %v595, 96
        %v657 = vpop.permute.xlu0 %656
        %658 = vrot.lane.b32.xlu0 %v597, 96
        %v659 = vpop.permute.xlu0 %658
        %660 = vrot.lane.b32.xlu0 %v599, 96
        %v661 = vpop.permute.xlu0 %660
        %662 = vrot.lane.b32.xlu0 %v601, 96
        %v663 = vpop.permute.xlu0 %662
        %664 = vrot.lane.b32.xlu0 %v603, 96
        %v665 = vpop.permute.xlu0 %664
        %666 = vrot.lane.b32.xlu0 %v605, 96
        %v667 = vpop.permute.xlu0 %666
        %668 = vrot.lane.b32.xlu0 %v607, 96
        %v669 = vpop.permute.xlu0 %668
        %670 = vrot.lane.b32.xlu0 %v609, 96
        %v671 = vpop.permute.xlu0 %670
        %672 = vrot.lane.b32.xlu0 %v611, 96
        %v673 = vpop.permute.xlu0 %672
        %674 = vrot.lane.b32.xlu0 %v613, 96
        %v675 = vpop.permute.xlu0 %674
        %676 = vrot.lane.b32.xlu0 %v615, 96
        %v677 = vpop.permute.xlu0 %676
        %678 = vrot.lane.b32.xlu0 %v617, 96
        %v679 = vpop.permute.xlu0 %678
        %680 = vrot.lane.b32.xlu0 %v619, 96
        %v681 = vpop.permute.xlu0 %680
        %682 = vrot.lane.b32.xlu0 %v621, 96
        %v683 = vpop.permute.xlu0 %682
        %684 = vrot.lane.b32.xlu0 %v623, 96
        %v685 = vpop.permute.xlu0 %684
        %686 = vrot.lane.b32.xlu0 %v625, 96
        %v687 = vpop.permute.xlu0 %686
        %688 = vrot.lane.b32.xlu0 %v627, 96
        %v689 = vpop.permute.xlu0 %688
        %690 = vrot.lane.b32.xlu0 %v629, 96
        %v691 = vpop.permute.xlu0 %690
        %692 = vrot.lane.b32.xlu0 %v631, 96
        %v693 = vpop.permute.xlu0 %692
        %694 = vrot.lane.b32.xlu0 %v633, 96
        %v695 = vpop.permute.xlu0 %694
        %696 = vrot.lane.b32.xlu0 %v635, 96
        %v697 = vpop.permute.xlu0 %696
        %698 = vrot.lane.b32.xlu0 %v637, 96
        %v699 = vpop.permute.xlu0 %698
        %700 = vrot.lane.b32.xlu0 %v639, 96
        %v701 = vpop.permute.xlu0 %700
        %702 = vrot.lane.b32.xlu0 %v641, 96
        %v703 = vpop.permute.xlu0 %702
        %704 = vrot.lane.b32.xlu0 %v643, 96
        %v705 = vpop.permute.xlu0 %704
        %706 = vrot.lane.b32.xlu0 %v645, 96
        %v707 = vpop.permute.xlu0 %706
        %708 = vrot.lane.b32.xlu0 %v647, 96
        %v709 = vpop.permute.xlu0 %708
        %710 = vrot.lane.b32.xlu0 %v649, 96
        %v711 = vpop.permute.xlu0 %710
        %712 = vrot.lane.b32.xlu0 %v648, 96
        %v713 = vpop.permute.xlu0 %712
        %vm746 = vcmask 1045504
        %v747 = vrot.slane %v522, 2
        %v748 = vrot.slane %v523, 2
        %v749 = vsel %vm746, %v747, %v748
        %v750 = vrot.slane %v524, 2
        %v751 = vsel %vm746, %v748, %v750
        %v752 = vrot.slane %v525, 2
        %v753 = vsel %vm746, %v750, %v752
        %v754 = vrot.slane %v526, 2
        %v755 = vsel %vm746, %v752, %v754
        %v756 = vrot.slane %v527, 2
        %v757 = vsel %vm746, %v754, %v756
        %v758 = vrot.slane %v528, 2
        %v759 = vsel %vm746, %v756, %v758
        %v760 = vrot.slane %v529, 2
        %v761 = vsel %vm746, %v758, %v760
        %v762 = vrot.slane %v530, 2
        %v763 = vsel %vm746, %v760, %v762
        %v764 = vrot.slane %v531, 2
        %v765 = vsel %vm746, %v762, %v764
        %v766 = vrot.slane %v532, 2
        %v767 = vsel %vm746, %v764, %v766
        %v768 = vrot.slane %v533, 2
        %v769 = vsel %vm746, %v766, %v768
        %v770 = vrot.slane %v534, 2
        %v771 = vsel %vm746, %v768, %v770
        %v772 = vrot.slane %v535, 2
        %v773 = vsel %vm746, %v770, %v772
        %v774 = vrot.slane %v536, 2
        %v775 = vsel %vm746, %v772, %v774
        %v776 = vrot.slane %v537, 2
        %v777 = vsel %vm746, %v774, %v776
        %v778 = vrot.slane %v538, 2
        %v779 = vsel %vm746, %v776, %v778
        %v780 = vrot.slane %v539, 2
        %v781 = vsel %vm746, %v778, %v780
        %v782 = vrot.slane %v540, 2
        %v783 = vsel %vm746, %v780, %v782
        %v784 = vrot.slane %v541, 2
        %v785 = vsel %vm746, %v782, %v784
        %v786 = vrot.slane %v542, 2
        %v787 = vsel %vm746, %v784, %v786
        %v788 = vrot.slane %v543, 2
        %v789 = vsel %vm746, %v786, %v788
        %v790 = vrot.slane %v544, 2
        %v791 = vsel %vm746, %v788, %v790
        %v792 = vrot.slane %v545, 2
        %v793 = vsel %vm746, %v790, %v792
        %v794 = vrot.slane %v546, 2
        %v795 = vsel %vm746, %v792, %v794
        %v796 = vrot.slane %v547, 2
        %v797 = vsel %vm746, %v794, %v796
        %v798 = vrot.slane %v548, 2
        %v799 = vsel %vm746, %v796, %v798
        %v800 = vrot.slane %v549, 2
        %v801 = vsel %vm746, %v798, %v800
        %v802 = vrot.slane %v550, 2
        %v803 = vsel %vm746, %v800, %v802
        %v804 = vrot.slane %v551, 2
        %v805 = vsel %vm746, %v802, %v804
        %v806 = vrot.slane %v552, 2
        %v807 = vsel %vm746, %v804, %v806
        %v808 = vrot.slane %v553, 2
        %v809 = vsel %vm746, %v806, %v808
        %810 = vrot.lane.b32.xlu0 %v749, 64
        %v811 = vpop.permute.xlu0 %810
        %812 = vrot.lane.b32.xlu0 %v751, 64
        %v813 = vpop.permute.xlu0 %812
        %814 = vrot.lane.b32.xlu0 %v753, 64
        %v815 = vpop.permute.xlu0 %814
        %816 = vrot.lane.b32.xlu0 %v755, 64
        %v817 = vpop.permute.xlu0 %816
        %818 = vrot.lane.b32.xlu0 %v757, 64
        %v819 = vpop.permute.xlu0 %818
        %820 = vrot.lane.b32.xlu0 %v759, 64
        %v821 = vpop.permute.xlu0 %820
        %822 = vrot.lane.b32.xlu0 %v761, 64
        %v823 = vpop.permute.xlu0 %822
        %824 = vrot.lane.b32.xlu0 %v763, 64
        %v825 = vpop.permute.xlu0 %824
        %826 = vrot.lane.b32.xlu0 %v765, 64
        %v827 = vpop.permute.xlu0 %826
        %828 = vrot.lane.b32.xlu0 %v767, 64
        %v829 = vpop.permute.xlu0 %828
        %830 = vrot.lane.b32.xlu0 %v769, 64
        %v831 = vpop.permute.xlu0 %830
        %832 = vrot.lane.b32.xlu0 %v771, 64
        %v833 = vpop.permute.xlu0 %832
        %834 = vrot.lane.b32.xlu0 %v773, 64
        %v835 = vpop.permute.xlu0 %834
        %836 = vrot.lane.b32.xlu0 %v775, 64
        %v837 = vpop.permute.xlu0 %836
        %838 = vrot.lane.b32.xlu0 %v777, 64
        %v839 = vpop.permute.xlu0 %838
        %840 = vrot.lane.b32.xlu0 %v779, 64
        %v841 = vpop.permute.xlu0 %840
        %842 = vrot.lane.b32.xlu0 %v781, 64
        %v843 = vpop.permute.xlu0 %842
        %844 = vrot.lane.b32.xlu0 %v783, 64
        %v845 = vpop.permute.xlu0 %844
        %846 = vrot.lane.b32.xlu0 %v785, 64
        %v847 = vpop.permute.xlu0 %846
        %848 = vrot.lane.b32.xlu0 %v787, 64
        %v849 = vpop.permute.xlu0 %848
        %850 = vrot.lane.b32.xlu0 %v789, 64
        %v851 = vpop.permute.xlu0 %850
        %852 = vrot.lane.b32.xlu0 %v791, 64
        %v853 = vpop.permute.xlu0 %852
        %854 = vrot.lane.b32.xlu0 %v793, 64
        %v855 = vpop.permute.xlu0 %854
        %856 = vrot.lane.b32.xlu0 %v795, 64
        %v857 = vpop.permute.xlu0 %856
        %858 = vrot.lane.b32.xlu0 %v797, 64
        %v859 = vpop.permute.xlu0 %858
        %860 = vrot.lane.b32.xlu0 %v799, 64
        %v861 = vpop.permute.xlu0 %860
        %862 = vrot.lane.b32.xlu0 %v801, 64
        %v863 = vpop.permute.xlu0 %862
        %864 = vrot.lane.b32.xlu0 %v803, 64
        %v865 = vpop.permute.xlu0 %864
        %866 = vrot.lane.b32.xlu0 %v805, 64
        %v867 = vpop.permute.xlu0 %866
        %868 = vrot.lane.b32.xlu0 %v807, 64
        %v869 = vpop.permute.xlu0 %868
        %870 = vrot.lane.b32.xlu0 %v809, 64
        %v871 = vpop.permute.xlu0 %870
        %872 = vrot.lane.b32.xlu0 %v808, 64
        %v873 = vpop.permute.xlu0 %872
        %vm906 = vcmask 1044480
        %v907 = vrot.slane %v522, 3
        %v908 = vrot.slane %v523, 3
        %v909 = vsel %vm906, %v907, %v908
        %v910 = vrot.slane %v524, 3
        %v911 = vsel %vm906, %v908, %v910
        %v912 = vrot.slane %v525, 3
        %v913 = vsel %vm906, %v910, %v912
        %v914 = vrot.slane %v526, 3
        %v915 = vsel %vm906, %v912, %v914
        %v916 = vrot.slane %v527, 3
        %v917 = vsel %vm906, %v914, %v916
        %v918 = vrot.slane %v528, 3
        %v919 = vsel %vm906, %v916, %v918
        %v920 = vrot.slane %v529, 3
        %v921 = vsel %vm906, %v918, %v920
        %v922 = vrot.slane %v530, 3
        %v923 = vsel %vm906, %v920, %v922
        %v924 = vrot.slane %v531, 3
        %v925 = vsel %vm906, %v922, %v924
        %v926 = vrot.slane %v532, 3
        %v927 = vsel %vm906, %v924, %v926
        %v928 = vrot.slane %v533, 3
        %v929 = vsel %vm906, %v926, %v928
        %v930 = vrot.slane %v534, 3
        %v931 = vsel %vm906, %v928, %v930
        %v932 = vrot.slane %v535, 3
        %v933 = vsel %vm906, %v930, %v932
        %v934 = vrot.slane %v536, 3
        %v935 = vsel %vm906, %v932, %v934
        %v936 = vrot.slane %v537, 3
        %v937 = vsel %vm906, %v934, %v936
        %v938 = vrot.slane %v538, 3
        %v939 = vsel %vm906, %v936, %v938
        %v940 = vrot.slane %v539, 3
        %v941 = vsel %vm906, %v938, %v940
        %v942 = vrot.slane %v540, 3
        %v943 = vsel %vm906, %v940, %v942
        %v944 = vrot.slane %v541, 3
        %v945 = vsel %vm906, %v942, %v944
        %v946 = vrot.slane %v542, 3
        %v947 = vsel %vm906, %v944, %v946
        %v948 = vrot.slane %v543, 3
        %v949 = vsel %vm906, %v946, %v948
        %v950 = vrot.slane %v544, 3
        %v951 = vsel %vm906, %v948, %v950
        %v952 = vrot.slane %v545, 3
        %v953 = vsel %vm906, %v950, %v952
        %v954 = vrot.slane %v546, 3
        %v955 = vsel %vm906, %v952, %v954
        %v956 = vrot.slane %v547, 3
        %v957 = vsel %vm906, %v954, %v956
        %v958 = vrot.slane %v548, 3
        %v959 = vsel %vm906, %v956, %v958
        %v960 = vrot.slane %v549, 3
        %v961 = vsel %vm906, %v958, %v960
        %v962 = vrot.slane %v550, 3
        %v963 = vsel %vm906, %v960, %v962
        %v964 = vrot.slane %v551, 3
        %v965 = vsel %vm906, %v962, %v964
        %v966 = vrot.slane %v552, 3
        %v967 = vsel %vm906, %v964, %v966
        %v968 = vrot.slane %v553, 3
        %v969 = vsel %vm906, %v966, %v968
        %970 = vrot.lane.b32.xlu0 %v909, 32
        %v971 = vpop.permute.xlu0 %970
        %972 = vrot.lane.b32.xlu0 %v911, 32
        %v973 = vpop.permute.xlu0 %972
        %974 = vrot.lane.b32.xlu0 %v913, 32
        %v975 = vpop.permute.xlu0 %974
        %976 = vrot.lane.b32.xlu0 %v915, 32
        %v977 = vpop.permute.xlu0 %976
        %978 = vrot.lane.b32.xlu0 %v917, 32
        %v979 = vpop.permute.xlu0 %978
        %980 = vrot.lane.b32.xlu0 %v919, 32
        %v981 = vpop.permute.xlu0 %980
        %982 = vrot.lane.b32.xlu0 %v921, 32
        %v983 = vpop.permute.xlu0 %982
        %984 = vrot.lane.b32.xlu0 %v923, 32
        %v985 = vpop.permute.xlu0 %984
        %986 = vrot.lane.b32.xlu0 %v925, 32
        %v987 = vpop.permute.xlu0 %986
        %988 = vrot.lane.b32.xlu0 %v927, 32
        %v989 = vpop.permute.xlu0 %988
        %990 = vrot.lane.b32.xlu0 %v929, 32
        %v991 = vpop.permute.xlu0 %990
        %992 = vrot.lane.b32.xlu0 %v931, 32
        %v993 = vpop.permute.xlu0 %992
        %994 = vrot.lane.b32.xlu0 %v933, 32
        %v995 = vpop.permute.xlu0 %994
        %996 = vrot.lane.b32.xlu0 %v935, 32
        %v997 = vpop.permute.xlu0 %996
        %998 = vrot.lane.b32.xlu0 %v937, 32
        %v999 = vpop.permute.xlu0 %998
        %1000 = vrot.lane.b32.xlu0 %v939, 32
        %v1001 = vpop.permute.xlu0 %1000
        %1002 = vrot.lane.b32.xlu0 %v941, 32
        %v1003 = vpop.permute.xlu0 %1002
        %1004 = vrot.lane.b32.xlu0 %v943, 32
        %v1005 = vpop.permute.xlu0 %1004
        %1006 = vrot.lane.b32.xlu0 %v945, 32
        %v1007 = vpop.permute.xlu0 %1006
        %1008 = vrot.lane.b32.xlu0 %v947, 32
        %v1009 = vpop.permute.xlu0 %1008
        %1010 = vrot.lane.b32.xlu0 %v949, 32
        %v1011 = vpop.permute.xlu0 %1010
        %1012 = vrot.lane.b32.xlu0 %v951, 32
        %v1013 = vpop.permute.xlu0 %1012
        %1014 = vrot.lane.b32.xlu0 %v953, 32
        %v1015 = vpop.permute.xlu0 %1014
        %1016 = vrot.lane.b32.xlu0 %v955, 32
        %v1017 = vpop.permute.xlu0 %1016
        %1018 = vrot.lane.b32.xlu0 %v957, 32
        %v1019 = vpop.permute.xlu0 %1018
        %1020 = vrot.lane.b32.xlu0 %v959, 32
        %v1021 = vpop.permute.xlu0 %1020
        %1022 = vrot.lane.b32.xlu0 %v961, 32
        %v1023 = vpop.permute.xlu0 %1022
        %1024 = vrot.lane.b32.xlu0 %v963, 32
        %v1025 = vpop.permute.xlu0 %1024
        %1026 = vrot.lane.b32.xlu0 %v965, 32
        %v1027 = vpop.permute.xlu0 %1026
        %1028 = vrot.lane.b32.xlu0 %v967, 32
        %v1029 = vpop.permute.xlu0 %1028
        %1030 = vrot.lane.b32.xlu0 %v969, 32
        %v1031 = vpop.permute.xlu0 %1030
        %1032 = vrot.lane.b32.xlu0 %v968, 32
        %v1033 = vpop.permute.xlu0 %1032
        %vm1066 = vcmask 1043456
        %v1067 = vrot.slane %v522, 4
        %v1068 = vrot.slane %v523, 4
        %v1069 = vsel %vm1066, %v1067, %v1068
        %v1070 = vrot.slane %v524, 4
        %v1071 = vsel %vm1066, %v1068, %v1070
        %v1072 = vrot.slane %v525, 4
        %v1073 = vsel %vm1066, %v1070, %v1072
        %v1074 = vrot.slane %v526, 4
        %v1075 = vsel %vm1066, %v1072, %v1074
        %v1076 = vrot.slane %v527, 4
        %v1077 = vsel %vm1066, %v1074, %v1076
        %v1078 = vrot.slane %v528, 4
        %v1079 = vsel %vm1066, %v1076, %v1078
        %v1080 = vrot.slane %v529, 4
        %v1081 = vsel %vm1066, %v1078, %v1080
        %v1082 = vrot.slane %v530, 4
        %v1083 = vsel %vm1066, %v1080, %v1082
        %v1084 = vrot.slane %v531, 4
        %v1085 = vsel %vm1066, %v1082, %v1084
        %v1086 = vrot.slane %v532, 4
        %v1087 = vsel %vm1066, %v1084, %v1086
        %v1088 = vrot.slane %v533, 4
        %v1089 = vsel %vm1066, %v1086, %v1088
        %v1090 = vrot.slane %v534, 4
        %v1091 = vsel %vm1066, %v1088, %v1090
        %v1092 = vrot.slane %v535, 4
        %v1093 = vsel %vm1066, %v1090, %v1092
        %v1094 = vrot.slane %v536, 4
        %v1095 = vsel %vm1066, %v1092, %v1094
        %v1096 = vrot.slane %v537, 4
        %v1097 = vsel %vm1066, %v1094, %v1096
        %v1098 = vrot.slane %v538, 4
        %v1099 = vsel %vm1066, %v1096, %v1098
        %v1100 = vrot.slane %v539, 4
        %v1101 = vsel %vm1066, %v1098, %v1100
        %v1102 = vrot.slane %v540, 4
        %v1103 = vsel %vm1066, %v1100, %v1102
        %v1104 = vrot.slane %v541, 4
        %v1105 = vsel %vm1066, %v1102, %v1104
        %v1106 = vrot.slane %v542, 4
        %v1107 = vsel %vm1066, %v1104, %v1106
        %v1108 = vrot.slane %v543, 4
        %v1109 = vsel %vm1066, %v1106, %v1108
        %v1110 = vrot.slane %v544, 4
        %v1111 = vsel %vm1066, %v1108, %v1110
        %v1112 = vrot.slane %v545, 4
        %v1113 = vsel %vm1066, %v1110, %v1112
        %v1114 = vrot.slane %v546, 4
        %v1115 = vsel %vm1066, %v1112, %v1114
        %v1116 = vrot.slane %v547, 4
        %v1117 = vsel %vm1066, %v1114, %v1116
        %v1118 = vrot.slane %v548, 4
        %v1119 = vsel %vm1066, %v1116, %v1118
        %v1120 = vrot.slane %v549, 4
        %v1121 = vsel %vm1066, %v1118, %v1120
        %v1122 = vrot.slane %v550, 4
        %v1123 = vsel %vm1066, %v1120, %v1122
        %v1124 = vrot.slane %v551, 4
        %v1125 = vsel %vm1066, %v1122, %v1124
        %v1126 = vrot.slane %v552, 4
        %v1127 = vsel %vm1066, %v1124, %v1126
        %v1128 = vrot.slane %v553, 4
        %v1129 = vsel %vm1066, %v1126, %v1128
        %vm1130 = vcmask 785408
        %v1131 = vsel %vm1130, %v522, %v651
        %v1132 = vsel %vm1130, %v523, %v653
        %v1133 = vsel %vm1130, %v524, %v655
        %v1134 = vsel %vm1130, %v525, %v657
        %v1135 = vsel %vm1130, %v526, %v659
        %v1136 = vsel %vm1130, %v527, %v661
        %v1137 = vsel %vm1130, %v528, %v663
        %v1138 = vsel %vm1130, %v529, %v665
        %v1139 = vsel %vm1130, %v530, %v667
        %v1140 = vsel %vm1130, %v531, %v669
        %v1141 = vsel %vm1130, %v532, %v671
        %v1142 = vsel %vm1130, %v533, %v673
        %v1143 = vsel %vm1130, %v534, %v675
        %v1144 = vsel %vm1130, %v535, %v677
        %v1145 = vsel %vm1130, %v536, %v679
        %v1146 = vsel %vm1130, %v537, %v681
        %v1147 = vsel %vm1130, %v538, %v683
        %v1148 = vsel %vm1130, %v539, %v685
        %v1149 = vsel %vm1130, %v540, %v687
        %v1150 = vsel %vm1130, %v541, %v689
        %v1151 = vsel %vm1130, %v542, %v691
        %v1152 = vsel %vm1130, %v543, %v693
        %v1153 = vsel %vm1130, %v544, %v695
        %v1154 = vsel %vm1130, %v545, %v697
        %v1155 = vsel %vm1130, %v546, %v699
        %v1156 = vsel %vm1130, %v547, %v701
        %v1157 = vsel %vm1130, %v548, %v703
        %v1158 = vsel %vm1130, %v549, %v705
        %v1159 = vsel %vm1130, %v550, %v707
        %v1160 = vsel %vm1130, %v551, %v709
        %v1161 = vsel %vm1130, %v552, %v711
        %v1162 = vsel %vm1130, %v553, %v713
        %vm1163 = vcmask 523264
        %v1164 = vsel %vm1163, %v651, %v811
        %v1165 = vsel %vm1163, %v653, %v813
        %v1166 = vsel %vm1163, %v655, %v815
        %v1167 = vsel %vm1163, %v657, %v817
        %v1168 = vsel %vm1163, %v659, %v819
        %v1169 = vsel %vm1163, %v661, %v821
        %v1170 = vsel %vm1163, %v663, %v823
        %v1171 = vsel %vm1163, %v665, %v825
        %v1172 = vsel %vm1163, %v667, %v827
        %v1173 = vsel %vm1163, %v669, %v829
        %v1174 = vsel %vm1163, %v671, %v831
        %v1175 = vsel %vm1163, %v673, %v833
        %v1176 = vsel %vm1163, %v675, %v835
        %v1177 = vsel %vm1163, %v677, %v837
        %v1178 = vsel %vm1163, %v679, %v839
        %v1179 = vsel %vm1163, %v681, %v841
        %v1180 = vsel %vm1163, %v683, %v843
        %v1181 = vsel %vm1163, %v685, %v845
        %v1182 = vsel %vm1163, %v687, %v847
        %v1183 = vsel %vm1163, %v689, %v849
        %v1184 = vsel %vm1163, %v691, %v851
        %v1185 = vsel %vm1163, %v693, %v853
        %v1186 = vsel %vm1163, %v695, %v855
        %v1187 = vsel %vm1163, %v697, %v857
        %v1188 = vsel %vm1163, %v699, %v859
        %v1189 = vsel %vm1163, %v701, %v861
        %v1190 = vsel %vm1163, %v703, %v863
        %v1191 = vsel %vm1163, %v705, %v865
        %v1192 = vsel %vm1163, %v707, %v867
        %v1193 = vsel %vm1163, %v709, %v869
        %v1194 = vsel %vm1163, %v711, %v871
        %v1195 = vsel %vm1163, %v713, %v873
        %vm1196 = vcmask 261120
        %v1197 = vsel %vm1196, %v811, %v971
        %v1198 = vsel %vm1196, %v813, %v973
        %v1199 = vsel %vm1196, %v815, %v975
        %v1200 = vsel %vm1196, %v817, %v977
        %v1201 = vsel %vm1196, %v819, %v979
        %v1202 = vsel %vm1196, %v821, %v981
        %v1203 = vsel %vm1196, %v823, %v983
        %v1204 = vsel %vm1196, %v825, %v985
        %v1205 = vsel %vm1196, %v827, %v987
        %v1206 = vsel %vm1196, %v829, %v989
        %v1207 = vsel %vm1196, %v831, %v991
        %v1208 = vsel %vm1196, %v833, %v993
        %v1209 = vsel %vm1196, %v835, %v995
        %v1210 = vsel %vm1196, %v837, %v997
        %v1211 = vsel %vm1196, %v839, %v999
        %v1212 = vsel %vm1196, %v841, %v1001
        %v1213 = vsel %vm1196, %v843, %v1003
        %v1214 = vsel %vm1196, %v845, %v1005
        %v1215 = vsel %vm1196, %v847, %v1007
        %v1216 = vsel %vm1196, %v849, %v1009
        %v1217 = vsel %vm1196, %v851, %v1011
        %v1218 = vsel %vm1196, %v853, %v1013
        %v1219 = vsel %vm1196, %v855, %v1015
        %v1220 = vsel %vm1196, %v857, %v1017
        %v1221 = vsel %vm1196, %v859, %v1019
        %v1222 = vsel %vm1196, %v861, %v1021
        %v1223 = vsel %vm1196, %v863, %v1023
        %v1224 = vsel %vm1196, %v865, %v1025
        %v1225 = vsel %vm1196, %v867, %v1027
        %v1226 = vsel %vm1196, %v869, %v1029
        %v1227 = vsel %vm1196, %v871, %v1031
        %v1228 = vsel %vm1196, %v873, %v1033
        %v1229 = vld [vmem:[%s1] sm:$0xff]
        %v1230 = vld [vmem:[%s1 + $0x8] sm:$0xff]
        %v1231 = vld [vmem:[%s1 + $0x10] sm:$0xff]
        %v1232 = vld [vmem:[%s1 + $0x18] sm:$0xff]
        %v1233 = vld [vmem:[%s1 + $0x20] sm:$0xff]
        %v1234 = vld [vmem:[%s1 + $0x28] sm:$0xff]
        %v1235 = vld [vmem:[%s1 + $0x30] sm:$0xff]
        %v1236 = vld [vmem:[%s1 + $0x38] sm:$0xff]
        %v1237 = vld [vmem:[%s1 + $0x40] sm:$0xff]
        %v1238 = vld [vmem:[%s1 + $0x48] sm:$0xff]
        %v1239 = vld [vmem:[%s1 + $0x50] sm:$0xff]
        %v1240 = vld [vmem:[%s1 + $0x58] sm:$0xff]
        %v1241 = vld [vmem:[%s1 + $0x60] sm:$0xff]
        %v1242 = vld [vmem:[%s1 + $0x68] sm:$0xff]
        %v1243 = vld [vmem:[%s1 + $0x70] sm:$0xff]
        %v1244 = vld [vmem:[%s1 + $0x78] sm:$0xff]
        %v1245 = vld [vmem:[%s1 + $0x80] sm:$0xff]
        %v1246 = vld [vmem:[%s1 + $0x88] sm:$0xff]
        %v1247 = vld [vmem:[%s1 + $0x90] sm:$0xff]
        %v1248 = vld [vmem:[%s1 + $0x98] sm:$0xff]
        %v1249 = vld [vmem:[%s1 + $0xa0] sm:$0xff]
        %v1250 = vld [vmem:[%s1 + $0xa8] sm:$0xff]
        %v1251 = vld [vmem:[%s1 + $0xb0] sm:$0xff]
        %v1252 = vld [vmem:[%s1 + $0xb8] sm:$0xff]
        %v1253 = vld [vmem:[%s1 + $0xc0] sm:$0xff]
        %v1254 = vld [vmem:[%s1 + $0xc8] sm:$0xff]
        %v1255 = vld [vmem:[%s1 + $0xd0] sm:$0xff]
        %v1256 = vld [vmem:[%s1 + $0xd8] sm:$0xff]
        %v1257 = vld [vmem:[%s1 + $0xe0] sm:$0xff]
        %v1258 = vld [vmem:[%s1 + $0xe8] sm:$0xff]
        %v1259 = vld [vmem:[%s1 + $0xf0] sm:$0xff]
        %v1260 = vld [vmem:[%s1 + $0xf8] sm:$0xff]
        %v1261 = vld [vmem:[%s1 + $0x100] sm:$0xff]
        %v1262 = vld [vmem:[%s1 + $0x108] sm:$0xff]
        %v1263 = vld [vmem:[%s1 + $0x110] sm:$0xff]
        %v1264 = vld [vmem:[%s1 + $0x118] sm:$0xff]
        %v1265 = vld [vmem:[%s1 + $0x120] sm:$0xff]
        %v1266 = vld [vmem:[%s1 + $0x128] sm:$0xff]
        %v1267 = vld [vmem:[%s1 + $0x130] sm:$0xff]
        %v1268 = vld [vmem:[%s1 + $0x138] sm:$0xff]
        %v1269 = vld [vmem:[%s1 + $0x140] sm:$0xff]
        %v1270 = vld [vmem:[%s1 + $0x148] sm:$0xff]
        %v1271 = vld [vmem:[%s1 + $0x150] sm:$0xff]
        %v1272 = vld [vmem:[%s1 + $0x158] sm:$0xff]
        %v1273 = vld [vmem:[%s1 + $0x160] sm:$0xff]
        %v1274 = vld [vmem:[%s1 + $0x168] sm:$0xff]
        %v1275 = vld [vmem:[%s1 + $0x170] sm:$0xff]
        %v1276 = vld [vmem:[%s1 + $0x178] sm:$0xff]
        %v1277 = vld [vmem:[%s1 + $0x180] sm:$0xff]
        %v1278 = vld [vmem:[%s1 + $0x188] sm:$0xff]
        %v1279 = vld [vmem:[%s1 + $0x190] sm:$0xff]
        %v1280 = vld [vmem:[%s1 + $0x198] sm:$0xff]
        %v1281 = vld [vmem:[%s1 + $0x1a0] sm:$0xff]
        %v1282 = vld [vmem:[%s1 + $0x1a8] sm:$0xff]
        %v1283 = vld [vmem:[%s1 + $0x1b0] sm:$0xff]
        %v1284 = vld [vmem:[%s1 + $0x1b8] sm:$0xff]
        %v1285 = vld [vmem:[%s1 + $0x1c0] sm:$0xff]
        %v1286 = vld [vmem:[%s1 + $0x1c8] sm:$0xff]
        %v1287 = vld [vmem:[%s1 + $0x1d0] sm:$0xff]
        %v1288 = vld [vmem:[%s1 + $0x1d8] sm:$0xff]
        %v1289 = vld [vmem:[%s1 + $0x1e0] sm:$0xff]
        %v1290 = vld [vmem:[%s1 + $0x1e8] sm:$0xff]
        %v1291 = vld [vmem:[%s1 + $0x1f0] sm:$0xff]
        %v1292 = vld [vmem:[%s1 + $0x1f8] sm:$0xff]
        %v1293 = vld [vmem:[%s1 + $0x200] sm:$0xff]
        %v1294 = vld [vmem:[%s1 + $0x208] sm:$0xff]
        %v1295 = vld [vmem:[%s1 + $0x210] sm:$0xff]
        %v1296 = vld [vmem:[%s1 + $0x218] sm:$0xff]
        %v1297 = vld [vmem:[%s1 + $0x220] sm:$0xff]
        %v1298 = vld [vmem:[%s1 + $0x228] sm:$0xff]
        %v1299 = vld [vmem:[%s1 + $0x230] sm:$0xff]
        %v1300 = vld [vmem:[%s1 + $0x238] sm:$0xff]
        %v1301 = vld [vmem:[%s1 + $0x240] sm:$0xff]
        %v1302 = vld [vmem:[%s1 + $0x248] sm:$0xff]
        %v1303 = vld [vmem:[%s1 + $0x250] sm:$0xff]
        %v1304 = vld [vmem:[%s1 + $0x258] sm:$0xff]
        %v1305 = vld [vmem:[%s1 + $0x260] sm:$0xff]
        %v1306 = vld [vmem:[%s1 + $0x268] sm:$0xff]
        %v1307 = vld [vmem:[%s1 + $0x270] sm:$0xff]
        %v1308 = vld [vmem:[%s1 + $0x278] sm:$0xff]
        %v1309 = vld [vmem:[%s1 + $0x280] sm:$0xff]
        %v1310 = vld [vmem:[%s1 + $0x288] sm:$0xff]
        %v1311 = vld [vmem:[%s1 + $0x290] sm:$0xff]
        %v1312 = vld [vmem:[%s1 + $0x298] sm:$0xff]
        %v1313 = vld [vmem:[%s1 + $0x2a0] sm:$0xff]
        %v1314 = vld [vmem:[%s1 + $0x2a8] sm:$0xff]
        %v1315 = vld [vmem:[%s1 + $0x2b0] sm:$0xff]
        %v1316 = vld [vmem:[%s1 + $0x2b8] sm:$0xff]
        %v1317 = vld [vmem:[%s1 + $0x2c0] sm:$0xff]
        %v1318 = vld [vmem:[%s1 + $0x2c8] sm:$0xff]
        %v1319 = vld [vmem:[%s1 + $0x2d0] sm:$0xff]
        %v1320 = vld [vmem:[%s1 + $0x2d8] sm:$0xff]
        %v1321 = vld [vmem:[%s1 + $0x2e0] sm:$0xff]
        %v1322 = vld [vmem:[%s1 + $0x2e8] sm:$0xff]
        %v1323 = vld [vmem:[%s1 + $0x2f0] sm:$0xff]
        %v1324 = vld [vmem:[%s1 + $0x2f8] sm:$0xff]
        %v1325 = vld [vmem:[%s1 + $0x300] sm:$0xff]
        %v1326 = vld [vmem:[%s1 + $0x308] sm:$0xff]
        %v1327 = vld [vmem:[%s1 + $0x310] sm:$0xff]
        %v1328 = vld [vmem:[%s1 + $0x318] sm:$0xff]
        %v1329 = vld [vmem:[%s1 + $0x320] sm:$0xff]
        %v1330 = vld [vmem:[%s1 + $0x328] sm:$0xff]
        %v1331 = vld [vmem:[%s1 + $0x330] sm:$0xff]
        %v1332 = vld [vmem:[%s1 + $0x338] sm:$0xff]
        %v1333 = vld [vmem:[%s1 + $0x340] sm:$0xff]
        %v1334 = vld [vmem:[%s1 + $0x348] sm:$0xff]
        %v1335 = vld [vmem:[%s1 + $0x350] sm:$0xff]
        %v1336 = vld [vmem:[%s1 + $0x358] sm:$0xff]
        %v1337 = vld [vmem:[%s1 + $0x360] sm:$0xff]
        %v1338 = vld [vmem:[%s1 + $0x368] sm:$0xff]
        %v1339 = vld [vmem:[%s1 + $0x370] sm:$0xff]
        %v1340 = vld [vmem:[%s1 + $0x378] sm:$0xff]
        %v1341 = vld [vmem:[%s1 + $0x380] sm:$0xff]
        %v1342 = vld [vmem:[%s1 + $0x388] sm:$0xff]
        %v1343 = vld [vmem:[%s1 + $0x390] sm:$0xff]
        %v1344 = vld [vmem:[%s1 + $0x398] sm:$0xff]
        %v1345 = vld [vmem:[%s1 + $0x3a0] sm:$0xff]
        %v1346 = vld [vmem:[%s1 + $0x3a8] sm:$0xff]
        %v1347 = vld [vmem:[%s1 + $0x3b0] sm:$0xff]
        %v1348 = vld [vmem:[%s1 + $0x3b8] sm:$0xff]
        %v1349 = vld [vmem:[%s2] sm:$0x3]
        %v1351 = vlaneseq
        %v1352 = vshrl.u32 %v1351, 7
        %v1353 = vsub.s32 0, %v1352
        %v1354 = vrot.slane %v1349, %v1353
        %v1355 = vlaneseq
        %v1356 = vshrl.u32 %v1355, 7
        %v1357 = vsub.s32 1, %v1356
        %v1358 = vrot.slane %v1349, %v1357
        %v1361 = vsel %vm1130, %v1069, 0
        %v1363 = vsel %vm1130, %v1071, 0
        %v1365 = vsel %vm1130, %v1073, 0
        %v1367 = vsel %vm1130, %v1075, 0
        %v1369 = vsel %vm1130, %v1077, 0
        %v1371 = vsel %vm1130, %v1079, 0
        %v1373 = vsel %vm1130, %v1081, 0
        %v1375 = vsel %vm1130, %v1083, 0
        %v1377 = vsel %vm1130, %v1085, 0
        %v1379 = vsel %vm1130, %v1087, 0
        %v1381 = vsel %vm1130, %v1089, 0
        %v1383 = vsel %vm1130, %v1091, 0
        %v1385 = vsel %vm1130, %v1093, 0
        %v1387 = vsel %vm1130, %v1095, 0
        %v1389 = vsel %vm1130, %v1097, 0
        %v1391 = vsel %vm1130, %v1099, 0
        %v1393 = vsel %vm1130, %v1101, 0
        %v1395 = vsel %vm1130, %v1103, 0
        %v1397 = vsel %vm1130, %v1105, 0
        %v1399 = vsel %vm1130, %v1107, 0
        %v1401 = vsel %vm1130, %v1109, 0
        %v1403 = vsel %vm1130, %v1111, 0
        %v1405 = vsel %vm1130, %v1113, 0
        %v1407 = vsel %vm1130, %v1115, 0
        %v1409 = vsel %vm1130, %v1117, 0
        %v1411 = vsel %vm1130, %v1119, 0
        %v1413 = vsel %vm1130, %v1121, 0
        %v1415 = vsel %vm1130, %v1123, 0
        %v1417 = vsel %vm1130, %v1125, 0
        %v1419 = vsel %vm1130, %v1127, 0
        %v1421 = vsel %vm1130, %v1129, 0
        %v1423 = vsel %vm1130, %v1128, 0
        %1425 = vmatprep.subr.mxu0 %v1230
        %1426 = vmatpush1.msra.mxu0 %v1229
        %1427 = vmatprep.subr.mxu0 %v1232
        %1428 = vmatpush1.msra.mxu0 %v1231
        %1429 = vmatprep.subr.mxu0 %v1234
        %1430 = vmatpush1.msra.mxu0 %v1233
        %1431 = vmatprep.subr.mxu0 %v1236
        %1432 = vmatpush1.msra.mxu0 %v1235
        %1433 = vmatprep.subr.mxu0 %v1238
        %1434 = vmatpush1.msra.mxu0 %v1237
        %1435 = vmatprep.subr.mxu0 %v1240
        %1436 = vmatpush1.msra.mxu0 %v1239
        %1437 = vmatprep.subr.mxu0 %v1242
        %1438 = vmatpush1.msra.mxu0 %v1241
        %1439 = vmatprep.subr.mxu0 %v1244
        %1440 = vmatpush1.msra.mxu0 %v1243
        %1441 = vmatprep.subr.mxu0 %v1246
        %1442 = vmatpush1.msra.mxu0 %v1245
        %1443 = vmatprep.subr.mxu0 %v1248
        %1444 = vmatpush1.msra.mxu0 %v1247
        %1445 = vmatprep.subr.mxu0 %v1250
        %1446 = vmatpush1.msra.mxu0 %v1249
        %1447 = vmatprep.subr.mxu0 %v1252
        %1448 = vmatpush1.msra.mxu0 %v1251
        %1449 = vmatprep.subr.mxu0 %v1254
        %1450 = vmatpush1.msra.mxu0 %v1253
        %1451 = vmatprep.subr.mxu0 %v1256
        %1452 = vmatpush1.msra.mxu0 %v1255
        %1453 = vmatprep.subr.mxu0 %v1258
        %1454 = vmatpush1.msra.mxu0 %v1257
        %1455 = vmatprep.subr.mxu0 %v1260
        %1456 = vmatpush1.msra.mxu0 %v1259
        %1457 = vmatprep.subr.mxu0 %v1262
        %1458 = vmatpush1.msra.mxu0 %v1261
        %1459 = vmatprep.subr.mxu0 %v1264
        %1460 = vmatpush1.msra.mxu0 %v1263
        %1461 = vmatprep.subr.mxu0 %v1266
        %1462 = vmatpush1.msra.mxu0 %v1265
        %1463 = vmatprep.subr.mxu0 %v1268
        %1464 = vmatpush1.msra.mxu0 %v1267
        %1465 = vmatprep.subr.mxu0 %v1270
        %1466 = vmatpush1.msra.mxu0 %v1269
        %1467 = vmatprep.subr.mxu0 %v1272
        %1468 = vmatpush1.msra.mxu0 %v1271
        %1469 = vmatprep.subr.mxu0 %v1274
        %1470 = vmatpush1.msra.mxu0 %v1273
        %1471 = vmatprep.subr.mxu0 %v1276
        %1472 = vmatpush1.msra.mxu0 %v1275
        %1473 = vmatprep.subr.mxu0 %v1278
        %1474 = vmatpush1.msra.mxu0 %v1277
        %1475 = vmatprep.subr.mxu0 %v1280
        %1476 = vmatpush1.msra.mxu0 %v1279
        %1477 = vmatprep.subr.mxu0 %v1282
        %1478 = vmatpush1.msra.mxu0 %v1281
        %1479 = vmatprep.subr.mxu0 %v1284
        %1480 = vmatpush1.msra.mxu0 %v1283
        %1481 = vmatprep.subr.mxu0 %v1286
        %1482 = vmatpush1.msra.mxu0 %v1285
        %1483 = vmatprep.subr.mxu0 %v1288
        %1484 = vmatpush1.msra.mxu0 %v1287
        %1485 = vmatprep.subr.mxu0 %v1290
        %1486 = vmatpush1.msra.mxu0 %v1289
        %1487 = vmatprep.subr.mxu0 %v1292
        %1488 = vmatpush1.msra.mxu0 %v1291
        %1489 = vmatprep.mubr.f32.mxu0 %v1164
        %1490 = vmatmul.mubr.f32.gmra.mrb[0].mxu0 %v1131
        %v1491 = vpop.f32.mrb[0].mxu0
        %v1492 = vadd.f32 %v1354, %v1491
        %v1493 = vpop.f32.mrb[0].mxu0
        %v1494 = vadd.f32 %v1358, %v1493
        %1495 = vmatprep.mubr.f32.mxu0 %v1165
        %1496 = vmatmul.mubr.f32.gmra.mrb[0].mxu0 %v1132
        %v1497 = vpop.f32.mrb[0].mxu0
        %v1498 = vadd.f32 %v1354, %v1497
        %v1499 = vpop.f32.mrb[0].mxu0
        %v1500 = vadd.f32 %v1358, %v1499
        %1501 = vmatprep.mubr.f32.mxu0 %v1166
        %1502 = vmatmul.mubr.f32.gmra.mrb[0].mxu0 %v1133
        %v1503 = vpop.f32.mrb[0].mxu0
        %v1504 = vadd.f32 %v1354, %v1503
        %v1505 = vpop.f32.mrb[0].mxu0
        %v1506 = vadd.f32 %v1358, %v1505
        %1507 = vmatprep.mubr.f32.mxu0 %v1167
        %1508 = vmatmul.mubr.f32.gmra.mrb[0].mxu0 %v1134
        %v1509 = vpop.f32.mrb[0].mxu0
        %v1510 = vadd.f32 %v1354, %v1509
        %v1511 = vpop.f32.mrb[0].mxu0
        %v1512 = vadd.f32 %v1358, %v1511
        %1513 = vmatprep.mubr.f32.mxu0 %v1168
        %1514 = vmatmul.mubr.f32.gmra.mrb[0].mxu0 %v1135
        %v1515 = vpop.f32.mrb[0].mxu0
        %v1516 = vadd.f32 %v1354, %v1515
        %v1517 = vpop.f32.mrb[0].mxu0
        %v1518 = vadd.f32 %v1358, %v1517
        %1519 = vmatprep.mubr.f32.mxu0 %v1169
        %1520 = vmatmul.mubr.f32.gmra.mrb[0].mxu0 %v1136
        %v1521 = vpop.f32.mrb[0].mxu0
        %v1522 = vadd.f32 %v1354, %v1521
        %v1523 = vpop.f32.mrb[0].mxu0
        %v1524 = vadd.f32 %v1358, %v1523
        %1525 = vmatprep.mubr.f32.mxu0 %v1170
        %1526 = vmatmul.mubr.f32.gmra.mrb[0].mxu0 %v1137
        %v1527 = vpop.f32.mrb[0].mxu0
        %v1528 = vadd.f32 %v1354, %v1527
        %v1529 = vpop.f32.mrb[0].mxu0
        %v1530 = vadd.f32 %v1358, %v1529
        %1531 = vmatprep.mubr.f32.mxu0 %v1171
        %1532 = vmatmul.mubr.f32.gmra.mrb[0].mxu0 %v1138
        %v1533 = vpop.f32.mrb[0].mxu0
        %v1534 = vadd.f32 %v1354, %v1533
        %v1535 = vpop.f32.mrb[0].mxu0
        %v1536 = vadd.f32 %v1358, %v1535
        %1537 = vmatprep.mubr.f32.mxu0 %v1172
        %1538 = vmatmul.mubr.f32.gmra.mrb[0].mxu0 %v1139
        %v1539 = vpop.f32.mrb[0].mxu0
        %v1540 = vadd.f32 %v1354, %v1539
        %v1541 = vpop.f32.mrb[0].mxu0
        %v1542 = vadd.f32 %v1358, %v1541
        %1543 = vmatprep.mubr.f32.mxu0 %v1173
        %1544 = vmatmul.mubr.f32.gmra.mrb[0].mxu0 %v1140
        %v1545 = vpop.f32.mrb[0].mxu0
        %v1546 = vadd.f32 %v1354, %v1545
        %v1547 = vpop.f32.mrb[0].mxu0
        %v1548 = vadd.f32 %v1358, %v1547
        %1549 = vmatprep.mubr.f32.mxu0 %v1174
        %1550 = vmatmul.mubr.f32.gmra.mrb[0].mxu0 %v1141
        %v1551 = vpop.f32.mrb[0].mxu0
        %v1552 = vadd.f32 %v1354, %v1551
        %v1553 = vpop.f32.mrb[0].mxu0
        %v1554 = vadd.f32 %v1358, %v1553
        %1555 = vmatprep.mubr.f32.mxu0 %v1175
        %1556 = vmatmul.mubr.f32.gmra.mrb[0].mxu0 %v1142
        %v1557 = vpop.f32.mrb[0].mxu0
        %v1558 = vadd.f32 %v1354, %v1557
        %v1559 = vpop.f32.mrb[0].mxu0
        %v1560 = vadd.f32 %v1358, %v1559
        %1561 = vmatprep.mubr.f32.mxu0 %v1176
        %1562 = vmatmul.mubr.f32.gmra.mrb[0].mxu0 %v1143
        %v1563 = vpop.f32.mrb[0].mxu0
        %v1564 = vadd.f32 %v1354, %v1563
        %v1565 = vpop.f32.mrb[0].mxu0
        %v1566 = vadd.f32 %v1358, %v1565
        %1567 = vmatprep.mubr.f32.mxu0 %v1177
        %1568 = vmatmul.mubr.f32.gmra.mrb[0].mxu0 %v1144
        %v1569 = vpop.f32.mrb[0].mxu0
        %v1570 = vadd.f32 %v1354, %v1569
        %v1571 = vpop.f32.mrb[0].mxu0
        %v1572 = vadd.f32 %v1358, %v1571
        %1573 = vmatprep.mubr.f32.mxu0 %v1178
        %1574 = vmatmul.mubr.f32.gmra.mrb[0].mxu0 %v1145
        %v1575 = vpop.f32.mrb[0].mxu0
        %v1576 = vadd.f32 %v1354, %v1575
        %v1577 = vpop.f32.mrb[0].mxu0
        %v1578 = vadd.f32 %v1358, %v1577
        %1579 = vmatprep.mubr.f32.mxu0 %v1179
        %1580 = vmatmul.mubr.f32.gmra.mrb[0].mxu0 %v1146
        %v1581 = vpop.f32.mrb[0].mxu0
        %v1582 = vadd.f32 %v1354, %v1581
        %v1583 = vpop.f32.mrb[0].mxu0
        %v1584 = vadd.f32 %v1358, %v1583
        %1585 = vmatprep.mubr.f32.mxu0 %v1180
        %1586 = vmatmul.mubr.f32.gmra.mrb[0].mxu0 %v1147
        %v1587 = vpop.f32.mrb[0].mxu0
        %v1588 = vadd.f32 %v1354, %v1587
        %v1589 = vpop.f32.mrb[0].mxu0
        %v1590 = vadd.f32 %v1358, %v1589
        %1591 = vmatprep.mubr.f32.mxu0 %v1181
        %1592 = vmatmul.mubr.f32.gmra.mrb[0].mxu0 %v1148
        %v1593 = vpop.f32.mrb[0].mxu0
        %v1594 = vadd.f32 %v1354, %v1593
        %v1595 = vpop.f32.mrb[0].mxu0
        %v1596 = vadd.f32 %v1358, %v1595
        %1597 = vmatprep.mubr.f32.mxu0 %v1182
        %1598 = vmatmul.mubr.f32.gmra.mrb[0].mxu0 %v1149
        %v1599 = vpop.f32.mrb[0].mxu0
        %v1600 = vadd.f32 %v1354, %v1599
        %v1601 = vpop.f32.mrb[0].mxu0
        %v1602 = vadd.f32 %v1358, %v1601
        %1603 = vmatprep.mubr.f32.mxu0 %v1183
        %1604 = vmatmul.mubr.f32.gmra.mrb[0].mxu0 %v1150
        %v1605 = vpop.f32.mrb[0].mxu0
        %v1606 = vadd.f32 %v1354, %v1605
        %v1607 = vpop.f32.mrb[0].mxu0
        %v1608 = vadd.f32 %v1358, %v1607
        %1609 = vmatprep.mubr.f32.mxu0 %v1184
        %1610 = vmatmul.mubr.f32.gmra.mrb[0].mxu0 %v1151
        %v1611 = vpop.f32.mrb[0].mxu0
        %v1612 = vadd.f32 %v1354, %v1611
        %v1613 = vpop.f32.mrb[0].mxu0
        %v1614 = vadd.f32 %v1358, %v1613
        %1615 = vmatprep.mubr.f32.mxu0 %v1185
        %1616 = vmatmul.mubr.f32.gmra.mrb[0].mxu0 %v1152
        %v1617 = vpop.f32.mrb[0].mxu0
        %v1618 = vadd.f32 %v1354, %v1617
        %v1619 = vpop.f32.mrb[0].mxu0
        %v1620 = vadd.f32 %v1358, %v1619
        %1621 = vmatprep.mubr.f32.mxu0 %v1186
        %1622 = vmatmul.mubr.f32.gmra.mrb[0].mxu0 %v1153
        %v1623 = vpop.f32.mrb[0].mxu0
        %v1624 = vadd.f32 %v1354, %v1623
        %v1625 = vpop.f32.mrb[0].mxu0
        %v1626 = vadd.f32 %v1358, %v1625
        %1627 = vmatprep.mubr.f32.mxu0 %v1187
        %1628 = vmatmul.mubr.f32.gmra.mrb[0].mxu0 %v1154
        %v1629 = vpop.f32.mrb[0].mxu0
        %v1630 = vadd.f32 %v1354, %v1629
        %v1631 = vpop.f32.mrb[0].mxu0
        %v1632 = vadd.f32 %v1358, %v1631
        %1633 = vmatprep.mubr.f32.mxu0 %v1188
        %1634 = vmatmul.mubr.f32.gmra.mrb[0].mxu0 %v1155
        %v1635 = vpop.f32.mrb[0].mxu0
        %v1636 = vadd.f32 %v1354, %v1635
        %v1637 = vpop.f32.mrb[0].mxu0
        %v1638 = vadd.f32 %v1358, %v1637
        %1639 = vmatprep.mubr.f32.mxu0 %v1189
        %1640 = vmatmul.mubr.f32.gmra.mrb[0].mxu0 %v1156
        %v1641 = vpop.f32.mrb[0].mxu0
        %v1642 = vadd.f32 %v1354, %v1641
        %v1643 = vpop.f32.mrb[0].mxu0
        %v1644 = vadd.f32 %v1358, %v1643
        %1645 = vmatprep.mubr.f32.mxu0 %v1190
        %1646 = vmatmul.mubr.f32.gmra.mrb[0].mxu0 %v1157
        %v1647 = vpop.f32.mrb[0].mxu0
        %v1648 = vadd.f32 %v1354, %v1647
        %v1649 = vpop.f32.mrb[0].mxu0
        %v1650 = vadd.f32 %v1358, %v1649
        %1651 = vmatprep.mubr.f32.mxu0 %v1191
        %1652 = vmatmul.mubr.f32.gmra.mrb[0].mxu0 %v1158
        %v1653 = vpop.f32.mrb[0].mxu0
        %v1654 = vadd.f32 %v1354, %v1653
        %v1655 = vpop.f32.mrb[0].mxu0
        %v1656 = vadd.f32 %v1358, %v1655
        %1657 = vmatprep.mubr.f32.mxu0 %v1192
        %1658 = vmatmul.mubr.f32.gmra.mrb[0].mxu0 %v1159
        %v1659 = vpop.f32.mrb[0].mxu0
        %v1660 = vadd.f32 %v1354, %v1659
        %v1661 = vpop.f32.mrb[0].mxu0
        %v1662 = vadd.f32 %v1358, %v1661
        %1663 = vmatprep.mubr.f32.mxu0 %v1193
        %1664 = vmatmul.mubr.f32.gmra.mrb[0].mxu0 %v1160
        %v1665 = vpop.f32.mrb[0].mxu0
        %v1666 = vadd.f32 %v1354, %v1665
        %v1667 = vpop.f32.mrb[0].mxu0
        %v1668 = vadd.f32 %v1358, %v1667
        %1669 = vmatprep.mubr.f32.mxu0 %v1194
        %1670 = vmatmul.mubr.f32.gmra.mrb[0].mxu0 %v1161
        %v1671 = vpop.f32.mrb[0].mxu0
        %v1672 = vadd.f32 %v1354, %v1671
        %v1673 = vpop.f32.mrb[0].mxu0
        %v1674 = vadd.f32 %v1358, %v1673
        %1675 = vmatprep.mubr.f32.mxu0 %v1195
        %1676 = vmatmul.mubr.f32.gmra.mrb[0].mxu0 %v1162
        %v1677 = vpop.f32.mrb[0].mxu0
        %v1678 = vadd.f32 %v1354, %v1677
        %v1679 = vpop.f32.mrb[0].mxu0
        %v1680 = vadd.f32 %v1358, %v1679
        %1681 = vdwg.mxu0
        %1682 = vmatprep.subr.mxu0 %v1294
        %1683 = vmatpush1.msra.mxu0 %v1293
        %1684 = vmatprep.subr.mxu0 %v1296
        %1685 = vmatpush1.msra.mxu0 %v1295
        %1686 = vmatprep.subr.mxu0 %v1298
        %1687 = vmatpush1.msra.mxu0 %v1297
        %1688 = vmatprep.subr.mxu0 %v1300
        %1689 = vmatpush1.msra.mxu0 %v1299
        %1690 = vmatprep.subr.mxu0 %v1302
        %1691 = vmatpush1.msra.mxu0 %v1301
        %1692 = vmatprep.subr.mxu0 %v1304
        %1693 = vmatpush1.msra.mxu0 %v1303
        %1694 = vmatprep.subr.mxu0 %v1306
        %1695 = vmatpush1.msra.mxu0 %v1305
        %1696 = vmatprep.subr.mxu0 %v1308
        %1697 = vmatpush1.msra.mxu0 %v1307
        %1698 = vmatprep.subr.mxu0 %v1310
        %1699 = vmatpush1.msra.mxu0 %v1309
        %1700 = vmatprep.subr.mxu0 %v1312
        %1701 = vmatpush1.msra.mxu0 %v1311
        %1702 = vmatprep.subr.mxu0 %v1314
        %1703 = vmatpush1.msra.mxu0 %v1313
        %1704 = vmatprep.subr.mxu0 %v1316
        %1705 = vmatpush1.msra.mxu0 %v1315
        %1706 = vmatprep.subr.mxu0 %v1318
        %1707 = vmatpush1.msra.mxu0 %v1317
        %1708 = vmatprep.subr.mxu0 %v1320
        %1709 = vmatpush1.msra.mxu0 %v1319
        %1710 = vmatprep.subr.mxu0 %v1322
        %1711 = vmatpush1.msra.mxu0 %v1321
        %1712 = vmatprep.subr.mxu0 %v1324
        %1713 = vmatpush1.msra.mxu0 %v1323
        %1714 = vmatprep.subr.mxu0 %v1326
        %1715 = vmatpush1.msra.mxu0 %v1325
        %1716 = vmatprep.subr.mxu0 %v1328
        %1717 = vmatpush1.msra.mxu0 %v1327
        %1718 = vmatprep.subr.mxu0 %v1330
        %1719 = vmatpush1.msra.mxu0 %v1329
        %1720 = vmatprep.subr.mxu0 %v1332
        %1721 = vmatpush1.msra.mxu0 %v1331
        %1722 = vmatprep.subr.mxu0 %v1334
        %1723 = vmatpush1.msra.mxu0 %v1333
        %1724 = vmatprep.subr.mxu0 %v1336
        %1725 = vmatpush1.msra.mxu0 %v1335
        %1726 = vmatprep.subr.mxu0 %v1338
        %1727 = vmatpush1.msra.mxu0 %v1337
        %1728 = vmatprep.subr.mxu0 %v1340
        %1729 = vmatpush1.msra.mxu0 %v1339
        %1730 = vmatprep.subr.mxu0 %v1342
        %1731 = vmatpush1.msra.mxu0 %v1341
        %1732 = vmatprep.subr.mxu0 %v1344
        %1733 = vmatpush1.msra.mxu0 %v1343
        %1734 = vmatprep.subr.mxu0 %v1346
        %1735 = vmatpush1.msra.mxu0 %v1345
        %1736 = vmatprep.subr.mxu0 %v1348
        %1737 = vmatpush1.msra.mxu0 %v1347
        %1738 = vmatprep.subr.mxu0 0.0
        %1739 = vmatpush1.msra.mxu0 0.0
        %1740 = vmatprep.subr.mxu0 0.0
        %1741 = vmatpush1.msra.mxu0 0.0
        %1742 = vmatprep.subr.mxu0 0.0
        %1743 = vmatpush1.msra.mxu0 0.0
        %1744 = vmatprep.subr.mxu0 0.0
        %1745 = vmatpush1.msra.mxu0 0.0
        %1746 = vmatprep.mubr.f32.mxu0 %v1361
        %1747 = vmatmul.mubr.f32.gmra.mrb[0].mxu0 %v1197
        %v1748 = vpop.f32.mrb[0].mxu0
        %v1749 = vadd.f32 %v1492, %v1748
        %v1750 = vpop.f32.mrb[0].mxu0
        %v1751 = vadd.f32 %v1494, %v1750
        %1752 = vmatprep.mubr.f32.mxu0 %v1363
        %1753 = vmatmul.mubr.f32.gmra.mrb[0].mxu0 %v1198
        %v1754 = vpop.f32.mrb[0].mxu0
        %v1755 = vadd.f32 %v1498, %v1754
        %v1756 = vpop.f32.mrb[0].mxu0
        %v1757 = vadd.f32 %v1500, %v1756
        %1758 = vmatprep.mubr.f32.mxu0 %v1365
        %1759 = vmatmul.mubr.f32.gmra.mrb[0].mxu0 %v1199
        %v1760 = vpop.f32.mrb[0].mxu0
        %v1761 = vadd.f32 %v1504, %v1760
        %v1762 = vpop.f32.mrb[0].mxu0
        %v1763 = vadd.f32 %v1506, %v1762
        %1764 = vmatprep.mubr.f32.mxu0 %v1367
        %1765 = vmatmul.mubr.f32.gmra.mrb[0].mxu0 %v1200
        %v1766 = vpop.f32.mrb[0].mxu0
        %v1767 = vadd.f32 %v1510, %v1766
        %v1768 = vpop.f32.mrb[0].mxu0
        %v1769 = vadd.f32 %v1512, %v1768
        %1770 = vmatprep.mubr.f32.mxu0 %v1369
        %1771 = vmatmul.mubr.f32.gmra.mrb[0].mxu0 %v1201
        %v1772 = vpop.f32.mrb[0].mxu0
        %v1773 = vadd.f32 %v1516, %v1772
        %v1774 = vpop.f32.mrb[0].mxu0
        %v1775 = vadd.f32 %v1518, %v1774
        %1776 = vmatprep.mubr.f32.mxu0 %v1371
        %1777 = vmatmul.mubr.f32.gmra.mrb[0].mxu0 %v1202
        %v1778 = vpop.f32.mrb[0].mxu0
        %v1779 = vadd.f32 %v1522, %v1778
        %v1780 = vpop.f32.mrb[0].mxu0
        %v1781 = vadd.f32 %v1524, %v1780
        %1782 = vmatprep.mubr.f32.mxu0 %v1373
        %1783 = vmatmul.mubr.f32.gmra.mrb[0].mxu0 %v1203
        %v1784 = vpop.f32.mrb[0].mxu0
        %v1785 = vadd.f32 %v1528, %v1784
        %v1786 = vpop.f32.mrb[0].mxu0
        %v1787 = vadd.f32 %v1530, %v1786
        %1788 = vmatprep.mubr.f32.mxu0 %v1375
        %1789 = vmatmul.mubr.f32.gmra.mrb[0].mxu0 %v1204
        %v1790 = vpop.f32.mrb[0].mxu0
        %v1791 = vadd.f32 %v1534, %v1790
        %v1792 = vpop.f32.mrb[0].mxu0
        %v1793 = vadd.f32 %v1536, %v1792
        %1794 = vmatprep.mubr.f32.mxu0 %v1377
        %1795 = vmatmul.mubr.f32.gmra.mrb[0].mxu0 %v1205
        %v1796 = vpop.f32.mrb[0].mxu0
        %v1797 = vadd.f32 %v1540, %v1796
        %v1798 = vpop.f32.mrb[0].mxu0
        %v1799 = vadd.f32 %v1542, %v1798
        %1800 = vmatprep.mubr.f32.mxu0 %v1379
        %1801 = vmatmul.mubr.f32.gmra.mrb[0].mxu0 %v1206
        %v1802 = vpop.f32.mrb[0].mxu0
        %v1803 = vadd.f32 %v1546, %v1802
        %v1804 = vpop.f32.mrb[0].mxu0
        %v1805 = vadd.f32 %v1548, %v1804
        %1806 = vmatprep.mubr.f32.mxu0 %v1381
        %1807 = vmatmul.mubr.f32.gmra.mrb[0].mxu0 %v1207
        %v1808 = vpop.f32.mrb[0].mxu0
        %v1809 = vadd.f32 %v1552, %v1808
        %v1810 = vpop.f32.mrb[0].mxu0
        %v1811 = vadd.f32 %v1554, %v1810
        %1812 = vmatprep.mubr.f32.mxu0 %v1383
        %1813 = vmatmul.mubr.f32.gmra.mrb[0].mxu0 %v1208
        %v1814 = vpop.f32.mrb[0].mxu0
        %v1815 = vadd.f32 %v1558, %v1814
        %v1816 = vpop.f32.mrb[0].mxu0
        %v1817 = vadd.f32 %v1560, %v1816
        %1818 = vmatprep.mubr.f32.mxu0 %v1385
        %1819 = vmatmul.mubr.f32.gmra.mrb[0].mxu0 %v1209
        %v1820 = vpop.f32.mrb[0].mxu0
        %v1821 = vadd.f32 %v1564, %v1820
        %v1822 = vpop.f32.mrb[0].mxu0
        %v1823 = vadd.f32 %v1566, %v1822
        %1824 = vmatprep.mubr.f32.mxu0 %v1387
        %1825 = vmatmul.mubr.f32.gmra.mrb[0].mxu0 %v1210
        %v1826 = vpop.f32.mrb[0].mxu0
        %v1827 = vadd.f32 %v1570, %v1826
        %v1828 = vpop.f32.mrb[0].mxu0
        %v1829 = vadd.f32 %v1572, %v1828
        %1830 = vmatprep.mubr.f32.mxu0 %v1389
        %1831 = vmatmul.mubr.f32.gmra.mrb[0].mxu0 %v1211
        %v1832 = vpop.f32.mrb[0].mxu0
        %v1833 = vadd.f32 %v1576, %v1832
        %v1834 = vpop.f32.mrb[0].mxu0
        %v1835 = vadd.f32 %v1578, %v1834
        %1836 = vmatprep.mubr.f32.mxu0 %v1391
        %1837 = vmatmul.mubr.f32.gmra.mrb[0].mxu0 %v1212
        %v1838 = vpop.f32.mrb[0].mxu0
        %v1839 = vadd.f32 %v1582, %v1838
        %v1840 = vpop.f32.mrb[0].mxu0
        %v1841 = vadd.f32 %v1584, %v1840
        %1842 = vmatprep.mubr.f32.mxu0 %v1393
        %1843 = vmatmul.mubr.f32.gmra.mrb[0].mxu0 %v1213
        %v1844 = vpop.f32.mrb[0].mxu0
        %v1845 = vadd.f32 %v1588, %v1844
        %v1846 = vpop.f32.mrb[0].mxu0
        %v1847 = vadd.f32 %v1590, %v1846
        %1848 = vmatprep.mubr.f32.mxu0 %v1395
        %1849 = vmatmul.mubr.f32.gmra.mrb[0].mxu0 %v1214
        %v1850 = vpop.f32.mrb[0].mxu0
        %v1851 = vadd.f32 %v1594, %v1850
        %v1852 = vpop.f32.mrb[0].mxu0
        %v1853 = vadd.f32 %v1596, %v1852
        %1854 = vmatprep.mubr.f32.mxu0 %v1397
        %1855 = vmatmul.mubr.f32.gmra.mrb[0].mxu0 %v1215
        %v1856 = vpop.f32.mrb[0].mxu0
        %v1857 = vadd.f32 %v1600, %v1856
        %v1858 = vpop.f32.mrb[0].mxu0
        %v1859 = vadd.f32 %v1602, %v1858
        %1860 = vmatprep.mubr.f32.mxu0 %v1399
        %1861 = vmatmul.mubr.f32.gmra.mrb[0].mxu0 %v1216
        %v1862 = vpop.f32.mrb[0].mxu0
        %v1863 = vadd.f32 %v1606, %v1862
        %v1864 = vpop.f32.mrb[0].mxu0
        %v1865 = vadd.f32 %v1608, %v1864
        %1866 = vmatprep.mubr.f32.mxu0 %v1401
        %1867 = vmatmul.mubr.f32.gmra.mrb[0].mxu0 %v1217
        %v1868 = vpop.f32.mrb[0].mxu0
        %v1869 = vadd.f32 %v1612, %v1868
        %v1870 = vpop.f32.mrb[0].mxu0
        %v1871 = vadd.f32 %v1614, %v1870
        %1872 = vmatprep.mubr.f32.mxu0 %v1403
        %1873 = vmatmul.mubr.f32.gmra.mrb[0].mxu0 %v1218
        %v1874 = vpop.f32.mrb[0].mxu0
        %v1875 = vadd.f32 %v1618, %v1874
        %v1876 = vpop.f32.mrb[0].mxu0
        %v1877 = vadd.f32 %v1620, %v1876
        %1878 = vmatprep.mubr.f32.mxu0 %v1405
        %1879 = vmatmul.mubr.f32.gmra.mrb[0].mxu0 %v1219
        %v1880 = vpop.f32.mrb[0].mxu0
        %v1881 = vadd.f32 %v1624, %v1880
        %v1882 = vpop.f32.mrb[0].mxu0
        %v1883 = vadd.f32 %v1626, %v1882
        %1884 = vmatprep.mubr.f32.mxu0 %v1407
        %1885 = vmatmul.mubr.f32.gmra.mrb[0].mxu0 %v1220
        %v1886 = vpop.f32.mrb[0].mxu0
        %v1887 = vadd.f32 %v1630, %v1886
        %v1888 = vpop.f32.mrb[0].mxu0
        %v1889 = vadd.f32 %v1632, %v1888
        %1890 = vmatprep.mubr.f32.mxu0 %v1409
        %1891 = vmatmul.mubr.f32.gmra.mrb[0].mxu0 %v1221
        %v1892 = vpop.f32.mrb[0].mxu0
        %v1893 = vadd.f32 %v1636, %v1892
        %v1894 = vpop.f32.mrb[0].mxu0
        %v1895 = vadd.f32 %v1638, %v1894
        %1896 = vmatprep.mubr.f32.mxu0 %v1411
        %1897 = vmatmul.mubr.f32.gmra.mrb[0].mxu0 %v1222
        %v1898 = vpop.f32.mrb[0].mxu0
        %v1899 = vadd.f32 %v1642, %v1898
        %v1900 = vpop.f32.mrb[0].mxu0
        %v1901 = vadd.f32 %v1644, %v1900
        %1902 = vmatprep.mubr.f32.mxu0 %v1413
        %1903 = vmatmul.mubr.f32.gmra.mrb[0].mxu0 %v1223
        %v1904 = vpop.f32.mrb[0].mxu0
        %v1905 = vadd.f32 %v1648, %v1904
        %v1906 = vpop.f32.mrb[0].mxu0
        %v1907 = vadd.f32 %v1650, %v1906
        %1908 = vmatprep.mubr.f32.mxu0 %v1415
        %1909 = vmatmul.mubr.f32.gmra.mrb[0].mxu0 %v1224
        %v1910 = vpop.f32.mrb[0].mxu0
        %v1911 = vadd.f32 %v1654, %v1910
        %v1912 = vpop.f32.mrb[0].mxu0
        %v1913 = vadd.f32 %v1656, %v1912
        %1914 = vmatprep.mubr.f32.mxu0 %v1417
        %1915 = vmatmul.mubr.f32.gmra.mrb[0].mxu0 %v1225
        %v1916 = vpop.f32.mrb[0].mxu0
        %v1917 = vadd.f32 %v1660, %v1916
        %v1918 = vpop.f32.mrb[0].mxu0
        %v1919 = vadd.f32 %v1662, %v1918
        %1920 = vmatprep.mubr.f32.mxu0 %v1419
        %1921 = vmatmul.mubr.f32.gmra.mrb[0].mxu0 %v1226
        %v1922 = vpop.f32.mrb[0].mxu0
        %v1923 = vadd.f32 %v1666, %v1922
        %v1924 = vpop.f32.mrb[0].mxu0
        %v1925 = vadd.f32 %v1668, %v1924
        %1926 = vmatprep.mubr.f32.mxu0 %v1421
        %1927 = vmatmul.mubr.f32.gmra.mrb[0].mxu0 %v1227
        %v1928 = vpop.f32.mrb[0].mxu0
        %v1929 = vadd.f32 %v1672, %v1928
        %v1930 = vpop.f32.mrb[0].mxu0
        %v1931 = vadd.f32 %v1674, %v1930
        %1932 = vmatprep.mubr.f32.mxu0 %v1423
        %1933 = vmatmul.mubr.f32.gmra.mrb[0].mxu0 %v1228
        %v1934 = vpop.f32.mrb[0].mxu0
        %v1935 = vadd.f32 %v1678, %v1934
        %v1936 = vpop.f32.mrb[0].mxu0
        %v1937 = vadd.f32 %v1680, %v1936
        %1938 = vdwg.mxu0
        %v1939 = vmax.f32 %v1749, 0.0
        %v1940 = vmax.f32 %v1751, 0.0
        %v1941 = vmax.f32 %v1755, 0.0
        %v1942 = vmax.f32 %v1757, 0.0
        %v1943 = vmax.f32 %v1761, 0.0
        %v1944 = vmax.f32 %v1763, 0.0
        %v1945 = vmax.f32 %v1767, 0.0
        %v1946 = vmax.f32 %v1769, 0.0
        %v1947 = vmax.f32 %v1773, 0.0
        %v1948 = vmax.f32 %v1775, 0.0
        %v1949 = vmax.f32 %v1779, 0.0
        %v1950 = vmax.f32 %v1781, 0.0
        %v1951 = vmax.f32 %v1785, 0.0
        %v1952 = vmax.f32 %v1787, 0.0
        %v1953 = vmax.f32 %v1791, 0.0
        %v1954 = vmax.f32 %v1793, 0.0
        %v1955 = vmax.f32 %v1797, 0.0
        %v1956 = vmax.f32 %v1799, 0.0
        %v1957 = vmax.f32 %v1803, 0.0
        %v1958 = vmax.f32 %v1805, 0.0
        %v1959 = vmax.f32 %v1809, 0.0
        %v1960 = vmax.f32 %v1811, 0.0
        %v1961 = vmax.f32 %v1815, 0.0
        %v1962 = vmax.f32 %v1817, 0.0
        %v1963 = vmax.f32 %v1821, 0.0
        %v1964 = vmax.f32 %v1823, 0.0
        %v1965 = vmax.f32 %v1827, 0.0
        %v1966 = vmax.f32 %v1829, 0.0
        %v1967 = vmax.f32 %v1833, 0.0
        %v1968 = vmax.f32 %v1835, 0.0
        %v1969 = vmax.f32 %v1839, 0.0
        %v1970 = vmax.f32 %v1841, 0.0
        %v1971 = vmax.f32 %v1845, 0.0
        %v1972 = vmax.f32 %v1847, 0.0
        %v1973 = vmax.f32 %v1851, 0.0
        %v1974 = vmax.f32 %v1853, 0.0
        %v1975 = vmax.f32 %v1857, 0.0
        %v1976 = vmax.f32 %v1859, 0.0
        %v1977 = vmax.f32 %v1863, 0.0
        %v1978 = vmax.f32 %v1865, 0.0
        %v1979 = vmax.f32 %v1869, 0.0
        %v1980 = vmax.f32 %v1871, 0.0
        %v1981 = vmax.f32 %v1875, 0.0
        %v1982 = vmax.f32 %v1877, 0.0
        %v1983 = vmax.f32 %v1881, 0.0
        %v1984 = vmax.f32 %v1883, 0.0
        %v1985 = vmax.f32 %v1887, 0.0
        %v1986 = vmax.f32 %v1889, 0.0
        %v1987 = vmax.f32 %v1893, 0.0
        %v1988 = vmax.f32 %v1895, 0.0
        %v1989 = vmax.f32 %v1899, 0.0
        %v1990 = vmax.f32 %v1901, 0.0
        %v1991 = vmax.f32 %v1905, 0.0
        %v1992 = vmax.f32 %v1907, 0.0
        %v1993 = vmax.f32 %v1911, 0.0
        %v1994 = vmax.f32 %v1913, 0.0
        %v1995 = vmax.f32 %v1917, 0.0
        %v1996 = vmax.f32 %v1919, 0.0
        %v1997 = vmax.f32 %v1923, 0.0
        %v1998 = vmax.f32 %v1925, 0.0
        %v1999 = vmax.f32 %v1929, 0.0
        %v2000 = vmax.f32 %v1931, 0.0
        %v2001 = vmax.f32 %v1935, 0.0
        %v2002 = vmax.f32 %v1937, 0.0
        %v2067 = vrot.slane %v1939, 1
        %v2068 = vrot.slane %v1941, 1
        %v2069 = vsel %vm586, %v2067, %v2068
        %v2070 = vrot.slane %v1940, 1
        %v2071 = vrot.slane %v1942, 1
        %v2072 = vsel %vm586, %v2070, %v2071
        %v2073 = vrot.slane %v1943, 1
        %v2074 = vsel %vm586, %v2068, %v2073
        %v2075 = vrot.slane %v1944, 1
        %v2076 = vsel %vm586, %v2071, %v2075
        %v2077 = vrot.slane %v1945, 1
        %v2078 = vsel %vm586, %v2073, %v2077
        %v2079 = vrot.slane %v1946, 1
        %v2080 = vsel %vm586, %v2075, %v2079
        %v2081 = vrot.slane %v1947, 1
        %v2082 = vsel %vm586, %v2077, %v2081
        %v2083 = vrot.slane %v1948, 1
        %v2084 = vsel %vm586, %v2079, %v2083
        %v2085 = vrot.slane %v1949, 1
        %v2086 = vsel %vm586, %v2081, %v2085
        %v2087 = vrot.slane %v1950, 1
        %v2088 = vsel %vm586, %v2083, %v2087
        %v2089 = vrot.slane %v1951, 1
        %v2090 = vsel %vm586, %v2085, %v2089
        %v2091 = vrot.slane %v1952, 1
        %v2092 = vsel %vm586, %v2087, %v2091
        %v2093 = vrot.slane %v1953, 1
        %v2094 = vsel %vm586, %v2089, %v2093
        %v2095 = vrot.slane %v1954, 1
        %v2096 = vsel %vm586, %v2091, %v2095
        %v2097 = vrot.slane %v1955, 1
        %v2098 = vsel %vm586, %v2093, %v2097
        %v2099 = vrot.slane %v1956, 1
        %v2100 = vsel %vm586, %v2095, %v2099
        %v2101 = vrot.slane %v1957, 1
        %v2102 = vsel %vm586, %v2097, %v2101
        %v2103 = vrot.slane %v1958, 1
        %v2104 = vsel %vm586, %v2099, %v2103
        %v2105 = vrot.slane %v1959, 1
        %v2106 = vsel %vm586, %v2101, %v2105
        %v2107 = vrot.slane %v1960, 1
        %v2108 = vsel %vm586, %v2103, %v2107
        %v2109 = vrot.slane %v1961, 1
        %v2110 = vsel %vm586, %v2105, %v2109
        %v2111 = vrot.slane %v1962, 1
        %v2112 = vsel %vm586, %v2107, %v2111
        %v2113 = vrot.slane %v1963, 1
        %v2114 = vsel %vm586, %v2109, %v2113
        %v2115 = vrot.slane %v1964, 1
        %v2116 = vsel %vm586, %v2111, %v2115
        %v2117 = vrot.slane %v1965, 1
        %v2118 = vsel %vm586, %v2113, %v2117
        %v2119 = vrot.slane %v1966, 1
        %v2120 = vsel %vm586, %v2115, %v2119
        %v2121 = vrot.slane %v1967, 1
        %v2122 = vsel %vm586, %v2117, %v2121
        %v2123 = vrot.slane %v1968, 1
        %v2124 = vsel %vm586, %v2119, %v2123
        %v2125 = vrot.slane %v1969, 1
        %v2126 = vsel %vm586, %v2121, %v2125
        %v2127 = vrot.slane %v1970, 1
        %v2128 = vsel %vm586, %v2123, %v2127
        %v2129 = vrot.slane %v1971, 1
        %v2130 = vsel %vm586, %v2125, %v2129
        %v2131 = vrot.slane %v1972, 1
        %v2132 = vsel %vm586, %v2127, %v2131
        %v2133 = vrot.slane %v1973, 1
        %v2134 = vsel %vm586, %v2129, %v2133
        %v2135 = vrot.slane %v1974, 1
        %v2136 = vsel %vm586, %v2131, %v2135
        %v2137 = vrot.slane %v1975, 1
        %v2138 = vsel %vm586, %v2133, %v2137
        %v2139 = vrot.slane %v1976, 1
        %v2140 = vsel %vm586, %v2135, %v2139
        %v2141 = vrot.slane %v1977, 1
        %v2142 = vsel %vm586, %v2137, %v2141
        %v2143 = vrot.slane %v1978, 1
        %v2144 = vsel %vm586, %v2139, %v2143
        %v2145 = vrot.slane %v1979, 1
        %v2146 = vsel %vm586, %v2141, %v2145
        %v2147 = vrot.slane %v1980, 1
        %v2148 = vsel %vm586, %v2143, %v2147
        %v2149 = vrot.slane %v1981, 1
        %v2150 = vsel %vm586, %v2145, %v2149
        %v2151 = vrot.slane %v1982, 1
        %v2152 = vsel %vm586, %v2147, %v2151
        %v2153 = vrot.slane %v1983, 1
        %v2154 = vsel %vm586, %v2149, %v2153
        %v2155 = vrot.slane %v1984, 1
        %v2156 = vsel %vm586, %v2151, %v2155
        %v2157 = vrot.slane %v1985, 1
        %v2158 = vsel %vm586, %v2153, %v2157
        %v2159 = vrot.slane %v1986, 1
        %v2160 = vsel %vm586, %v2155, %v2159
        %v2161 = vrot.slane %v1987, 1
        %v2162 = vsel %vm586, %v2157, %v2161
        %v2163 = vrot.slane %v1988, 1
        %v2164 = vsel %vm586, %v2159, %v2163
        %v2165 = vrot.slane %v1989, 1
        %v2166 = vsel %vm586, %v2161, %v2165
        %v2167 = vrot.slane %v1990, 1
        %v2168 = vsel %vm586, %v2163, %v2167
        %v2169 = vrot.slane %v1991, 1
        %v2170 = vsel %vm586, %v2165, %v2169
        %v2171 = vrot.slane %v1992, 1
        %v2172 = vsel %vm586, %v2167, %v2171
        %v2173 = vrot.slane %v1993, 1
        %v2174 = vsel %vm586, %v2169, %v2173
        %v2175 = vrot.slane %v1994, 1
        %v2176 = vsel %vm586, %v2171, %v2175
        %v2177 = vrot.slane %v1995, 1
        %v2178 = vsel %vm586, %v2173, %v2177
        %v2179 = vrot.slane %v1996, 1
        %v2180 = vsel %vm586, %v2175, %v2179
        %v2181 = vrot.slane %v1997, 1
        %v2182 = vsel %vm586, %v2177, %v2181
        %v2183 = vrot.slane %v1998, 1
        %v2184 = vsel %vm586, %v2179, %v2183
        %v2185 = vrot.slane %v1999, 1
        %v2186 = vsel %vm586, %v2181, %v2185
        %v2187 = vrot.slane %v2000, 1
        %v2188 = vsel %vm586, %v2183, %v2187
        %v2189 = vrot.slane %v2001, 1
        %v2190 = vsel %vm586, %v2185, %v2189
        %v2191 = vrot.slane %v2002, 1
        %v2192 = vsel %vm586, %v2187, %v2191
        %v2257 = vmax.f32 %v1939, %v2069
        %v2258 = vmax.f32 %v1940, %v2072
        %v2259 = vmax.f32 %v1941, %v2074
        %v2260 = vmax.f32 %v1942, %v2076
        %v2261 = vmax.f32 %v1943, %v2078
        %v2262 = vmax.f32 %v1944, %v2080
        %v2263 = vmax.f32 %v1945, %v2082
        %v2264 = vmax.f32 %v1946, %v2084
        %v2265 = vmax.f32 %v1947, %v2086
        %v2266 = vmax.f32 %v1948, %v2088
        %v2267 = vmax.f32 %v1949, %v2090
        %v2268 = vmax.f32 %v1950, %v2092
        %v2269 = vmax.f32 %v1951, %v2094
        %v2270 = vmax.f32 %v1952, %v2096
        %v2271 = vmax.f32 %v1953, %v2098
        %v2272 = vmax.f32 %v1954, %v2100
        %v2273 = vmax.f32 %v1955, %v2102
        %v2274 = vmax.f32 %v1956, %v2104
        %v2275 = vmax.f32 %v1957, %v2106
        %v2276 = vmax.f32 %v1958, %v2108
        %v2277 = vmax.f32 %v1959, %v2110
        %v2278 = vmax.f32 %v1960, %v2112
        %v2279 = vmax.f32 %v1961, %v2114
        %v2280 = vmax.f32 %v1962, %v2116
        %v2281 = vmax.f32 %v1963, %v2118
        %v2282 = vmax.f32 %v1964, %v2120
        %v2283 = vmax.f32 %v1965, %v2122
        %v2284 = vmax.f32 %v1966, %v2124
        %v2285 = vmax.f32 %v1967, %v2126
        %v2286 = vmax.f32 %v1968, %v2128
        %v2287 = vmax.f32 %v1969, %v2130
        %v2288 = vmax.f32 %v1970, %v2132
        %v2289 = vmax.f32 %v1971, %v2134
        %v2290 = vmax.f32 %v1972, %v2136
        %v2291 = vmax.f32 %v1973, %v2138
        %v2292 = vmax.f32 %v1974, %v2140
        %v2293 = vmax.f32 %v1975, %v2142
        %v2294 = vmax.f32 %v1976, %v2144
        %v2295 = vmax.f32 %v1977, %v2146
        %v2296 = vmax.f32 %v1978, %v2148
        %v2297 = vmax.f32 %v1979, %v2150
        %v2298 = vmax.f32 %v1980, %v2152
        %v2299 = vmax.f32 %v1981, %v2154
        %v2300 = vmax.f32 %v1982, %v2156
        %v2301 = vmax.f32 %v1983, %v2158
        %v2302 = vmax.f32 %v1984, %v2160
        %v2303 = vmax.f32 %v1985, %v2162
        %v2304 = vmax.f32 %v1986, %v2164
        %v2305 = vmax.f32 %v1987, %v2166
        %v2306 = vmax.f32 %v1988, %v2168
        %v2307 = vmax.f32 %v1989, %v2170
        %v2308 = vmax.f32 %v1990, %v2172
        %v2309 = vmax.f32 %v1991, %v2174
        %v2310 = vmax.f32 %v1992, %v2176
        %v2311 = vmax.f32 %v1993, %v2178
        %v2312 = vmax.f32 %v1994, %v2180
        %v2313 = vmax.f32 %v1995, %v2182
        %v2314 = vmax.f32 %v1996, %v2184
        %v2315 = vmax.f32 %v1997, %v2186
        %v2316 = vmax.f32 %v1998, %v2188
        %v2317 = vmax.f32 %v1999, %v2190
        %v2318 = vmax.f32 %v2000, %v2192
        %v2319 = vmax.f32 %v2001, %v2189
        %v2320 = vmax.f32 %v2002, %v2191
        %v2321 = vld [vmem:[%s3] sm:$0xff]
        %v2322 = vld [vmem:[%s3 + $0x8] sm:$0xff]
        %v2323 = vld [vmem:[%s3 + $0x10] sm:$0xff]
        %v2324 = vld [vmem:[%s3 + $0x18] sm:$0xff]
        %v2325 = vld [vmem:[%s3 + $0x20] sm:$0xff]
        %v2326 = vld [vmem:[%s3 + $0x28] sm:$0xff]
        %v2327 = vld [vmem:[%s3 + $0x30] sm:$0xff]
        %v2328 = vld [vmem:[%s3 + $0x38] sm:$0xff]
        %v2329 = vld [vmem:[%s3 + $0x40] sm:$0xff]
        %v2330 = vld [vmem:[%s3 + $0x48] sm:$0xff]
        %v2331 = vld [vmem:[%s3 + $0x50] sm:$0xff]
        %v2332 = vld [vmem:[%s3 + $0x58] sm:$0xff]
        %v2333 = vld [vmem:[%s3 + $0x60] sm:$0xff]
        %v2334 = vld [vmem:[%s3 + $0x68] sm:$0xff]
        %v2335 = vld [vmem:[%s3 + $0x70] sm:$0xff]
        %v2336 = vld [vmem:[%s3 + $0x78] sm:$0xff]
        %v2337 = vld [vmem:[%s3 + $0x80] sm:$0xff]
        %v2338 = vld [vmem:[%s3 + $0x88] sm:$0xff]
        %v2339 = vld [vmem:[%s3 + $0x90] sm:$0xff]
        %v2340 = vld [vmem:[%s3 + $0x98] sm:$0xff]
        %v2341 = vld [vmem:[%s3 + $0xa0] sm:$0xff]
        %vm2342 = vcmask 326656
        %v2344 = vsel %vm2342, %v2258, 0
        %v2347 = vsel %vm2342, %v2260, 0
        %v2350 = vsel %vm2342, %v2262, 0
        %v2353 = vsel %vm2342, %v2264, 0
        %v2356 = vsel %vm2342, %v2266, 0
        %v2359 = vsel %vm2342, %v2268, 0
        %v2362 = vsel %vm2342, %v2270, 0
        %v2365 = vsel %vm2342, %v2272, 0
        %v2368 = vsel %vm2342, %v2274, 0
        %v2371 = vsel %vm2342, %v2276, 0
        %v2374 = vsel %vm2342, %v2278, 0
        %v2377 = vsel %vm2342, %v2280, 0
        %v2380 = vsel %vm2342, %v2282, 0
        %v2383 = vsel %vm2342, %v2284, 0
        %v2386 = vsel %vm2342, %v2286, 0
        %v2389 = vsel %vm2342, %v2288, 0
        %v2392 = vsel %vm2342, %v2290, 0
        %v2395 = vsel %vm2342, %v2292, 0
        %v2398 = vsel %vm2342, %v2294, 0
        %v2401 = vsel %vm2342, %v2296, 0
        %v2404 = vsel %vm2342, %v2298, 0
        %v2407 = vsel %vm2342, %v2300, 0
        %v2410 = vsel %vm2342, %v2302, 0
        %v2413 = vsel %vm2342, %v2304, 0
        %v2416 = vsel %vm2342, %v2306, 0
        %v2419 = vsel %vm2342, %v2308, 0
        %v2422 = vsel %vm2342, %v2310, 0
        %v2425 = vsel %vm2342, %v2312, 0
        %v2428 = vsel %vm2342, %v2314, 0
        %v2431 = vsel %vm2342, %v2316, 0
        %v2434 = vsel %vm2342, %v2318, 0
        %v2437 = vsel %vm2342, %v2320, 0
        %2439 = vmatprep.subr.mxu0 0.0
        %2440 = vmatpush1.msra.mxu0 %v2321
        %2441 = vmatprep.subr.mxu0 0.0
        %2442 = vmatpush1.msra.mxu0 %v2322
        %2443 = vmatprep.subr.mxu0 0.0
        %2444 = vmatpush1.msra.mxu0 %v2323
        %2445 = vmatprep.subr.mxu0 0.0
        %2446 = vmatpush1.msra.mxu0 %v2324
        %2447 = vmatprep.subr.mxu0 0.0
        %2448 = vmatpush1.msra.mxu0 %v2325
        %2449 = vmatprep.subr.mxu0 0.0
        %2450 = vmatpush1.msra.mxu0 %v2326
        %2451 = vmatprep.subr.mxu0 0.0
        %2452 = vmatpush1.msra.mxu0 %v2327
        %2453 = vmatprep.subr.mxu0 0.0
        %2454 = vmatpush1.msra.mxu0 %v2328
        %2455 = vmatprep.subr.mxu0 0.0
        %2456 = vmatpush1.msra.mxu0 %v2329
        %2457 = vmatprep.subr.mxu0 0.0
        %2458 = vmatpush1.msra.mxu0 %v2330
        %2459 = vmatprep.subr.mxu0 0.0
        %2460 = vmatpush1.msra.mxu0 %v2331
        %2461 = vmatprep.subr.mxu0 0.0
        %2462 = vmatpush1.msra.mxu0 %v2332
        %2463 = vmatprep.subr.mxu0 0.0
        %2464 = vmatpush1.msra.mxu0 %v2333
        %2465 = vmatprep.subr.mxu0 0.0
        %2466 = vmatpush1.msra.mxu0 %v2334
        %2467 = vmatprep.subr.mxu0 0.0
        %2468 = vmatpush1.msra.mxu0 %v2335
        %2469 = vmatprep.subr.mxu0 0.0
        %2470 = vmatpush1.msra.mxu0 %v2336
        %2471 = vmatprep.subr.mxu0 0.0
        %2472 = vmatpush1.msra.mxu0 %v2337
        %2473 = vmatprep.subr.mxu0 0.0
        %2474 = vmatpush1.msra.mxu0 %v2338
        %2475 = vmatprep.subr.mxu0 0.0
        %2476 = vmatpush1.msra.mxu0 %v2339
        %2477 = vmatprep.subr.mxu0 0.0
        %2478 = vmatpush1.msra.mxu0 %v2340
        %2479 = vmatprep.subr.mxu0 0.0
        %2480 = vmatpush1.msra.mxu0 %v2341
        %2481 = vmatprep.subr.mxu0 0.0
        %2482 = vmatpush1.msra.mxu0 0.0
        %2483 = vmatprep.subr.mxu0 0.0
        %2484 = vmatpush1.msra.mxu0 0.0
        %2485 = vmatprep.subr.mxu0 0.0
        %2486 = vmatpush1.msra.mxu0 0.0
        %2487 = vmatprep.subr.mxu0 0.0
        %2488 = vmatpush1.msra.mxu0 0.0
        %2489 = vmatprep.subr.mxu0 0.0
        %2490 = vmatpush1.msra.mxu0 0.0
        %2491 = vmatprep.subr.mxu0 0.0
        %2492 = vmatpush1.msra.mxu0 0.0
        %2493 = vmatprep.subr.mxu0 0.0
        %2494 = vmatpush1.msra.mxu0 0.0
        %2495 = vmatprep.subr.mxu0 0.0
        %2496 = vmatpush1.msra.mxu0 0.0
        %2497 = vmatprep.subr.mxu0 0.0
        %2498 = vmatpush1.msra.mxu0 0.0
        %2499 = vmatprep.subr.mxu0 0.0
        %2500 = vmatpush1.msra.mxu0 0.0
        %2501 = vmatprep.subr.mxu0 0.0
        %2502 = vmatpush1.msra.mxu0 0.0
        %2503 = vmatprep.mubr.f32.mxu0 %v2344
        %2504 = vmatmul.mubr.f32.gmra.mrb[0].mxu0 %v2257
        %v2505 = vpop.f32.mrb[0].mxu0
        %v2506 = vadd.f32 0.0, %v2505
        %v2507 = vpop.f32.mrb[0].mxu0
        %2508 = vmatprep.mubr.f32.mxu0 %v2347
        %2509 = vmatmul.mubr.f32.gmra.mrb[0].mxu0 %v2259
        %v2510 = vpop.f32.mrb[0].mxu0
        %v2511 = vadd.f32 0.0, %v2510
        %v2512 = vpop.f32.mrb[0].mxu0
        %2513 = vmatprep.mubr.f32.mxu0 %v2350
        %2514 = vmatmul.mubr.f32.gmra.mrb[0].mxu0 %v2261
        %v2515 = vpop.f32.mrb[0].mxu0
        %v2516 = vadd.f32 0.0, %v2515
        %v2517 = vpop.f32.mrb[0].mxu0
        %2518 = vmatprep.mubr.f32.mxu0 %v2353
        %2519 = vmatmul.mubr.f32.gmra.mrb[0].mxu0 %v2263
        %v2520 = vpop.f32.mrb[0].mxu0
        %v2521 = vadd.f32 0.0, %v2520
        %v2522 = vpop.f32.mrb[0].mxu0
        %2523 = vmatprep.mubr.f32.mxu0 %v2356
        %2524 = vmatmul.mubr.f32.gmra.mrb[0].mxu0 %v2265
        %v2525 = vpop.f32.mrb[0].mxu0
        %v2526 = vadd.f32 0.0, %v2525
        %v2527 = vpop.f32.mrb[0].mxu0
        %2528 = vmatprep.mubr.f32.mxu0 %v2359
        %2529 = vmatmul.mubr.f32.gmra.mrb[0].mxu0 %v2267
        %v2530 = vpop.f32.mrb[0].mxu0
        %v2531 = vadd.f32 0.0, %v2530
        %v2532 = vpop.f32.mrb[0].mxu0
        %2533 = vmatprep.mubr.f32.mxu0 %v2362
        %2534 = vmatmul.mubr.f32.gmra.mrb[0].mxu0 %v2269
        %v2535 = vpop.f32.mrb[0].mxu0
        %v2536 = vadd.f32 0.0, %v2535
        %v2537 = vpop.f32.mrb[0].mxu0
        %2538 = vmatprep.mubr.f32.mxu0 %v2365
        %2539 = vmatmul.mubr.f32.gmra.mrb[0].mxu0 %v2271
        %v2540 = vpop.f32.mrb[0].mxu0
        %v2541 = vadd.f32 0.0, %v2540
        %v2542 = vpop.f32.mrb[0].mxu0
        %2543 = vmatprep.mubr.f32.mxu0 %v2368
        %2544 = vmatmul.mubr.f32.gmra.mrb[0].mxu0 %v2273
        %v2545 = vpop.f32.mrb[0].mxu0
        %v2546 = vadd.f32 0.0, %v2545
        %v2547 = vpop.f32.mrb[0].mxu0
        %2548 = vmatprep.mubr.f32.mxu0 %v2371
        %2549 = vmatmul.mubr.f32.gmra.mrb[0].mxu0 %v2275
        %v2550 = vpop.f32.mrb[0].mxu0
        %v2551 = vadd.f32 0.0, %v2550
        %v2552 = vpop.f32.mrb[0].mxu0
        %2553 = vmatprep.mubr.f32.mxu0 %v2374
        %2554 = vmatmul.mubr.f32.gmra.mrb[0].mxu0 %v2277
        %v2555 = vpop.f32.mrb[0].mxu0
        %v2556 = vadd.f32 0.0, %v2555
        %v2557 = vpop.f32.mrb[0].mxu0
        %2558 = vmatprep.mubr.f32.mxu0 %v2377
        %2559 = vmatmul.mubr.f32.gmra.mrb[0].mxu0 %v2279
        %v2560 = vpop.f32.mrb[0].mxu0
        %v2561 = vadd.f32 0.0, %v2560
        %v2562 = vpop.f32.mrb[0].mxu0
        %2563 = vmatprep.mubr.f32.mxu0 %v2380
        %2564 = vmatmul.mubr.f32.gmra.mrb[0].mxu0 %v2281
        %v2565 = vpop.f32.mrb[0].mxu0
        %v2566 = vadd.f32 0.0, %v2565
        %v2567 = vpop.f32.mrb[0].mxu0
        %2568 = vmatprep.mubr.f32.mxu0 %v2383
        %2569 = vmatmul.mubr.f32.gmra.mrb[0].mxu0 %v2283
        %v2570 = vpop.f32.mrb[0].mxu0
        %v2571 = vadd.f32 0.0, %v2570
        %v2572 = vpop.f32.mrb[0].mxu0
        %2573 = vmatprep.mubr.f32.mxu0 %v2386
        %2574 = vmatmul.mubr.f32.gmra.mrb[0].mxu0 %v2285
        %v2575 = vpop.f32.mrb[0].mxu0
        %v2576 = vadd.f32 0.0, %v2575
        %v2577 = vpop.f32.mrb[0].mxu0
        %2578 = vmatprep.mubr.f32.mxu0 %v2389
        %2579 = vmatmul.mubr.f32.gmra.mrb[0].mxu0 %v2287
        %v2580 = vpop.f32.mrb[0].mxu0
        %v2581 = vadd.f32 0.0, %v2580
        %v2582 = vpop.f32.mrb[0].mxu0
        %2583 = vmatprep.mubr.f32.mxu0 %v2392
        %2584 = vmatmul.mubr.f32.gmra.mrb[0].mxu0 %v2289
        %v2585 = vpop.f32.mrb[0].mxu0
        %v2586 = vadd.f32 0.0, %v2585
        %v2587 = vpop.f32.mrb[0].mxu0
        %2588 = vmatprep.mubr.f32.mxu0 %v2395
        %2589 = vmatmul.mubr.f32.gmra.mrb[0].mxu0 %v2291
        %v2590 = vpop.f32.mrb[0].mxu0
        %v2591 = vadd.f32 0.0, %v2590
        %v2592 = vpop.f32.mrb[0].mxu0
        %2593 = vmatprep.mubr.f32.mxu0 %v2398
        %2594 = vmatmul.mubr.f32.gmra.mrb[0].mxu0 %v2293
        %v2595 = vpop.f32.mrb[0].mxu0
        %v2596 = vadd.f32 0.0, %v2595
        %v2597 = vpop.f32.mrb[0].mxu0
        %2598 = vmatprep.mubr.f32.mxu0 %v2401
        %2599 = vmatmul.mubr.f32.gmra.mrb[0].mxu0 %v2295
        %v2600 = vpop.f32.mrb[0].mxu0
        %v2601 = vadd.f32 0.0, %v2600
        %v2602 = vpop.f32.mrb[0].mxu0
        %2603 = vmatprep.mubr.f32.mxu0 %v2404
        %2604 = vmatmul.mubr.f32.gmra.mrb[0].mxu0 %v2297
        %v2605 = vpop.f32.mrb[0].mxu0
        %v2606 = vadd.f32 0.0, %v2605
        %v2607 = vpop.f32.mrb[0].mxu0
        %2608 = vmatprep.mubr.f32.mxu0 %v2407
        %2609 = vmatmul.mubr.f32.gmra.mrb[0].mxu0 %v2299
        %v2610 = vpop.f32.mrb[0].mxu0
        %v2611 = vadd.f32 0.0, %v2610
        %v2612 = vpop.f32.mrb[0].mxu0
        %2613 = vmatprep.mubr.f32.mxu0 %v2410
        %2614 = vmatmul.mubr.f32.gmra.mrb[0].mxu0 %v2301
        %v2615 = vpop.f32.mrb[0].mxu0
        %v2616 = vadd.f32 0.0, %v2615
        %v2617 = vpop.f32.mrb[0].mxu0
        %2618 = vmatprep.mubr.f32.mxu0 %v2413
        %2619 = vmatmul.mubr.f32.gmra.mrb[0].mxu0 %v2303
        %v2620 = vpop.f32.mrb[0].mxu0
        %v2621 = vadd.f32 0.0, %v2620
        %v2622 = vpop.f32.mrb[0].mxu0
        %2623 = vmatprep.mubr.f32.mxu0 %v2416
        %2624 = vmatmul.mubr.f32.gmra.mrb[0].mxu0 %v2305
        %v2625 = vpop.f32.mrb[0].mxu0
        %v2626 = vadd.f32 0.0, %v2625
        %v2627 = vpop.f32.mrb[0].mxu0
        %2628 = vmatprep.mubr.f32.mxu0 %v2419
        %2629 = vmatmul.mubr.f32.gmra.mrb[0].mxu0 %v2307
        %v2630 = vpop.f32.mrb[0].mxu0
        %v2631 = vadd.f32 0.0, %v2630
        %v2632 = vpop.f32.mrb[0].mxu0
        %2633 = vmatprep.mubr.f32.mxu0 %v2422
        %2634 = vmatmul.mubr.f32.gmra.mrb[0].mxu0 %v2309
        %v2635 = vpop.f32.mrb[0].mxu0
        %v2636 = vadd.f32 0.0, %v2635
        %v2637 = vpop.f32.mrb[0].mxu0
        %2638 = vmatprep.mubr.f32.mxu0 %v2425
        %2639 = vmatmul.mubr.f32.gmra.mrb[0].mxu0 %v2311
        %v2640 = vpop.f32.mrb[0].mxu0
        %v2641 = vadd.f32 0.0, %v2640
        %v2642 = vpop.f32.mrb[0].mxu0
        %2643 = vmatprep.mubr.f32.mxu0 %v2428
        %2644 = vmatmul.mubr.f32.gmra.mrb[0].mxu0 %v2313
        %v2645 = vpop.f32.mrb[0].mxu0
        %v2646 = vadd.f32 0.0, %v2645
        %v2647 = vpop.f32.mrb[0].mxu0
        %2648 = vmatprep.mubr.f32.mxu0 %v2431
        %2649 = vmatmul.mubr.f32.gmra.mrb[0].mxu0 %v2315
        %v2650 = vpop.f32.mrb[0].mxu0
        %v2651 = vadd.f32 0.0, %v2650
        %v2652 = vpop.f32.mrb[0].mxu0
        %2653 = vmatprep.mubr.f32.mxu0 %v2434
        %2654 = vmatmul.mubr.f32.gmra.mrb[0].mxu0 %v2317
        %v2655 = vpop.f32.mrb[0].mxu0
        %v2656 = vadd.f32 0.0, %v2655
        %v2657 = vpop.f32.mrb[0].mxu0
        %2658 = vmatprep.mubr.f32.mxu0 %v2437
        %2659 = vmatmul.mubr.f32.gmra.mrb[0].mxu0 %v2319
        %v2660 = vpop.f32.mrb[0].mxu0
        %v2661 = vadd.f32 0.0, %v2660
        %v2662 = vpop.f32.mrb[0].mxu0
        %2663 = vdwg.mxu0
        %v2664 = vld [vmem:[%s4] sm:$0xff]
        %v2665 = vld [vmem:[%s4 + $0x8] sm:$0xff]
        %v2666 = vld [vmem:[%s4 + $0x10] sm:$0xff]
        %v2667 = vld [vmem:[%s4 + $0x18] sm:$0xff]
        %v2668 = vld [vmem:[%s4 + $0x20] sm:$0xff]
        %v2669 = vld [vmem:[%s4 + $0x28] sm:$0xff]
        %v2670 = vld [vmem:[%s4 + $0x30] sm:$0xff]
        %v2671 = vld [vmem:[%s4 + $0x38] sm:$0xff]
        %v2672 = vld [vmem:[%s4 + $0x40] sm:$0xff]
        %v2673 = vld [vmem:[%s4 + $0x48] sm:$0xff]
        %v2674 = vld [vmem:[%s4 + $0x50] sm:$0xff]
        %v2675 = vld [vmem:[%s4 + $0x58] sm:$0xff]
        %v2676 = vld [vmem:[%s4 + $0x60] sm:$0xff]
        %v2677 = vld [vmem:[%s4 + $0x68] sm:$0xff]
        %v2678 = vld [vmem:[%s4 + $0x70] sm:$0xff]
        %v2679 = vld [vmem:[%s4 + $0x78] sm:$0xff]
        %v2680 = vld [vmem:[%s4 + $0x80] sm:$0xff]
        %v2681 = vld [vmem:[%s4 + $0x88] sm:$0xff]
        %v2682 = vld [vmem:[%s4 + $0x90] sm:$0xff]
        %v2683 = vld [vmem:[%s4 + $0x98] sm:$0xff]
        %v2684 = vld [vmem:[%s4 + $0xa0] sm:$0xff]
        %2685 = vmatprep.subr.mxu0 0.0
        %2686 = vmatpush1.msra.mxu0 %v2664
        %2687 = vmatprep.subr.mxu0 0.0
        %2688 = vmatpush1.msra.mxu0 %v2665
        %2689 = vmatprep.subr.mxu0 0.0
        %2690 = vmatpush1.msra.mxu0 %v2666
        %2691 = vmatprep.subr.mxu0 0.0
        %2692 = vmatpush1.msra.mxu0 %v2667
        %2693 = vmatprep.subr.mxu0 0.0
        %2694 = vmatpush1.msra.mxu0 %v2668
        %2695 = vmatprep.subr.mxu0 0.0
        %2696 = vmatpush1.msra.mxu0 %v2669
        %2697 = vmatprep.subr.mxu0 0.0
        %2698 = vmatpush1.msra.mxu0 %v2670
        %2699 = vmatprep.subr.mxu0 0.0
        %2700 = vmatpush1.msra.mxu0 %v2671
        %2701 = vmatprep.subr.mxu0 0.0
        %2702 = vmatpush1.msra.mxu0 %v2672
        %2703 = vmatprep.subr.mxu0 0.0
        %2704 = vmatpush1.msra.mxu0 %v2673
        %2705 = vmatprep.subr.mxu0 0.0
        %2706 = vmatpush1.msra.mxu0 %v2674
        %2707 = vmatprep.subr.mxu0 0.0
        %2708 = vmatpush1.msra.mxu0 %v2675
        %2709 = vmatprep.subr.mxu0 0.0
        %2710 = vmatpush1.msra.mxu0 %v2676
        %2711 = vmatprep.subr.mxu0 0.0
        %2712 = vmatpush1.msra.mxu0 %v2677
        %2713 = vmatprep.subr.mxu0 0.0
        %2714 = vmatpush1.msra.mxu0 %v2678
        %2715 = vmatprep.subr.mxu0 0.0
        %2716 = vmatpush1.msra.mxu0 %v2679
        %2717 = vmatprep.subr.mxu0 0.0
        %2718 = vmatpush1.msra.mxu0 %v2680
        %2719 = vmatprep.subr.mxu0 0.0
        %2720 = vmatpush1.msra.mxu0 %v2681
        %2721 = vmatprep.subr.mxu0 0.0
        %2722 = vmatpush1.msra.mxu0 %v2682
        %2723 = vmatprep.subr.mxu0 0.0
        %2724 = vmatpush1.msra.mxu0 %v2683
        %2725 = vmatprep.subr.mxu0 0.0
        %2726 = vmatpush1.msra.mxu0 %v2684
        %2727 = vmatprep.subr.mxu0 0.0
        %2728 = vmatpush1.msra.mxu0 0.0
        %2729 = vmatprep.subr.mxu0 0.0
        %2730 = vmatpush1.msra.mxu0 0.0
        %2731 = vmatprep.subr.mxu0 0.0
        %2732 = vmatpush1.msra.mxu0 0.0
        %2733 = vmatprep.subr.mxu0 0.0
        %2734 = vmatpush1.msra.mxu0 0.0
        %2735 = vmatprep.subr.mxu0 0.0
        %2736 = vmatpush1.msra.mxu0 0.0
        %2737 = vmatprep.subr.mxu0 0.0
        %2738 = vmatpush1.msra.mxu0 0.0
        %2739 = vmatprep.subr.mxu0 0.0
        %2740 = vmatpush1.msra.mxu0 0.0
        %2741 = vmatprep.subr.mxu0 0.0
        %2742 = vmatpush1.msra.mxu0 0.0
        %2743 = vmatprep.subr.mxu0 0.0
        %2744 = vmatpush1.msra.mxu0 0.0
        %2745 = vmatprep.subr.mxu0 0.0
        %2746 = vmatpush1.msra.mxu0 0.0
        %2747 = vmatprep.subr.mxu0 0.0
        %2748 = vmatpush1.msra.mxu0 0.0
        %2749 = vmatprep.mubr.f32.mxu0 %v2344
        %2750 = vmatmul.mubr.f32.gmra.mrb[0].mxu0 %v2257
        %v2751 = vpop.f32.mrb[0].mxu0
        %v2752 = vadd.f32 0.0, %v2751
        %v2753 = vpop.f32.mrb[0].mxu0
        %2754 = vmatprep.mubr.f32.mxu0 %v2347
        %2755 = vmatmul.mubr.f32.gmra.mrb[0].mxu0 %v2259
        %v2756 = vpop.f32.mrb[0].mxu0
        %v2757 = vadd.f32 0.0, %v2756
        %v2758 = vpop.f32.mrb[0].mxu0
        %2759 = vmatprep.mubr.f32.mxu0 %v2350
        %2760 = vmatmul.mubr.f32.gmra.mrb[0].mxu0 %v2261
        %v2761 = vpop.f32.mrb[0].mxu0
        %v2762 = vadd.f32 0.0, %v2761
        %v2763 = vpop.f32.mrb[0].mxu0
        %2764 = vmatprep.mubr.f32.mxu0 %v2353
        %2765 = vmatmul.mubr.f32.gmra.mrb[0].mxu0 %v2263
        %v2766 = vpop.f32.mrb[0].mxu0
        %v2767 = vadd.f32 0.0, %v2766
        %v2768 = vpop.f32.mrb[0].mxu0
        %2769 = vmatprep.mubr.f32.mxu0 %v2356
        %2770 = vmatmul.mubr.f32.gmra.mrb[0].mxu0 %v2265
        %v2771 = vpop.f32.mrb[0].mxu0
        %v2772 = vadd.f32 0.0, %v2771
        %v2773 = vpop.f32.mrb[0].mxu0
        %2774 = vmatprep.mubr.f32.mxu0 %v2359
        %2775 = vmatmul.mubr.f32.gmra.mrb[0].mxu0 %v2267
        %v2776 = vpop.f32.mrb[0].mxu0
        %v2777 = vadd.f32 0.0, %v2776
        %v2778 = vpop.f32.mrb[0].mxu0
        %2779 = vmatprep.mubr.f32.mxu0 %v2362
        %2780 = vmatmul.mubr.f32.gmra.mrb[0].mxu0 %v2269
        %v2781 = vpop.f32.mrb[0].mxu0
        %v2782 = vadd.f32 0.0, %v2781
        %v2783 = vpop.f32.mrb[0].mxu0
        %2784 = vmatprep.mubr.f32.mxu0 %v2365
        %2785 = vmatmul.mubr.f32.gmra.mrb[0].mxu0 %v2271
        %v2786 = vpop.f32.mrb[0].mxu0
        %v2787 = vadd.f32 0.0, %v2786
        %v2788 = vpop.f32.mrb[0].mxu0
        %2789 = vmatprep.mubr.f32.mxu0 %v2368
        %2790 = vmatmul.mubr.f32.gmra.mrb[0].mxu0 %v2273
        %v2791 = vpop.f32.mrb[0].mxu0
        %v2792 = vadd.f32 0.0, %v2791
        %v2793 = vpop.f32.mrb[0].mxu0
        %2794 = vmatprep.mubr.f32.mxu0 %v2371
        %2795 = vmatmul.mubr.f32.gmra.mrb[0].mxu0 %v2275
        %v2796 = vpop.f32.mrb[0].mxu0
        %v2797 = vadd.f32 0.0, %v2796
        %v2798 = vpop.f32.mrb[0].mxu0
        %2799 = vmatprep.mubr.f32.mxu0 %v2374
        %2800 = vmatmul.mubr.f32.gmra.mrb[0].mxu0 %v2277
        %v2801 = vpop.f32.mrb[0].mxu0
        %v2802 = vadd.f32 0.0, %v2801
        %v2803 = vpop.f32.mrb[0].mxu0
        %2804 = vmatprep.mubr.f32.mxu0 %v2377
        %2805 = vmatmul.mubr.f32.gmra.mrb[0].mxu0 %v2279
        %v2806 = vpop.f32.mrb[0].mxu0
        %v2807 = vadd.f32 0.0, %v2806
        %v2808 = vpop.f32.mrb[0].mxu0
        %2809 = vmatprep.mubr.f32.mxu0 %v2380
        %2810 = vmatmul.mubr.f32.gmra.mrb[0].mxu0 %v2281
        %v2811 = vpop.f32.mrb[0].mxu0
        %v2812 = vadd.f32 0.0, %v2811
        %v2813 = vpop.f32.mrb[0].mxu0
        %2814 = vmatprep.mubr.f32.mxu0 %v2383
        %2815 = vmatmul.mubr.f32.gmra.mrb[0].mxu0 %v2283
        %v2816 = vpop.f32.mrb[0].mxu0
        %v2817 = vadd.f32 0.0, %v2816
        %v2818 = vpop.f32.mrb[0].mxu0
        %2819 = vmatprep.mubr.f32.mxu0 %v2386
        %2820 = vmatmul.mubr.f32.gmra.mrb[0].mxu0 %v2285
        %v2821 = vpop.f32.mrb[0].mxu0
        %v2822 = vadd.f32 0.0, %v2821
        %v2823 = vpop.f32.mrb[0].mxu0
        %2824 = vmatprep.mubr.f32.mxu0 %v2389
        %2825 = vmatmul.mubr.f32.gmra.mrb[0].mxu0 %v2287
        %v2826 = vpop.f32.mrb[0].mxu0
        %v2827 = vadd.f32 0.0, %v2826
        %v2828 = vpop.f32.mrb[0].mxu0
        %2829 = vmatprep.mubr.f32.mxu0 %v2392
        %2830 = vmatmul.mubr.f32.gmra.mrb[0].mxu0 %v2289
        %v2831 = vpop.f32.mrb[0].mxu0
        %v2832 = vadd.f32 0.0, %v2831
        %v2833 = vpop.f32.mrb[0].mxu0
        %2834 = vmatprep.mubr.f32.mxu0 %v2395
        %2835 = vmatmul.mubr.f32.gmra.mrb[0].mxu0 %v2291
        %v2836 = vpop.f32.mrb[0].mxu0
        %v2837 = vadd.f32 0.0, %v2836
        %v2838 = vpop.f32.mrb[0].mxu0
        %2839 = vmatprep.mubr.f32.mxu0 %v2398
        %2840 = vmatmul.mubr.f32.gmra.mrb[0].mxu0 %v2293
        %v2841 = vpop.f32.mrb[0].mxu0
        %v2842 = vadd.f32 0.0, %v2841
        %v2843 = vpop.f32.mrb[0].mxu0
        %2844 = vmatprep.mubr.f32.mxu0 %v2401
        %2845 = vmatmul.mubr.f32.gmra.mrb[0].mxu0 %v2295
        %v2846 = vpop.f32.mrb[0].mxu0
        %v2847 = vadd.f32 0.0, %v2846
        %v2848 = vpop.f32.mrb[0].mxu0
        %2849 = vmatprep.mubr.f32.mxu0 %v2404
        %2850 = vmatmul.mubr.f32.gmra.mrb[0].mxu0 %v2297
        %v2851 = vpop.f32.mrb[0].mxu0
        %v2852 = vadd.f32 0.0, %v2851
        %v2853 = vpop.f32.mrb[0].mxu0
        %2854 = vmatprep.mubr.f32.mxu0 %v2407
        %2855 = vmatmul.mubr.f32.gmra.mrb[0].mxu0 %v2299
        %v2856 = vpop.f32.mrb[0].mxu0
        %v2857 = vadd.f32 0.0, %v2856
        %v2858 = vpop.f32.mrb[0].mxu0
        %2859 = vmatprep.mubr.f32.mxu0 %v2410
        %2860 = vmatmul.mubr.f32.gmra.mrb[0].mxu0 %v2301
        %v2861 = vpop.f32.mrb[0].mxu0
        %v2862 = vadd.f32 0.0, %v2861
        %v2863 = vpop.f32.mrb[0].mxu0
        %2864 = vmatprep.mubr.f32.mxu0 %v2413
        %2865 = vmatmul.mubr.f32.gmra.mrb[0].mxu0 %v2303
        %v2866 = vpop.f32.mrb[0].mxu0
        %v2867 = vadd.f32 0.0, %v2866
        %v2868 = vpop.f32.mrb[0].mxu0
        %2869 = vmatprep.mubr.f32.mxu0 %v2416
        %2870 = vmatmul.mubr.f32.gmra.mrb[0].mxu0 %v2305
        %v2871 = vpop.f32.mrb[0].mxu0
        %v2872 = vadd.f32 0.0, %v2871
        %v2873 = vpop.f32.mrb[0].mxu0
        %2874 = vmatprep.mubr.f32.mxu0 %v2419
        %2875 = vmatmul.mubr.f32.gmra.mrb[0].mxu0 %v2307
        %v2876 = vpop.f32.mrb[0].mxu0
        %v2877 = vadd.f32 0.0, %v2876
        %v2878 = vpop.f32.mrb[0].mxu0
        %2879 = vmatprep.mubr.f32.mxu0 %v2422
        %2880 = vmatmul.mubr.f32.gmra.mrb[0].mxu0 %v2309
        %v2881 = vpop.f32.mrb[0].mxu0
        %v2882 = vadd.f32 0.0, %v2881
        %v2883 = vpop.f32.mrb[0].mxu0
        %2884 = vmatprep.mubr.f32.mxu0 %v2425
        %2885 = vmatmul.mubr.f32.gmra.mrb[0].mxu0 %v2311
        %v2886 = vpop.f32.mrb[0].mxu0
        %v2887 = vadd.f32 0.0, %v2886
        %v2888 = vpop.f32.mrb[0].mxu0
        %2889 = vmatprep.mubr.f32.mxu0 %v2428
        %2890 = vmatmul.mubr.f32.gmra.mrb[0].mxu0 %v2313
        %v2891 = vpop.f32.mrb[0].mxu0
        %v2892 = vadd.f32 0.0, %v2891
        %v2893 = vpop.f32.mrb[0].mxu0
        %2894 = vmatprep.mubr.f32.mxu0 %v2431
        %2895 = vmatmul.mubr.f32.gmra.mrb[0].mxu0 %v2315
        %v2896 = vpop.f32.mrb[0].mxu0
        %v2897 = vadd.f32 0.0, %v2896
        %v2898 = vpop.f32.mrb[0].mxu0
        %2899 = vmatprep.mubr.f32.mxu0 %v2434
        %2900 = vmatmul.mubr.f32.gmra.mrb[0].mxu0 %v2317
        %v2901 = vpop.f32.mrb[0].mxu0
        %v2902 = vadd.f32 0.0, %v2901
        %v2903 = vpop.f32.mrb[0].mxu0
        %2904 = vmatprep.mubr.f32.mxu0 %v2437
        %2905 = vmatmul.mubr.f32.gmra.mrb[0].mxu0 %v2319
        %v2906 = vpop.f32.mrb[0].mxu0
        %v2907 = vadd.f32 0.0, %v2906
        %v2908 = vpop.f32.mrb[0].mxu0
        %2909 = vdwg.mxu0
        %v2910 = vmax.f32 %v2506, %v2752
        %v2911 = vmax.f32 %v2511, %v2757
        %v2912 = vmax.f32 %v2516, %v2762
        %v2913 = vmax.f32 %v2521, %v2767
        %v2914 = vmax.f32 %v2526, %v2772
        %v2915 = vmax.f32 %v2531, %v2777
        %v2916 = vmax.f32 %v2536, %v2782
        %v2917 = vmax.f32 %v2541, %v2787
        %v2918 = vmax.f32 %v2546, %v2792
        %v2919 = vmax.f32 %v2551, %v2797
        %v2920 = vmax.f32 %v2556, %v2802
        %v2921 = vmax.f32 %v2561, %v2807
        %v2922 = vmax.f32 %v2566, %v2812
        %v2923 = vmax.f32 %v2571, %v2817
        %v2924 = vmax.f32 %v2576, %v2822
        %v2925 = vmax.f32 %v2581, %v2827
        %v2926 = vmax.f32 %v2586, %v2832
        %v2927 = vmax.f32 %v2591, %v2837
        %v2928 = vmax.f32 %v2596, %v2842
        %v2929 = vmax.f32 %v2601, %v2847
        %v2930 = vmax.f32 %v2606, %v2852
        %v2931 = vmax.f32 %v2611, %v2857
        %v2932 = vmax.f32 %v2616, %v2862
        %v2933 = vmax.f32 %v2621, %v2867
        %v2934 = vmax.f32 %v2626, %v2872
        %v2935 = vmax.f32 %v2631, %v2877
        %v2936 = vmax.f32 %v2636, %v2882
        %v2937 = vmax.f32 %v2641, %v2887
        %v2938 = vmax.f32 %v2646, %v2892
        %v2939 = vmax.f32 %v2651, %v2897
        %v2940 = vmax.f32 %v2656, %v2902
        %v2941 = vmax.f32 %v2661, %v2907
        %v2973 = vrot.slane %v2910, 2
        %v2974 = vrot.slane %v2911, 2
        %v2975 = vsel %vm746, %v2973, %v2974
        %v2976 = vrot.slane %v2912, 2
        %v2977 = vsel %vm746, %v2974, %v2976
        %v2978 = vrot.slane %v2913, 2
        %v2979 = vsel %vm746, %v2976, %v2978
        %v2980 = vrot.slane %v2914, 2
        %v2981 = vsel %vm746, %v2978, %v2980
        %v2982 = vrot.slane %v2915, 2
        %v2983 = vsel %vm746, %v2980, %v2982
        %v2984 = vrot.slane %v2916, 2
        %v2985 = vsel %vm746, %v2982, %v2984
        %v2986 = vrot.slane %v2917, 2
        %v2987 = vsel %vm746, %v2984, %v2986
        %v2988 = vrot.slane %v2918, 2
        %v2989 = vsel %vm746, %v2986, %v2988
        %v2990 = vrot.slane %v2919, 2
        %v2991 = vsel %vm746, %v2988, %v2990
        %v2992 = vrot.slane %v2920, 2
        %v2993 = vsel %vm746, %v2990, %v2992
        %v2994 = vrot.slane %v2921, 2
        %v2995 = vsel %vm746, %v2992, %v2994
        %v2996 = vrot.slane %v2922, 2
        %v2997 = vsel %vm746, %v2994, %v2996
        %v2998 = vrot.slane %v2923, 2
        %v2999 = vsel %vm746, %v2996, %v2998
        %v3000 = vrot.slane %v2924, 2
        %v3001 = vsel %vm746, %v2998, %v3000
        %v3002 = vrot.slane %v2925, 2
        %v3003 = vsel %vm746, %v3000, %v3002
        %v3004 = vrot.slane %v2926, 2
        %v3005 = vsel %vm746, %v3002, %v3004
        %v3006 = vrot.slane %v2927, 2
        %v3007 = vsel %vm746, %v3004, %v3006
        %v3008 = vrot.slane %v2928, 2
        %v3009 = vsel %vm746, %v3006, %v3008
        %v3010 = vrot.slane %v2929, 2
        %v3011 = vsel %vm746, %v3008, %v3010
        %v3012 = vrot.slane %v2930, 2
        %v3013 = vsel %vm746, %v3010, %v3012
        %v3014 = vrot.slane %v2931, 2
        %v3015 = vsel %vm746, %v3012, %v3014
        %v3016 = vrot.slane %v2932, 2
        %v3017 = vsel %vm746, %v3014, %v3016
        %v3018 = vrot.slane %v2933, 2
        %v3019 = vsel %vm746, %v3016, %v3018
        %v3020 = vrot.slane %v2934, 2
        %v3021 = vsel %vm746, %v3018, %v3020
        %v3022 = vrot.slane %v2935, 2
        %v3023 = vsel %vm746, %v3020, %v3022
        %v3024 = vrot.slane %v2936, 2
        %v3025 = vsel %vm746, %v3022, %v3024
        %v3026 = vrot.slane %v2937, 2
        %v3027 = vsel %vm746, %v3024, %v3026
        %v3028 = vrot.slane %v2938, 2
        %v3029 = vsel %vm746, %v3026, %v3028
        %v3030 = vrot.slane %v2939, 2
        %v3031 = vsel %vm746, %v3028, %v3030
        %v3032 = vrot.slane %v2940, 2
        %v3033 = vsel %vm746, %v3030, %v3032
        %3034 = vrot.lane.b32.xlu0 %v2975, 84
        %v3035 = vpop.permute.xlu0 %3034
        %3036 = vrot.lane.b32.xlu0 %v2977, 84
        %v3037 = vpop.permute.xlu0 %3036
        %3038 = vrot.lane.b32.xlu0 %v2979, 84
        %v3039 = vpop.permute.xlu0 %3038
        %3040 = vrot.lane.b32.xlu0 %v2981, 84
        %v3041 = vpop.permute.xlu0 %3040
        %3042 = vrot.lane.b32.xlu0 %v2983, 84
        %v3043 = vpop.permute.xlu0 %3042
        %3044 = vrot.lane.b32.xlu0 %v2985, 84
        %v3045 = vpop.permute.xlu0 %3044
        %3046 = vrot.lane.b32.xlu0 %v2987, 84
        %v3047 = vpop.permute.xlu0 %3046
        %3048 = vrot.lane.b32.xlu0 %v2989, 84
        %v3049 = vpop.permute.xlu0 %3048
        %3050 = vrot.lane.b32.xlu0 %v2991, 84
        %v3051 = vpop.permute.xlu0 %3050
        %3052 = vrot.lane.b32.xlu0 %v2993, 84
        %v3053 = vpop.permute.xlu0 %3052
        %3054 = vrot.lane.b32.xlu0 %v2995, 84
        %v3055 = vpop.permute.xlu0 %3054
        %3056 = vrot.lane.b32.xlu0 %v2997, 84
        %v3057 = vpop.permute.xlu0 %3056
        %3058 = vrot.lane.b32.xlu0 %v2999, 84
        %v3059 = vpop.permute.xlu0 %3058
        %3060 = vrot.lane.b32.xlu0 %v3001, 84
        %v3061 = vpop.permute.xlu0 %3060
        %3062 = vrot.lane.b32.xlu0 %v3003, 84
        %v3063 = vpop.permute.xlu0 %3062
        %3064 = vrot.lane.b32.xlu0 %v3005, 84
        %v3065 = vpop.permute.xlu0 %3064
        %3066 = vrot.lane.b32.xlu0 %v3007, 84
        %v3067 = vpop.permute.xlu0 %3066
        %3068 = vrot.lane.b32.xlu0 %v3009, 84
        %v3069 = vpop.permute.xlu0 %3068
        %3070 = vrot.lane.b32.xlu0 %v3011, 84
        %v3071 = vpop.permute.xlu0 %3070
        %3072 = vrot.lane.b32.xlu0 %v3013, 84
        %v3073 = vpop.permute.xlu0 %3072
        %3074 = vrot.lane.b32.xlu0 %v3015, 84
        %v3075 = vpop.permute.xlu0 %3074
        %3076 = vrot.lane.b32.xlu0 %v3017, 84
        %v3077 = vpop.permute.xlu0 %3076
        %3078 = vrot.lane.b32.xlu0 %v3019, 84
        %v3079 = vpop.permute.xlu0 %3078
        %3080 = vrot.lane.b32.xlu0 %v3021, 84
        %v3081 = vpop.permute.xlu0 %3080
        %3082 = vrot.lane.b32.xlu0 %v3023, 84
        %v3083 = vpop.permute.xlu0 %3082
        %3084 = vrot.lane.b32.xlu0 %v3025, 84
        %v3085 = vpop.permute.xlu0 %3084
        %3086 = vrot.lane.b32.xlu0 %v3027, 84
        %v3087 = vpop.permute.xlu0 %3086
        %3088 = vrot.lane.b32.xlu0 %v3029, 84
        %v3089 = vpop.permute.xlu0 %3088
        %3090 = vrot.lane.b32.xlu0 %v3031, 84
        %v3091 = vpop.permute.xlu0 %3090
        %3092 = vrot.lane.b32.xlu0 %v3033, 84
        %v3093 = vpop.permute.xlu0 %3092
        %3094 = vrot.lane.b32.xlu0 %v3032, 84
        %v3095 = vpop.permute.xlu0 %3094
        %v3127 = vrot.slane %v2910, 4
        %v3128 = vrot.slane %v2911, 4
        %v3129 = vsel %vm1066, %v3127, %v3128
        %v3130 = vrot.slane %v2912, 4
        %v3131 = vsel %vm1066, %v3128, %v3130
        %v3132 = vrot.slane %v2913, 4
        %v3133 = vsel %vm1066, %v3130, %v3132
        %v3134 = vrot.slane %v2914, 4
        %v3135 = vsel %vm1066, %v3132, %v3134
        %v3136 = vrot.slane %v2915, 4
        %v3137 = vsel %vm1066, %v3134, %v3136
        %v3138 = vrot.slane %v2916, 4
        %v3139 = vsel %vm1066, %v3136, %v3138
        %v3140 = vrot.slane %v2917, 4
        %v3141 = vsel %vm1066, %v3138, %v3140
        %v3142 = vrot.slane %v2918, 4
        %v3143 = vsel %vm1066, %v3140, %v3142
        %v3144 = vrot.slane %v2919, 4
        %v3145 = vsel %vm1066, %v3142, %v3144
        %v3146 = vrot.slane %v2920, 4
        %v3147 = vsel %vm1066, %v3144, %v3146
        %v3148 = vrot.slane %v2921, 4
        %v3149 = vsel %vm1066, %v3146, %v3148
        %v3150 = vrot.slane %v2922, 4
        %v3151 = vsel %vm1066, %v3148, %v3150
        %v3152 = vrot.slane %v2923, 4
        %v3153 = vsel %vm1066, %v3150, %v3152
        %v3154 = vrot.slane %v2924, 4
        %v3155 = vsel %vm1066, %v3152, %v3154
        %v3156 = vrot.slane %v2925, 4
        %v3157 = vsel %vm1066, %v3154, %v3156
        %v3158 = vrot.slane %v2926, 4
        %v3159 = vsel %vm1066, %v3156, %v3158
        %v3160 = vrot.slane %v2927, 4
        %v3161 = vsel %vm1066, %v3158, %v3160
        %v3162 = vrot.slane %v2928, 4
        %v3163 = vsel %vm1066, %v3160, %v3162
        %v3164 = vrot.slane %v2929, 4
        %v3165 = vsel %vm1066, %v3162, %v3164
        %v3166 = vrot.slane %v2930, 4
        %v3167 = vsel %vm1066, %v3164, %v3166
        %v3168 = vrot.slane %v2931, 4
        %v3169 = vsel %vm1066, %v3166, %v3168
        %v3170 = vrot.slane %v2932, 4
        %v3171 = vsel %vm1066, %v3168, %v3170
        %v3172 = vrot.slane %v2933, 4
        %v3173 = vsel %vm1066, %v3170, %v3172
        %v3174 = vrot.slane %v2934, 4
        %v3175 = vsel %vm1066, %v3172, %v3174
        %v3176 = vrot.slane %v2935, 4
        %v3177 = vsel %vm1066, %v3174, %v3176
        %v3178 = vrot.slane %v2936, 4
        %v3179 = vsel %vm1066, %v3176, %v3178
        %v3180 = vrot.slane %v2937, 4
        %v3181 = vsel %vm1066, %v3178, %v3180
        %v3182 = vrot.slane %v2938, 4
        %v3183 = vsel %vm1066, %v3180, %v3182
        %v3184 = vrot.slane %v2939, 4
        %v3185 = vsel %vm1066, %v3182, %v3184
        %v3186 = vrot.slane %v2940, 4
        %v3187 = vsel %vm1066, %v3184, %v3186
        %3188 = vrot.lane.b32.xlu0 %v3129, 40
        %v3189 = vpop.permute.xlu0 %3188
        %3190 = vrot.lane.b32.xlu0 %v3131, 40
        %v3191 = vpop.permute.xlu0 %3190
        %3192 = vrot.lane.b32.xlu0 %v3133, 40
        %v3193 = vpop.permute.xlu0 %3192
        %3194 = vrot.lane.b32.xlu0 %v3135, 40
        %v3195 = vpop.permute.xlu0 %3194
        %3196 = vrot.lane.b32.xlu0 %v3137, 40
        %v3197 = vpop.permute.xlu0 %3196
        %3198 = vrot.lane.b32.xlu0 %v3139, 40
        %v3199 = vpop.permute.xlu0 %3198
        %3200 = vrot.lane.b32.xlu0 %v3141, 40
        %v3201 = vpop.permute.xlu0 %3200
        %3202 = vrot.lane.b32.xlu0 %v3143, 40
        %v3203 = vpop.permute.xlu0 %3202
        %3204 = vrot.lane.b32.xlu0 %v3145, 40
        %v3205 = vpop.permute.xlu0 %3204
        %3206 = vrot.lane.b32.xlu0 %v3147, 40
        %v3207 = vpop.permute.xlu0 %3206
        %3208 = vrot.lane.b32.xlu0 %v3149, 40
        %v3209 = vpop.permute.xlu0 %3208
        %3210 = vrot.lane.b32.xlu0 %v3151, 40
        %v3211 = vpop.permute.xlu0 %3210
        %3212 = vrot.lane.b32.xlu0 %v3153, 40
        %v3213 = vpop.permute.xlu0 %3212
        %3214 = vrot.lane.b32.xlu0 %v3155, 40
        %v3215 = vpop.permute.xlu0 %3214
        %3216 = vrot.lane.b32.xlu0 %v3157, 40
        %v3217 = vpop.permute.xlu0 %3216
        %3218 = vrot.lane.b32.xlu0 %v3159, 40
        %v3219 = vpop.permute.xlu0 %3218
        %3220 = vrot.lane.b32.xlu0 %v3161, 40
        %v3221 = vpop.permute.xlu0 %3220
        %3222 = vrot.lane.b32.xlu0 %v3163, 40
        %v3223 = vpop.permute.xlu0 %3222
        %3224 = vrot.lane.b32.xlu0 %v3165, 40
        %v3225 = vpop.permute.xlu0 %3224
        %3226 = vrot.lane.b32.xlu0 %v3167, 40
        %v3227 = vpop.permute.xlu0 %3226
        %3228 = vrot.lane.b32.xlu0 %v3169, 40
        %v3229 = vpop.permute.xlu0 %3228
        %3230 = vrot.lane.b32.xlu0 %v3171, 40
        %v3231 = vpop.permute.xlu0 %3230
        %3232 = vrot.lane.b32.xlu0 %v3173, 40
        %v3233 = vpop.permute.xlu0 %3232
        %3234 = vrot.lane.b32.xlu0 %v3175, 40
        %v3235 = vpop.permute.xlu0 %3234
        %3236 = vrot.lane.b32.xlu0 %v3177, 40
        %v3237 = vpop.permute.xlu0 %3236
        %3238 = vrot.lane.b32.xlu0 %v3179, 40
        %v3239 = vpop.permute.xlu0 %3238
        %3240 = vrot.lane.b32.xlu0 %v3181, 40
        %v3241 = vpop.permute.xlu0 %3240
        %3242 = vrot.lane.b32.xlu0 %v3183, 40
        %v3243 = vpop.permute.xlu0 %3242
        %3244 = vrot.lane.b32.xlu0 %v3185, 40
        %v3245 = vpop.permute.xlu0 %3244
        %3246 = vrot.lane.b32.xlu0 %v3187, 40
        %v3247 = vpop.permute.xlu0 %3246
        %3248 = vrot.lane.b32.xlu0 %v3186, 40
        %v3249 = vpop.permute.xlu0 %3248
        %vm3282 = vcmask 1041408
        %v3283 = vrot.slane %v2910, 6
        %v3284 = vrot.slane %v2911, 6
        %v3285 = vsel %vm3282, %v3283, %v3284
        %v3286 = vrot.slane %v2912, 6
        %v3287 = vsel %vm3282, %v3284, %v3286
        %v3288 = vrot.slane %v2913, 6
        %v3289 = vsel %vm3282, %v3286, %v3288
        %v3290 = vrot.slane %v2914, 6
        %v3291 = vsel %vm3282, %v3288, %v3290
        %v3292 = vrot.slane %v2915, 6
        %v3293 = vsel %vm3282, %v3290, %v3292
        %v3294 = vrot.slane %v2916, 6
        %v3295 = vsel %vm3282, %v3292, %v3294
        %v3296 = vrot.slane %v2917, 6
        %v3297 = vsel %vm3282, %v3294, %v3296
        %v3298 = vrot.slane %v2918, 6
        %v3299 = vsel %vm3282, %v3296, %v3298
        %v3300 = vrot.slane %v2919, 6
        %v3301 = vsel %vm3282, %v3298, %v3300
        %v3302 = vrot.slane %v2920, 6
        %v3303 = vsel %vm3282, %v3300, %v3302
        %v3304 = vrot.slane %v2921, 6
        %v3305 = vsel %vm3282, %v3302, %v3304
        %v3306 = vrot.slane %v2922, 6
        %v3307 = vsel %vm3282, %v3304, %v3306
        %v3308 = vrot.slane %v2923, 6
        %v3309 = vsel %vm3282, %v3306, %v3308
        %v3310 = vrot.slane %v2924, 6
        %v3311 = vsel %vm3282, %v3308, %v3310
        %v3312 = vrot.slane %v2925, 6
        %v3313 = vsel %vm3282, %v3310, %v3312
        %v3314 = vrot.slane %v2926, 6
        %v3315 = vsel %vm3282, %v3312, %v3314
        %v3316 = vrot.slane %v2927, 6
        %v3317 = vsel %vm3282, %v3314, %v3316
        %v3318 = vrot.slane %v2928, 6
        %v3319 = vsel %vm3282, %v3316, %v3318
        %v3320 = vrot.slane %v2929, 6
        %v3321 = vsel %vm3282, %v3318, %v3320
        %v3322 = vrot.slane %v2930, 6
        %v3323 = vsel %vm3282, %v3320, %v3322
        %v3324 = vrot.slane %v2931, 6
        %v3325 = vsel %vm3282, %v3322, %v3324
        %v3326 = vrot.slane %v2932, 6
        %v3327 = vsel %vm3282, %v3324, %v3326
        %v3328 = vrot.slane %v2933, 6
        %v3329 = vsel %vm3282, %v3326, %v3328
        %v3330 = vrot.slane %v2934, 6
        %v3331 = vsel %vm3282, %v3328, %v3330
        %v3332 = vrot.slane %v2935, 6
        %v3333 = vsel %vm3282, %v3330, %v3332
        %v3334 = vrot.slane %v2936, 6
        %v3335 = vsel %vm3282, %v3332, %v3334
        %v3336 = vrot.slane %v2937, 6
        %v3337 = vsel %vm3282, %v3334, %v3336
        %v3338 = vrot.slane %v2938, 6
        %v3339 = vsel %vm3282, %v3336, %v3338
        %v3340 = vrot.slane %v2939, 6
        %v3341 = vsel %vm3282, %v3338, %v3340
        %v3342 = vrot.slane %v2940, 6
        %v3343 = vsel %vm3282, %v3340, %v3342
        %v3344 = vrot.slane %v2941, 6
        %v3345 = vsel %vm3282, %v3342, %v3344
        %3346 = vrot.lane.b32.xlu0 %v3285, 124
        %v3347 = vpop.permute.xlu0 %3346
        %3348 = vrot.lane.b32.xlu0 %v3287, 124
        %v3349 = vpop.permute.xlu0 %3348
        %3350 = vrot.lane.b32.xlu0 %v3289, 124
        %v3351 = vpop.permute.xlu0 %3350
        %3352 = vrot.lane.b32.xlu0 %v3291, 124
        %v3353 = vpop.permute.xlu0 %3352
        %3354 = vrot.lane.b32.xlu0 %v3293, 124
        %v3355 = vpop.permute.xlu0 %3354
        %3356 = vrot.lane.b32.xlu0 %v3295, 124
        %v3357 = vpop.permute.xlu0 %3356
        %3358 = vrot.lane.b32.xlu0 %v3297, 124
        %v3359 = vpop.permute.xlu0 %3358
        %3360 = vrot.lane.b32.xlu0 %v3299, 124
        %v3361 = vpop.permute.xlu0 %3360
        %3362 = vrot.lane.b32.xlu0 %v3301, 124
        %v3363 = vpop.permute.xlu0 %3362
        %3364 = vrot.lane.b32.xlu0 %v3303, 124
        %v3365 = vpop.permute.xlu0 %3364
        %3366 = vrot.lane.b32.xlu0 %v3305, 124
        %v3367 = vpop.permute.xlu0 %3366
        %3368 = vrot.lane.b32.xlu0 %v3307, 124
        %v3369 = vpop.permute.xlu0 %3368
        %3370 = vrot.lane.b32.xlu0 %v3309, 124
        %v3371 = vpop.permute.xlu0 %3370
        %3372 = vrot.lane.b32.xlu0 %v3311, 124
        %v3373 = vpop.permute.xlu0 %3372
        %3374 = vrot.lane.b32.xlu0 %v3313, 124
        %v3375 = vpop.permute.xlu0 %3374
        %3376 = vrot.lane.b32.xlu0 %v3315, 124
        %v3377 = vpop.permute.xlu0 %3376
        %3378 = vrot.lane.b32.xlu0 %v3317, 124
        %v3379 = vpop.permute.xlu0 %3378
        %3380 = vrot.lane.b32.xlu0 %v3319, 124
        %v3381 = vpop.permute.xlu0 %3380
        %3382 = vrot.lane.b32.xlu0 %v3321, 124
        %v3383 = vpop.permute.xlu0 %3382
        %3384 = vrot.lane.b32.xlu0 %v3323, 124
        %v3385 = vpop.permute.xlu0 %3384
        %3386 = vrot.lane.b32.xlu0 %v3325, 124
        %v3387 = vpop.permute.xlu0 %3386
        %3388 = vrot.lane.b32.xlu0 %v3327, 124
        %v3389 = vpop.permute.xlu0 %3388
        %3390 = vrot.lane.b32.xlu0 %v3329, 124
        %v3391 = vpop.permute.xlu0 %3390
        %3392 = vrot.lane.b32.xlu0 %v3331, 124
        %v3393 = vpop.permute.xlu0 %3392
        %3394 = vrot.lane.b32.xlu0 %v3333, 124
        %v3395 = vpop.permute.xlu0 %3394
        %3396 = vrot.lane.b32.xlu0 %v3335, 124
        %v3397 = vpop.permute.xlu0 %3396
        %3398 = vrot.lane.b32.xlu0 %v3337, 124
        %v3399 = vpop.permute.xlu0 %3398
        %3400 = vrot.lane.b32.xlu0 %v3339, 124
        %v3401 = vpop.permute.xlu0 %3400
        %3402 = vrot.lane.b32.xlu0 %v3341, 124
        %v3403 = vpop.permute.xlu0 %3402
        %3404 = vrot.lane.b32.xlu0 %v3343, 124
        %v3405 = vpop.permute.xlu0 %3404
        %3406 = vrot.lane.b32.xlu0 %v3345, 124
        %v3407 = vpop.permute.xlu0 %3406
        %3439 = vrot.lane.b32.xlu0 %v2911, 80
        %v3440 = vpop.permute.xlu0 %3439
        %3441 = vrot.lane.b32.xlu0 %v2912, 80
        %v3442 = vpop.permute.xlu0 %3441
        %3443 = vrot.lane.b32.xlu0 %v2913, 80
        %v3444 = vpop.permute.xlu0 %3443
        %3445 = vrot.lane.b32.xlu0 %v2914, 80
        %v3446 = vpop.permute.xlu0 %3445
        %3447 = vrot.lane.b32.xlu0 %v2915, 80
        %v3448 = vpop.permute.xlu0 %3447
        %3449 = vrot.lane.b32.xlu0 %v2916, 80
        %v3450 = vpop.permute.xlu0 %3449
        %3451 = vrot.lane.b32.xlu0 %v2917, 80
        %v3452 = vpop.permute.xlu0 %3451
        %3453 = vrot.lane.b32.xlu0 %v2918, 80
        %v3454 = vpop.permute.xlu0 %3453
        %3455 = vrot.lane.b32.xlu0 %v2919, 80
        %v3456 = vpop.permute.xlu0 %3455
        %3457 = vrot.lane.b32.xlu0 %v2920, 80
        %v3458 = vpop.permute.xlu0 %3457
        %3459 = vrot.lane.b32.xlu0 %v2921, 80
        %v3460 = vpop.permute.xlu0 %3459
        %3461 = vrot.lane.b32.xlu0 %v2922, 80
        %v3462 = vpop.permute.xlu0 %3461
        %3463 = vrot.lane.b32.xlu0 %v2923, 80
        %v3464 = vpop.permute.xlu0 %3463
        %3465 = vrot.lane.b32.xlu0 %v2924, 80
        %v3466 = vpop.permute.xlu0 %3465
        %3467 = vrot.lane.b32.xlu0 %v2925, 80
        %v3468 = vpop.permute.xlu0 %3467
        %3469 = vrot.lane.b32.xlu0 %v2926, 80
        %v3470 = vpop.permute.xlu0 %3469
        %3471 = vrot.lane.b32.xlu0 %v2927, 80
        %v3472 = vpop.permute.xlu0 %3471
        %3473 = vrot.lane.b32.xlu0 %v2928, 80
        %v3474 = vpop.permute.xlu0 %3473
        %3475 = vrot.lane.b32.xlu0 %v2929, 80
        %v3476 = vpop.permute.xlu0 %3475
        %3477 = vrot.lane.b32.xlu0 %v2930, 80
        %v3478 = vpop.permute.xlu0 %3477
        %3479 = vrot.lane.b32.xlu0 %v2931, 80
        %v3480 = vpop.permute.xlu0 %3479
        %3481 = vrot.lane.b32.xlu0 %v2932, 80
        %v3482 = vpop.permute.xlu0 %3481
        %3483 = vrot.lane.b32.xlu0 %v2933, 80
        %v3484 = vpop.permute.xlu0 %3483
        %3485 = vrot.lane.b32.xlu0 %v2934, 80
        %v3486 = vpop.permute.xlu0 %3485
        %3487 = vrot.lane.b32.xlu0 %v2935, 80
        %v3488 = vpop.permute.xlu0 %3487
        %3489 = vrot.lane.b32.xlu0 %v2936, 80
        %v3490 = vpop.permute.xlu0 %3489
        %3491 = vrot.lane.b32.xlu0 %v2937, 80
        %v3492 = vpop.permute.xlu0 %3491
        %3493 = vrot.lane.b32.xlu0 %v2938, 80
        %v3494 = vpop.permute.xlu0 %3493
        %3495 = vrot.lane.b32.xlu0 %v2939, 80
        %v3496 = vpop.permute.xlu0 %3495
        %3497 = vrot.lane.b32.xlu0 %v2940, 80
        %v3498 = vpop.permute.xlu0 %3497
        %3499 = vrot.lane.b32.xlu0 %v2941, 80
        %v3500 = vpop.permute.xlu0 %3499
        %vm3532 = vcmask 687104
        %v3533 = vsel %vm3532, %v2910, %v3035
        %v3534 = vsel %vm3532, %v2911, %v3037
        %v3535 = vsel %vm3532, %v2912, %v3039
        %v3536 = vsel %vm3532, %v2913, %v3041
        %v3537 = vsel %vm3532, %v2914, %v3043
        %v3538 = vsel %vm3532, %v2915, %v3045
        %v3539 = vsel %vm3532, %v2916, %v3047
        %v3540 = vsel %vm3532, %v2917, %v3049
        %v3541 = vsel %vm3532, %v2918, %v3051
        %v3542 = vsel %vm3532, %v2919, %v3053
        %v3543 = vsel %vm3532, %v2920, %v3055
        %v3544 = vsel %vm3532, %v2921, %v3057
        %v3545 = vsel %vm3532, %v2922, %v3059
        %v3546 = vsel %vm3532, %v2923, %v3061
        %v3547 = vsel %vm3532, %v2924, %v3063
        %v3548 = vsel %vm3532, %v2925, %v3065
        %v3549 = vsel %vm3532, %v2926, %v3067
        %v3550 = vsel %vm3532, %v2927, %v3069
        %v3551 = vsel %vm3532, %v2928, %v3071
        %v3552 = vsel %vm3532, %v2929, %v3073
        %v3553 = vsel %vm3532, %v2930, %v3075
        %v3554 = vsel %vm3532, %v2931, %v3077
        %v3555 = vsel %vm3532, %v2932, %v3079
        %v3556 = vsel %vm3532, %v2933, %v3081
        %v3557 = vsel %vm3532, %v2934, %v3083
        %v3558 = vsel %vm3532, %v2935, %v3085
        %v3559 = vsel %vm3532, %v2936, %v3087
        %v3560 = vsel %vm3532, %v2937, %v3089
        %v3561 = vsel %vm3532, %v2938, %v3091
        %v3562 = vsel %vm3532, %v2939, %v3093
        %v3563 = vsel %vm3532, %v2940, %v3095
        %v3564 = vsel %vm2342, %v3035, %v3189
        %v3565 = vsel %vm2342, %v3037, %v3191
        %v3566 = vsel %vm2342, %v3039, %v3193
        %v3567 = vsel %vm2342, %v3041, %v3195
        %v3568 = vsel %vm2342, %v3043, %v3197
        %v3569 = vsel %vm2342, %v3045, %v3199
        %v3570 = vsel %vm2342, %v3047, %v3201
        %v3571 = vsel %vm2342, %v3049, %v3203
        %v3572 = vsel %vm2342, %v3051, %v3205
        %v3573 = vsel %vm2342, %v3053, %v3207
        %v3574 = vsel %vm2342, %v3055, %v3209
        %v3575 = vsel %vm2342, %v3057, %v3211
        %v3576 = vsel %vm2342, %v3059, %v3213
        %v3577 = vsel %vm2342, %v3061, %v3215
        %v3578 = vsel %vm2342, %v3063, %v3217
        %v3579 = vsel %vm2342, %v3065, %v3219
        %v3580 = vsel %vm2342, %v3067, %v3221
        %v3581 = vsel %vm2342, %v3069, %v3223
        %v3582 = vsel %vm2342, %v3071, %v3225
        %v3583 = vsel %vm2342, %v3073, %v3227
        %v3584 = vsel %vm2342, %v3075, %v3229
        %v3585 = vsel %vm2342, %v3077, %v3231
        %v3586 = vsel %vm2342, %v3079, %v3233
        %v3587 = vsel %vm2342, %v3081, %v3235
        %v3588 = vsel %vm2342, %v3083, %v3237
        %v3589 = vsel %vm2342, %v3085, %v3239
        %v3590 = vsel %vm2342, %v3087, %v3241
        %v3591 = vsel %vm2342, %v3089, %v3243
        %v3592 = vsel %vm2342, %v3091, %v3245
        %v3593 = vsel %vm2342, %v3093, %v3247
        %v3594 = vsel %vm2342, %v3095, %v3249
        %vm3595 = vcmask 1014784
        %v3596 = vsel %vm3595, %v3564, %v3347
        %v3597 = vsel %vm3595, %v3565, %v3349
        %v3598 = vsel %vm3595, %v3566, %v3351
        %v3599 = vsel %vm3595, %v3567, %v3353
        %v3600 = vsel %vm3595, %v3568, %v3355
        %v3601 = vsel %vm3595, %v3569, %v3357
        %v3602 = vsel %vm3595, %v3570, %v3359
        %v3603 = vsel %vm3595, %v3571, %v3361
        %v3604 = vsel %vm3595, %v3572, %v3363
        %v3605 = vsel %vm3595, %v3573, %v3365
        %v3606 = vsel %vm3595, %v3574, %v3367
        %v3607 = vsel %vm3595, %v3575, %v3369
        %v3608 = vsel %vm3595, %v3576, %v3371
        %v3609 = vsel %vm3595, %v3577, %v3373
        %v3610 = vsel %vm3595, %v3578, %v3375
        %v3611 = vsel %vm3595, %v3579, %v3377
        %v3612 = vsel %vm3595, %v3580, %v3379
        %v3613 = vsel %vm3595, %v3581, %v3381
        %v3614 = vsel %vm3595, %v3582, %v3383
        %v3615 = vsel %vm3595, %v3583, %v3385
        %v3616 = vsel %vm3595, %v3584, %v3387
        %v3617 = vsel %vm3595, %v3585, %v3389
        %v3618 = vsel %vm3595, %v3586, %v3391
        %v3619 = vsel %vm3595, %v3587, %v3393
        %v3620 = vsel %vm3595, %v3588, %v3395
        %v3621 = vsel %vm3595, %v3589, %v3397
        %v3622 = vsel %vm3595, %v3590, %v3399
        %v3623 = vsel %vm3595, %v3591, %v3401
        %v3624 = vsel %vm3595, %v3592, %v3403
        %v3625 = vsel %vm3595, %v3593, %v3405
        %v3626 = vsel %vm3595, %v3594, %v3407
        %vm3627 = vcmask 654336
        %v3628 = vsel %vm3627, %v3347, %v3440
        %v3629 = vsel %vm3627, %v3349, %v3442
        %v3630 = vsel %vm3627, %v3351, %v3444
        %v3631 = vsel %vm3627, %v3353, %v3446
        %v3632 = vsel %vm3627, %v3355, %v3448
        %v3633 = vsel %vm3627, %v3357, %v3450
        %v3634 = vsel %vm3627, %v3359, %v3452
        %v3635 = vsel %vm3627, %v3361, %v3454
        %v3636 = vsel %vm3627, %v3363, %v3456
        %v3637 = vsel %vm3627, %v3365, %v3458
        %v3638 = vsel %vm3627, %v3367, %v3460
        %v3639 = vsel %vm3627, %v3369, %v3462
        %v3640 = vsel %vm3627, %v3371, %v3464
        %v3641 = vsel %vm3627, %v3373, %v3466
        %v3642 = vsel %vm3627, %v3375, %v3468
        %v3643 = vsel %vm3627, %v3377, %v3470
        %v3644 = vsel %vm3627, %v3379, %v3472
        %v3645 = vsel %vm3627, %v3381, %v3474
        %v3646 = vsel %vm3627, %v3383, %v3476
        %v3647 = vsel %vm3627, %v3385, %v3478
        %v3648 = vsel %vm3627, %v3387, %v3480
        %v3649 = vsel %vm3627, %v3389, %v3482
        %v3650 = vsel %vm3627, %v3391, %v3484
        %v3651 = vsel %vm3627, %v3393, %v3486
        %v3652 = vsel %vm3627, %v3395, %v3488
        %v3653 = vsel %vm3627, %v3397, %v3490
        %v3654 = vsel %vm3627, %v3399, %v3492
        %v3655 = vsel %vm3627, %v3401, %v3494
        %v3656 = vsel %vm3627, %v3403, %v3496
        %v3657 = vsel %vm3627, %v3405, %v3498
        %v3658 = vsel %vm3627, %v3407, %v3500
        %v3659 = vld [vmem:[%s5] sm:$0xff]
        %v3660 = vld [vmem:[%s5 + $0x8] sm:$0xff]
        %v3661 = vld [vmem:[%s5 + $0x10] sm:$0xff]
        %v3662 = vld [vmem:[%s5 + $0x18] sm:$0xff]
        %v3663 = vld [vmem:[%s5 + $0x20] sm:$0xff]
        %v3664 = vld [vmem:[%s5 + $0x28] sm:$0xff]
        %v3665 = vld [vmem:[%s5 + $0x30] sm:$0xff]
        %v3666 = vld [vmem:[%s5 + $0x38] sm:$0xff]
        %v3667 = vld [vmem:[%s5 + $0x40] sm:$0xff]
        %v3668 = vld [vmem:[%s5 + $0x48] sm:$0xff]
        %v3669 = vld [vmem:[%s5 + $0x50] sm:$0xff]
        %v3670 = vld [vmem:[%s5 + $0x58] sm:$0xff]
        %v3671 = vld [vmem:[%s5 + $0x60] sm:$0xff]
        %v3672 = vld [vmem:[%s5 + $0x68] sm:$0xff]
        %v3673 = vld [vmem:[%s5 + $0x70] sm:$0xff]
        %v3674 = vld [vmem:[%s5 + $0x78] sm:$0xff]
        %v3675 = vld [vmem:[%s5 + $0x80] sm:$0xff]
        %v3676 = vld [vmem:[%s5 + $0x88] sm:$0xff]
        %v3677 = vld [vmem:[%s5 + $0x90] sm:$0xff]
        %v3678 = vld [vmem:[%s5 + $0x98] sm:$0xff]
        %v3679 = vld [vmem:[%s5 + $0xa0] sm:$0xff]
        %v3680 = vld [vmem:[%s5 + $0xa8] sm:$0xff]
        %v3681 = vld [vmem:[%s5 + $0xb0] sm:$0xff]
        %v3682 = vld [vmem:[%s5 + $0xb8] sm:$0xff]
        %v3683 = vld [vmem:[%s5 + $0xc0] sm:$0xff]
        %v3684 = vld [vmem:[%s5 + $0xc8] sm:$0xff]
        %v3685 = vld [vmem:[%s5 + $0xd0] sm:$0xff]
        %v3686 = vld [vmem:[%s5 + $0xd8] sm:$0xff]
        %v3687 = vld [vmem:[%s5 + $0xe0] sm:$0xff]
        %v3688 = vld [vmem:[%s5 + $0xe8] sm:$0xff]
        %v3689 = vld [vmem:[%s5 + $0xf0] sm:$0xff]
        %v3690 = vld [vmem:[%s5 + $0xf8] sm:$0xff]
        %v3691 = vld [vmem:[%s5 + $0x100] sm:$0xff]
        %v3692 = vld [vmem:[%s5 + $0x108] sm:$0xff]
        %v3693 = vld [vmem:[%s5 + $0x110] sm:$0xff]
        %v3694 = vld [vmem:[%s5 + $0x118] sm:$0xff]
        %v3695 = vld [vmem:[%s5 + $0x120] sm:$0xff]
        %v3696 = vld [vmem:[%s5 + $0x128] sm:$0xff]
        %v3697 = vld [vmem:[%s5 + $0x130] sm:$0xff]
        %v3698 = vld [vmem:[%s5 + $0x138] sm:$0xff]
        %v3699 = vld [vmem:[%s5 + $0x140] sm:$0xff]
        %v3700 = vld [vmem:[%s5 + $0x148] sm:$0xff]
        %v3701 = vld [vmem:[%s5 + $0x150] sm:$0xff]
        %v3702 = vld [vmem:[%s5 + $0x158] sm:$0xff]
        %v3703 = vld [vmem:[%s5 + $0x160] sm:$0xff]
        %v3704 = vld [vmem:[%s5 + $0x168] sm:$0xff]
        %v3705 = vld [vmem:[%s5 + $0x170] sm:$0xff]
        %v3706 = vld [vmem:[%s5 + $0x178] sm:$0xff]
        %v3707 = vld [vmem:[%s5 + $0x180] sm:$0xff]
        %v3708 = vld [vmem:[%s5 + $0x188] sm:$0xff]
        %v3709 = vld [vmem:[%s5 + $0x190] sm:$0xff]
        %v3710 = vld [vmem:[%s5 + $0x198] sm:$0xff]
        %v3711 = vld [vmem:[%s5 + $0x1a0] sm:$0xff]
        %v3712 = vld [vmem:[%s5 + $0x1a8] sm:$0xff]
        %v3713 = vld [vmem:[%s5 + $0x1b0] sm:$0xff]
        %v3714 = vld [vmem:[%s5 + $0x1b8] sm:$0xff]
        %v3715 = vld [vmem:[%s5 + $0x1c0] sm:$0xff]
        %v3716 = vld [vmem:[%s5 + $0x1c8] sm:$0xff]
        %v3717 = vld [vmem:[%s5 + $0x1d0] sm:$0xff]
        %v3718 = vld [vmem:[%s5 + $0x1d8] sm:$0xff]
        %v3719 = vld [vmem:[%s5 + $0x1e0] sm:$0xff]
        %v3720 = vld [vmem:[%s5 + $0x1e8] sm:$0xff]
        %v3721 = vld [vmem:[%s5 + $0x1f0] sm:$0xff]
        %v3722 = vld [vmem:[%s5 + $0x1f8] sm:$0xff]
        %v3723 = vld [vmem:[%s5 + $0x200] sm:$0xff]
        %v3724 = vld [vmem:[%s5 + $0x208] sm:$0xff]
        %v3725 = vld [vmem:[%s5 + $0x210] sm:$0xff]
        %v3726 = vld [vmem:[%s5 + $0x218] sm:$0xff]
        %v3727 = vld [vmem:[%s5 + $0x220] sm:$0xff]
        %v3728 = vld [vmem:[%s5 + $0x228] sm:$0xff]
        %v3729 = vld [vmem:[%s5 + $0x230] sm:$0xff]
        %v3730 = vld [vmem:[%s5 + $0x238] sm:$0xff]
        %v3731 = vld [vmem:[%s5 + $0x240] sm:$0xff]
        %v3732 = vld [vmem:[%s5 + $0x248] sm:$0xff]
        %v3733 = vld [vmem:[%s5 + $0x250] sm:$0xff]
        %v3734 = vld [vmem:[%s5 + $0x258] sm:$0xff]
        %v3735 = vld [vmem:[%s5 + $0x260] sm:$0xff]
        %v3736 = vld [vmem:[%s5 + $0x268] sm:$0xff]
        %v3737 = vld [vmem:[%s5 + $0x270] sm:$0xff]
        %v3738 = vld [vmem:[%s5 + $0x278] sm:$0xff]
        %v3739 = vld [vmem:[%s5 + $0x280] sm:$0xff]
        %v3740 = vld [vmem:[%s5 + $0x288] sm:$0xff]
        %v3741 = vld [vmem:[%s5 + $0x290] sm:$0xff]
        %v3742 = vld [vmem:[%s5 + $0x298] sm:$0xff]
        %v3743 = vld [vmem:[%s5 + $0x2a0] sm:$0xff]
        %v3744 = vld [vmem:[%s5 + $0x2a8] sm:$0xff]
        %v3745 = vld [vmem:[%s5 + $0x2b0] sm:$0xff]
        %v3746 = vld [vmem:[%s5 + $0x2b8] sm:$0xff]
        %v3747 = vld [vmem:[%s5 + $0x2c0] sm:$0xff]
        %v3748 = vld [vmem:[%s5 + $0x2c8] sm:$0xff]
        %v3749 = vld [vmem:[%s5 + $0x2d0] sm:$0xff]
        %v3750 = vld [vmem:[%s5 + $0x2d8] sm:$0xff]
        %v3751 = vld [vmem:[%s5 + $0x2e0] sm:$0xff]
        %v3752 = vld [vmem:[%s5 + $0x2e8] sm:$0xff]
        %v3753 = vld [vmem:[%s5 + $0x2f0] sm:$0xff]
        %v3754 = vld [vmem:[%s5 + $0x2f8] sm:$0xff]
        %v3755 = vld [vmem:[%s5 + $0x300] sm:$0xff]
        %v3756 = vld [vmem:[%s5 + $0x308] sm:$0xff]
        %v3757 = vld [vmem:[%s5 + $0x310] sm:$0xff]
        %v3758 = vld [vmem:[%s5 + $0x318] sm:$0xff]
        %v3759 = vld [vmem:[%s5 + $0x320] sm:$0xff]
        %v3760 = vld [vmem:[%s5 + $0x328] sm:$0xff]
        %v3761 = vld [vmem:[%s5 + $0x330] sm:$0xff]
        %v3762 = vld [vmem:[%s5 + $0x338] sm:$0xff]
        %v3763 = vld [vmem:[%s5 + $0x340] sm:$0xf]
        %v3764 = vld [vmem:[%s5 + $0x348] sm:$0xf]
        %v3765 = vld [vmem:[%s6] sm:$0x3]
        %v3767 = vlaneseq
        %v3768 = vshrl.u32 %v3767, 7
        %v3769 = vsub.s32 0, %v3768
        %v3770 = vrot.slane %v3765, %v3769
        %v3771 = vlaneseq
        %v3772 = vshrl.u32 %v3771, 7
        %v3773 = vsub.s32 1, %v3772
        %v3774 = vrot.slane %v3765, %v3773
        %vm3777 = vcmask 293888
        %v3778 = vsel %vm3777, %v3440, 0
        %v3780 = vsel %vm3777, %v3442, 0
        %v3782 = vsel %vm3777, %v3444, 0
        %v3784 = vsel %vm3777, %v3446, 0
        %v3786 = vsel %vm3777, %v3448, 0
        %v3788 = vsel %vm3777, %v3450, 0
        %v3790 = vsel %vm3777, %v3452, 0
        %v3792 = vsel %vm3777, %v3454, 0
        %v3794 = vsel %vm3777, %v3456, 0
        %v3796 = vsel %vm3777, %v3458, 0
        %v3798 = vsel %vm3777, %v3460, 0
        %v3800 = vsel %vm3777, %v3462, 0
        %v3802 = vsel %vm3777, %v3464, 0
        %v3804 = vsel %vm3777, %v3466, 0
        %v3806 = vsel %vm3777, %v3468, 0
        %v3808 = vsel %vm3777, %v3470, 0
        %v3810 = vsel %vm3777, %v3472, 0
        %v3812 = vsel %vm3777, %v3474, 0
        %v3814 = vsel %vm3777, %v3476, 0
        %v3816 = vsel %vm3777, %v3478, 0
        %v3818 = vsel %vm3777, %v3480, 0
        %v3820 = vsel %vm3777, %v3482, 0
        %v3822 = vsel %vm3777, %v3484, 0
        %v3824 = vsel %vm3777, %v3486, 0
        %v3826 = vsel %vm3777, %v3488, 0
        %v3828 = vsel %vm3777, %v3490, 0
        %v3830 = vsel %vm3777, %v3492, 0
        %v3832 = vsel %vm3777, %v3494, 0
        %v3834 = vsel %vm3777, %v3496, 0
        %v3836 = vsel %vm3777, %v3498, 0
        %v3838 = vsel %vm3777, %v3500, 0
        %v3841 = vsel %vm1066, %v3763, 0
        %v3844 = vsel %vm1066, %v3764, 0
        %3846 = vmatprep.subr.mxu0 %v3660
        %3847 = vmatpush1.msra.mxu0 %v3659
        %3848 = vmatprep.subr.mxu0 %v3662
        %3849 = vmatpush1.msra.mxu0 %v3661
        %3850 = vmatprep.subr.mxu0 %v3664
        %3851 = vmatpush1.msra.mxu0 %v3663
        %3852 = vmatprep.subr.mxu0 %v3666
        %3853 = vmatpush1.msra.mxu0 %v3665
        %3854 = vmatprep.subr.mxu0 %v3668
        %3855 = vmatpush1.msra.mxu0 %v3667
        %3856 = vmatprep.subr.mxu0 %v3670
        %3857 = vmatpush1.msra.mxu0 %v3669
        %3858 = vmatprep.subr.mxu0 %v3672
        %3859 = vmatpush1.msra.mxu0 %v3671
        %3860 = vmatprep.subr.mxu0 %v3674
        %3861 = vmatpush1.msra.mxu0 %v3673
        %3862 = vmatprep.subr.mxu0 %v3676
        %3863 = vmatpush1.msra.mxu0 %v3675
        %3864 = vmatprep.subr.mxu0 %v3678
        %3865 = vmatpush1.msra.mxu0 %v3677
        %3866 = vmatprep.subr.mxu0 %v3680
        %3867 = vmatpush1.msra.mxu0 %v3679
        %3868 = vmatprep.subr.mxu0 %v3682
        %3869 = vmatpush1.msra.mxu0 %v3681
        %3870 = vmatprep.subr.mxu0 %v3684
        %3871 = vmatpush1.msra.mxu0 %v3683
        %3872 = vmatprep.subr.mxu0 %v3686
        %3873 = vmatpush1.msra.mxu0 %v3685
        %3874 = vmatprep.subr.mxu0 %v3688
        %3875 = vmatpush1.msra.mxu0 %v3687
        %3876 = vmatprep.subr.mxu0 %v3690
        %3877 = vmatpush1.msra.mxu0 %v3689
        %3878 = vmatprep.subr.mxu0 %v3692
        %3879 = vmatpush1.msra.mxu0 %v3691
        %3880 = vmatprep.subr.mxu0 %v3694
        %3881 = vmatpush1.msra.mxu0 %v3693
        %3882 = vmatprep.subr.mxu0 %v3696
        %3883 = vmatpush1.msra.mxu0 %v3695
        %3884 = vmatprep.subr.mxu0 %v3698
        %3885 = vmatpush1.msra.mxu0 %v3697
        %3886 = vmatprep.subr.mxu0 %v3700
        %3887 = vmatpush1.msra.mxu0 %v3699
        %3888 = vmatprep.subr.mxu0 %v3702
        %3889 = vmatpush1.msra.mxu0 %v3701
        %3890 = vmatprep.subr.mxu0 %v3704
        %3891 = vmatpush1.msra.mxu0 %v3703
        %3892 = vmatprep.subr.mxu0 %v3706
        %3893 = vmatpush1.msra.mxu0 %v3705
        %3894 = vmatprep.subr.mxu0 %v3708
        %3895 = vmatpush1.msra.mxu0 %v3707
        %3896 = vmatprep.subr.mxu0 %v3710
        %3897 = vmatpush1.msra.mxu0 %v3709
        %3898 = vmatprep.subr.mxu0 %v3712
        %3899 = vmatpush1.msra.mxu0 %v3711
        %3900 = vmatprep.subr.mxu0 %v3714
        %3901 = vmatpush1.msra.mxu0 %v3713
        %3902 = vmatprep.subr.mxu0 %v3716
        %3903 = vmatpush1.msra.mxu0 %v3715
        %3904 = vmatprep.subr.mxu0 %v3718
        %3905 = vmatpush1.msra.mxu0 %v3717
        %3906 = vmatprep.subr.mxu0 %v3720
        %3907 = vmatpush1.msra.mxu0 %v3719
        %3908 = vmatprep.subr.mxu0 %v3722
        %3909 = vmatpush1.msra.mxu0 %v3721
        %3910 = vmatprep.mubr.f32.mxu0 %v3596
        %3911 = vmatmul.mubr.f32.gmra.mrb[0].mxu0 %v3533
        %v3912 = vpop.f32.mrb[0].mxu0
        %v3913 = vadd.f32 %v3770, %v3912
        %v3914 = vpop.f32.mrb[0].mxu0
        %v3915 = vadd.f32 %v3774, %v3914
        %3916 = vmatprep.mubr.f32.mxu0 %v3597
        %3917 = vmatmul.mubr.f32.gmra.mrb[0].mxu0 %v3534
        %v3918 = vpop.f32.mrb[0].mxu0
        %v3919 = vadd.f32 %v3770, %v3918
        %v3920 = vpop.f32.mrb[0].mxu0
        %v3921 = vadd.f32 %v3774, %v3920
        %3922 = vmatprep.mubr.f32.mxu0 %v3598
        %3923 = vmatmul.mubr.f32.gmra.mrb[0].mxu0 %v3535
        %v3924 = vpop.f32.mrb[0].mxu0
        %v3925 = vadd.f32 %v3770, %v3924
        %v3926 = vpop.f32.mrb[0].mxu0
        %v3927 = vadd.f32 %v3774, %v3926
        %3928 = vmatprep.mubr.f32.mxu0 %v3599
        %3929 = vmatmul.mubr.f32.gmra.mrb[0].mxu0 %v3536
        %v3930 = vpop.f32.mrb[0].mxu0
        %v3931 = vadd.f32 %v3770, %v3930
        %v3932 = vpop.f32.mrb[0].mxu0
        %v3933 = vadd.f32 %v3774, %v3932
        %3934 = vmatprep.mubr.f32.mxu0 %v3600
        %3935 = vmatmul.mubr.f32.gmra.mrb[0].mxu0 %v3537
        %v3936 = vpop.f32.mrb[0].mxu0
        %v3937 = vadd.f32 %v3770, %v3936
        %v3938 = vpop.f32.mrb[0].mxu0
        %v3939 = vadd.f32 %v3774, %v3938
        %3940 = vmatprep.mubr.f32.mxu0 %v3601
        %3941 = vmatmul.mubr.f32.gmra.mrb[0].mxu0 %v3538
        %v3942 = vpop.f32.mrb[0].mxu0
        %v3943 = vadd.f32 %v3770, %v3942
        %v3944 = vpop.f32.mrb[0].mxu0
        %v3945 = vadd.f32 %v3774, %v3944
        %3946 = vmatprep.mubr.f32.mxu0 %v3602
        %3947 = vmatmul.mubr.f32.gmra.mrb[0].mxu0 %v3539
        %v3948 = vpop.f32.mrb[0].mxu0
        %v3949 = vadd.f32 %v3770, %v3948
        %v3950 = vpop.f32.mrb[0].mxu0
        %v3951 = vadd.f32 %v3774, %v3950
        %3952 = vmatprep.mubr.f32.mxu0 %v3603
        %3953 = vmatmul.mubr.f32.gmra.mrb[0].mxu0 %v3540
        %v3954 = vpop.f32.mrb[0].mxu0
        %v3955 = vadd.f32 %v3770, %v3954
        %v3956 = vpop.f32.mrb[0].mxu0
        %v3957 = vadd.f32 %v3774, %v3956
        %3958 = vmatprep.mubr.f32.mxu0 %v3604
        %3959 = vmatmul.mubr.f32.gmra.mrb[0].mxu0 %v3541
        %v3960 = vpop.f32.mrb[0].mxu0
        %v3961 = vadd.f32 %v3770, %v3960
        %v3962 = vpop.f32.mrb[0].mxu0
        %v3963 = vadd.f32 %v3774, %v3962
        %3964 = vmatprep.mubr.f32.mxu0 %v3605
        %3965 = vmatmul.mubr.f32.gmra.mrb[0].mxu0 %v3542
        %v3966 = vpop.f32.mrb[0].mxu0
        %v3967 = vadd.f32 %v3770, %v3966
        %v3968 = vpop.f32.mrb[0].mxu0
        %v3969 = vadd.f32 %v3774, %v3968
        %3970 = vmatprep.mubr.f32.mxu0 %v3606
        %3971 = vmatmul.mubr.f32.gmra.mrb[0].mxu0 %v3543
        %v3972 = vpop.f32.mrb[0].mxu0
        %v3973 = vadd.f32 %v3770, %v3972
        %v3974 = vpop.f32.mrb[0].mxu0
        %v3975 = vadd.f32 %v3774, %v3974
        %3976 = vmatprep.mubr.f32.mxu0 %v3607
        %3977 = vmatmul.mubr.f32.gmra.mrb[0].mxu0 %v3544
        %v3978 = vpop.f32.mrb[0].mxu0
        %v3979 = vadd.f32 %v3770, %v3978
        %v3980 = vpop.f32.mrb[0].mxu0
        %v3981 = vadd.f32 %v3774, %v3980
        %3982 = vmatprep.mubr.f32.mxu0 %v3608
        %3983 = vmatmul.mubr.f32.gmra.mrb[0].mxu0 %v3545
        %v3984 = vpop.f32.mrb[0].mxu0
        %v3985 = vadd.f32 %v3770, %v3984
        %v3986 = vpop.f32.mrb[0].mxu0
        %v3987 = vadd.f32 %v3774, %v3986
        %3988 = vmatprep.mubr.f32.mxu0 %v3609
        %3989 = vmatmul.mubr.f32.gmra.mrb[0].mxu0 %v3546
        %v3990 = vpop.f32.mrb[0].mxu0
        %v3991 = vadd.f32 %v3770, %v3990
        %v3992 = vpop.f32.mrb[0].mxu0
        %v3993 = vadd.f32 %v3774, %v3992
        %3994 = vmatprep.mubr.f32.mxu0 %v3610
        %3995 = vmatmul.mubr.f32.gmra.mrb[0].mxu0 %v3547
        %v3996 = vpop.f32.mrb[0].mxu0
        %v3997 = vadd.f32 %v3770, %v3996
        %v3998 = vpop.f32.mrb[0].mxu0
        %v3999 = vadd.f32 %v3774, %v3998
        %4000 = vmatprep.mubr.f32.mxu0 %v3611
        %4001 = vmatmul.mubr.f32.gmra.mrb[0].mxu0 %v3548
        %v4002 = vpop.f32.mrb[0].mxu0
        %v4003 = vadd.f32 %v3770, %v4002
        %v4004 = vpop.f32.mrb[0].mxu0
        %v4005 = vadd.f32 %v3774, %v4004
        %4006 = vmatprep.mubr.f32.mxu0 %v3612
        %4007 = vmatmul.mubr.f32.gmra.mrb[0].mxu0 %v3549
        %v4008 = vpop.f32.mrb[0].mxu0
        %v4009 = vadd.f32 %v3770, %v4008
        %v4010 = vpop.f32.mrb[0].mxu0
        %v4011 = vadd.f32 %v3774, %v4010
        %4012 = vmatprep.mubr.f32.mxu0 %v3613
        %4013 = vmatmul.mubr.f32.gmra.mrb[0].mxu0 %v3550
        %v4014 = vpop.f32.mrb[0].mxu0
        %v4015 = vadd.f32 %v3770, %v4014
        %v4016 = vpop.f32.mrb[0].mxu0
        %v4017 = vadd.f32 %v3774, %v4016
        %4018 = vmatprep.mubr.f32.mxu0 %v3614
        %4019 = vmatmul.mubr.f32.gmra.mrb[0].mxu0 %v3551
        %v4020 = vpop.f32.mrb[0].mxu0
        %v4021 = vadd.f32 %v3770, %v4020
        %v4022 = vpop.f32.mrb[0].mxu0
        %v4023 = vadd.f32 %v3774, %v4022
        %4024 = vmatprep.mubr.f32.mxu0 %v3615
        %4025 = vmatmul.mubr.f32.gmra.mrb[0].mxu0 %v3552
        %v4026 = vpop.f32.mrb[0].mxu0
        %v4027 = vadd.f32 %v3770, %v4026
        %v4028 = vpop.f32.mrb[0].mxu0
        %v4029 = vadd.f32 %v3774, %v4028
        %4030 = vmatprep.mubr.f32.mxu0 %v3616
        %4031 = vmatmul.mubr.f32.gmra.mrb[0].mxu0 %v3553
        %v4032 = vpop.f32.mrb[0].mxu0
        %v4033 = vadd.f32 %v3770, %v4032
        %v4034 = vpop.f32.mrb[0].mxu0
        %v4035 = vadd.f32 %v3774, %v4034
        %4036 = vmatprep.mubr.f32.mxu0 %v3617
        %4037 = vmatmul.mubr.f32.gmra.mrb[0].mxu0 %v3554
        %v4038 = vpop.f32.mrb[0].mxu0
        %v4039 = vadd.f32 %v3770, %v4038
        %v4040 = vpop.f32.mrb[0].mxu0
        %v4041 = vadd.f32 %v3774, %v4040
        %4042 = vmatprep.mubr.f32.mxu0 %v3618
        %4043 = vmatmul.mubr.f32.gmra.mrb[0].mxu0 %v3555
        %v4044 = vpop.f32.mrb[0].mxu0
        %v4045 = vadd.f32 %v3770, %v4044
        %v4046 = vpop.f32.mrb[0].mxu0
        %v4047 = vadd.f32 %v3774, %v4046
        %4048 = vmatprep.mubr.f32.mxu0 %v3619
        %4049 = vmatmul.mubr.f32.gmra.mrb[0].mxu0 %v3556
        %v4050 = vpop.f32.mrb[0].mxu0
        %v4051 = vadd.f32 %v3770, %v4050
        %v4052 = vpop.f32.mrb[0].mxu0
        %v4053 = vadd.f32 %v3774, %v4052
        %4054 = vmatprep.mubr.f32.mxu0 %v3620
        %4055 = vmatmul.mubr.f32.gmra.mrb[0].mxu0 %v3557
        %v4056 = vpop.f32.mrb[0].mxu0
        %v4057 = vadd.f32 %v3770, %v4056
        %v4058 = vpop.f32.mrb[0].mxu0
        %v4059 = vadd.f32 %v3774, %v4058
        %4060 = vmatprep.mubr.f32.mxu0 %v3621
        %4061 = vmatmul.mubr.f32.gmra.mrb[0].mxu0 %v3558
        %v4062 = vpop.f32.mrb[0].mxu0
        %v4063 = vadd.f32 %v3770, %v4062
        %v4064 = vpop.f32.mrb[0].mxu0
        %v4065 = vadd.f32 %v3774, %v4064
        %4066 = vmatprep.mubr.f32.mxu0 %v3622
        %4067 = vmatmul.mubr.f32.gmra.mrb[0].mxu0 %v3559
        %v4068 = vpop.f32.mrb[0].mxu0
        %v4069 = vadd.f32 %v3770, %v4068
        %v4070 = vpop.f32.mrb[0].mxu0
        %v4071 = vadd.f32 %v3774, %v4070
        %4072 = vmatprep.mubr.f32.mxu0 %v3623
        %4073 = vmatmul.mubr.f32.gmra.mrb[0].mxu0 %v3560
        %v4074 = vpop.f32.mrb[0].mxu0
        %v4075 = vadd.f32 %v3770, %v4074
        %v4076 = vpop.f32.mrb[0].mxu0
        %v4077 = vadd.f32 %v3774, %v4076
        %4078 = vmatprep.mubr.f32.mxu0 %v3624
        %4079 = vmatmul.mubr.f32.gmra.mrb[0].mxu0 %v3561
        %v4080 = vpop.f32.mrb[0].mxu0
        %v4081 = vadd.f32 %v3770, %v4080
        %v4082 = vpop.f32.mrb[0].mxu0
        %v4083 = vadd.f32 %v3774, %v4082
        %4084 = vmatprep.mubr.f32.mxu0 %v3625
        %4085 = vmatmul.mubr.f32.gmra.mrb[0].mxu0 %v3562
        %v4086 = vpop.f32.mrb[0].mxu0
        %v4087 = vadd.f32 %v3770, %v4086
        %v4088 = vpop.f32.mrb[0].mxu0
        %v4089 = vadd.f32 %v3774, %v4088
        %4090 = vmatprep.mubr.f32.mxu0 %v3626
        %4091 = vmatmul.mubr.f32.gmra.mrb[0].mxu0 %v3563
        %v4092 = vpop.f32.mrb[0].mxu0
        %v4093 = vadd.f32 %v3770, %v4092
        %v4094 = vpop.f32.mrb[0].mxu0
        %v4095 = vadd.f32 %v3774, %v4094
        %4096 = vdwg.mxu0
        %4097 = vmatprep.subr.mxu0 %v3724
        %4098 = vmatpush1.msra.mxu0 %v3723
        %4099 = vmatprep.subr.mxu0 %v3726
        %4100 = vmatpush1.msra.mxu0 %v3725
        %4101 = vmatprep.subr.mxu0 %v3728
        %4102 = vmatpush1.msra.mxu0 %v3727
        %4103 = vmatprep.subr.mxu0 %v3730
        %4104 = vmatpush1.msra.mxu0 %v3729
        %4105 = vmatprep.subr.mxu0 %v3732
        %4106 = vmatpush1.msra.mxu0 %v3731
        %4107 = vmatprep.subr.mxu0 %v3734
        %4108 = vmatpush1.msra.mxu0 %v3733
        %4109 = vmatprep.subr.mxu0 %v3736
        %4110 = vmatpush1.msra.mxu0 %v3735
        %4111 = vmatprep.subr.mxu0 %v3738
        %4112 = vmatpush1.msra.mxu0 %v3737
        %4113 = vmatprep.subr.mxu0 %v3740
        %4114 = vmatpush1.msra.mxu0 %v3739
        %4115 = vmatprep.subr.mxu0 %v3742
        %4116 = vmatpush1.msra.mxu0 %v3741
        %4117 = vmatprep.subr.mxu0 %v3744
        %4118 = vmatpush1.msra.mxu0 %v3743
        %4119 = vmatprep.subr.mxu0 %v3746
        %4120 = vmatpush1.msra.mxu0 %v3745
        %4121 = vmatprep.subr.mxu0 %v3748
        %4122 = vmatpush1.msra.mxu0 %v3747
        %4123 = vmatprep.subr.mxu0 %v3750
        %4124 = vmatpush1.msra.mxu0 %v3749
        %4125 = vmatprep.subr.mxu0 %v3752
        %4126 = vmatpush1.msra.mxu0 %v3751
        %4127 = vmatprep.subr.mxu0 %v3754
        %4128 = vmatpush1.msra.mxu0 %v3753
        %4129 = vmatprep.subr.mxu0 %v3756
        %4130 = vmatpush1.msra.mxu0 %v3755
        %4131 = vmatprep.subr.mxu0 %v3758
        %4132 = vmatpush1.msra.mxu0 %v3757
        %4133 = vmatprep.subr.mxu0 %v3760
        %4134 = vmatpush1.msra.mxu0 %v3759
        %4135 = vmatprep.subr.mxu0 %v3762
        %4136 = vmatpush1.msra.mxu0 %v3761
        %4137 = vmatprep.subr.mxu0 %v3844
        %4138 = vmatpush1.msra.mxu0 %v3841
        %4139 = vmatprep.subr.mxu0 0.0
        %4140 = vmatpush1.msra.mxu0 0.0
        %4141 = vmatprep.subr.mxu0 0.0
        %4142 = vmatpush1.msra.mxu0 0.0
        %4143 = vmatprep.subr.mxu0 0.0
        %4144 = vmatpush1.msra.mxu0 0.0
        %4145 = vmatprep.subr.mxu0 0.0
        %4146 = vmatpush1.msra.mxu0 0.0
        %4147 = vmatprep.subr.mxu0 0.0
        %4148 = vmatpush1.msra.mxu0 0.0
        %4149 = vmatprep.subr.mxu0 0.0
        %4150 = vmatpush1.msra.mxu0 0.0
        %4151 = vmatprep.subr.mxu0 0.0
        %4152 = vmatpush1.msra.mxu0 0.0
        %4153 = vmatprep.subr.mxu0 0.0
        %4154 = vmatpush1.msra.mxu0 0.0
        %4155 = vmatprep.subr.mxu0 0.0
        %4156 = vmatpush1.msra.mxu0 0.0
        %4157 = vmatprep.subr.mxu0 0.0
        %4158 = vmatpush1.msra.mxu0 0.0
        %4159 = vmatprep.subr.mxu0 0.0
        %4160 = vmatpush1.msra.mxu0 0.0
        %4161 = vmatprep.mubr.f32.mxu0 %v3778
        %4162 = vmatmul.mubr.f32.gmra.mrb[0].mxu0 %v3628
        %v4163 = vpop.f32.mrb[0].mxu0
        %v4164 = vadd.f32 %v3913, %v4163
        %v4165 = vpop.f32.mrb[0].mxu0
        %v4166 = vadd.f32 %v3915, %v4165
        %4167 = vmatprep.mubr.f32.mxu0 %v3780
        %4168 = vmatmul.mubr.f32.gmra.mrb[0].mxu0 %v3629
        %v4169 = vpop.f32.mrb[0].mxu0
        %v4170 = vadd.f32 %v3919, %v4169
        %v4171 = vpop.f32.mrb[0].mxu0
        %v4172 = vadd.f32 %v3921, %v4171
        %4173 = vmatprep.mubr.f32.mxu0 %v3782
        %4174 = vmatmul.mubr.f32.gmra.mrb[0].mxu0 %v3630
        %v4175 = vpop.f32.mrb[0].mxu0
        %v4176 = vadd.f32 %v3925, %v4175
        %v4177 = vpop.f32.mrb[0].mxu0
        %v4178 = vadd.f32 %v3927, %v4177
        %4179 = vmatprep.mubr.f32.mxu0 %v3784
        %4180 = vmatmul.mubr.f32.gmra.mrb[0].mxu0 %v3631
        %v4181 = vpop.f32.mrb[0].mxu0
        %v4182 = vadd.f32 %v3931, %v4181
        %v4183 = vpop.f32.mrb[0].mxu0
        %v4184 = vadd.f32 %v3933, %v4183
        %4185 = vmatprep.mubr.f32.mxu0 %v3786
        %4186 = vmatmul.mubr.f32.gmra.mrb[0].mxu0 %v3632
        %v4187 = vpop.f32.mrb[0].mxu0
        %v4188 = vadd.f32 %v3937, %v4187
        %v4189 = vpop.f32.mrb[0].mxu0
        %v4190 = vadd.f32 %v3939, %v4189
        %4191 = vmatprep.mubr.f32.mxu0 %v3788
        %4192 = vmatmul.mubr.f32.gmra.mrb[0].mxu0 %v3633
        %v4193 = vpop.f32.mrb[0].mxu0
        %v4194 = vadd.f32 %v3943, %v4193
        %v4195 = vpop.f32.mrb[0].mxu0
        %v4196 = vadd.f32 %v3945, %v4195
        %4197 = vmatprep.mubr.f32.mxu0 %v3790
        %4198 = vmatmul.mubr.f32.gmra.mrb[0].mxu0 %v3634
        %v4199 = vpop.f32.mrb[0].mxu0
        %v4200 = vadd.f32 %v3949, %v4199
        %v4201 = vpop.f32.mrb[0].mxu0
        %v4202 = vadd.f32 %v3951, %v4201
        %4203 = vmatprep.mubr.f32.mxu0 %v3792
        %4204 = vmatmul.mubr.f32.gmra.mrb[0].mxu0 %v3635
        %v4205 = vpop.f32.mrb[0].mxu0
        %v4206 = vadd.f32 %v3955, %v4205
        %v4207 = vpop.f32.mrb[0].mxu0
        %v4208 = vadd.f32 %v3957, %v4207
        %4209 = vmatprep.mubr.f32.mxu0 %v3794
        %4210 = vmatmul.mubr.f32.gmra.mrb[0].mxu0 %v3636
        %v4211 = vpop.f32.mrb[0].mxu0
        %v4212 = vadd.f32 %v3961, %v4211
        %v4213 = vpop.f32.mrb[0].mxu0
        %v4214 = vadd.f32 %v3963, %v4213
        %4215 = vmatprep.mubr.f32.mxu0 %v3796
        %4216 = vmatmul.mubr.f32.gmra.mrb[0].mxu0 %v3637
        %v4217 = vpop.f32.mrb[0].mxu0
        %v4218 = vadd.f32 %v3967, %v4217
        %v4219 = vpop.f32.mrb[0].mxu0
        %v4220 = vadd.f32 %v3969, %v4219
        %4221 = vmatprep.mubr.f32.mxu0 %v3798
        %4222 = vmatmul.mubr.f32.gmra.mrb[0].mxu0 %v3638
        %v4223 = vpop.f32.mrb[0].mxu0
        %v4224 = vadd.f32 %v3973, %v4223
        %v4225 = vpop.f32.mrb[0].mxu0
        %v4226 = vadd.f32 %v3975, %v4225
        %4227 = vmatprep.mubr.f32.mxu0 %v3800
        %4228 = vmatmul.mubr.f32.gmra.mrb[0].mxu0 %v3639
        %v4229 = vpop.f32.mrb[0].mxu0
        %v4230 = vadd.f32 %v3979, %v4229
        %v4231 = vpop.f32.mrb[0].mxu0
        %v4232 = vadd.f32 %v3981, %v4231
        %4233 = vmatprep.mubr.f32.mxu0 %v3802
        %4234 = vmatmul.mubr.f32.gmra.mrb[0].mxu0 %v3640
        %v4235 = vpop.f32.mrb[0].mxu0
        %v4236 = vadd.f32 %v3985, %v4235
        %v4237 = vpop.f32.mrb[0].mxu0
        %v4238 = vadd.f32 %v3987, %v4237
        %4239 = vmatprep.mubr.f32.mxu0 %v3804
        %4240 = vmatmul.mubr.f32.gmra.mrb[0].mxu0 %v3641
        %v4241 = vpop.f32.mrb[0].mxu0
        %v4242 = vadd.f32 %v3991, %v4241
        %v4243 = vpop.f32.mrb[0].mxu0
        %v4244 = vadd.f32 %v3993, %v4243
        %4245 = vmatprep.mubr.f32.mxu0 %v3806
        %4246 = vmatmul.mubr.f32.gmra.mrb[0].mxu0 %v3642
        %v4247 = vpop.f32.mrb[0].mxu0
        %v4248 = vadd.f32 %v3997, %v4247
        %v4249 = vpop.f32.mrb[0].mxu0
        %v4250 = vadd.f32 %v3999, %v4249
        %4251 = vmatprep.mubr.f32.mxu0 %v3808
        %4252 = vmatmul.mubr.f32.gmra.mrb[0].mxu0 %v3643
        %v4253 = vpop.f32.mrb[0].mxu0
        %v4254 = vadd.f32 %v4003, %v4253
        %v4255 = vpop.f32.mrb[0].mxu0
        %v4256 = vadd.f32 %v4005, %v4255
        %4257 = vmatprep.mubr.f32.mxu0 %v3810
        %4258 = vmatmul.mubr.f32.gmra.mrb[0].mxu0 %v3644
        %v4259 = vpop.f32.mrb[0].mxu0
        %v4260 = vadd.f32 %v4009, %v4259
        %v4261 = vpop.f32.mrb[0].mxu0
        %v4262 = vadd.f32 %v4011, %v4261
        %4263 = vmatprep.mubr.f32.mxu0 %v3812
        %4264 = vmatmul.mubr.f32.gmra.mrb[0].mxu0 %v3645
        %v4265 = vpop.f32.mrb[0].mxu0
        %v4266 = vadd.f32 %v4015, %v4265
        %v4267 = vpop.f32.mrb[0].mxu0
        %v4268 = vadd.f32 %v4017, %v4267
        %4269 = vmatprep.mubr.f32.mxu0 %v3814
        %4270 = vmatmul.mubr.f32.gmra.mrb[0].mxu0 %v3646
        %v4271 = vpop.f32.mrb[0].mxu0
        %v4272 = vadd.f32 %v4021, %v4271
        %v4273 = vpop.f32.mrb[0].mxu0
        %v4274 = vadd.f32 %v4023, %v4273
        %4275 = vmatprep.mubr.f32.mxu0 %v3816
        %4276 = vmatmul.mubr.f32.gmra.mrb[0].mxu0 %v3647
        %v4277 = vpop.f32.mrb[0].mxu0
        %v4278 = vadd.f32 %v4027, %v4277
        %v4279 = vpop.f32.mrb[0].mxu0
        %v4280 = vadd.f32 %v4029, %v4279
        %4281 = vmatprep.mubr.f32.mxu0 %v3818
        %4282 = vmatmul.mubr.f32.gmra.mrb[0].mxu0 %v3648
        %v4283 = vpop.f32.mrb[0].mxu0
        %v4284 = vadd.f32 %v4033, %v4283
        %v4285 = vpop.f32.mrb[0].mxu0
        %v4286 = vadd.f32 %v4035, %v4285
        %4287 = vmatprep.mubr.f32.mxu0 %v3820
        %4288 = vmatmul.mubr.f32.gmra.mrb[0].mxu0 %v3649
        %v4289 = vpop.f32.mrb[0].mxu0
        %v4290 = vadd.f32 %v4039, %v4289
        %v4291 = vpop.f32.mrb[0].mxu0
        %v4292 = vadd.f32 %v4041, %v4291
        %4293 = vmatprep.mubr.f32.mxu0 %v3822
        %4294 = vmatmul.mubr.f32.gmra.mrb[0].mxu0 %v3650
        %v4295 = vpop.f32.mrb[0].mxu0
        %v4296 = vadd.f32 %v4045, %v4295
        %v4297 = vpop.f32.mrb[0].mxu0
        %v4298 = vadd.f32 %v4047, %v4297
        %4299 = vmatprep.mubr.f32.mxu0 %v3824
        %4300 = vmatmul.mubr.f32.gmra.mrb[0].mxu0 %v3651
        %v4301 = vpop.f32.mrb[0].mxu0
        %v4302 = vadd.f32 %v4051, %v4301
        %v4303 = vpop.f32.mrb[0].mxu0
        %v4304 = vadd.f32 %v4053, %v4303
        %4305 = vmatprep.mubr.f32.mxu0 %v3826
        %4306 = vmatmul.mubr.f32.gmra.mrb[0].mxu0 %v3652
        %v4307 = vpop.f32.mrb[0].mxu0
        %v4308 = vadd.f32 %v4057, %v4307
        %v4309 = vpop.f32.mrb[0].mxu0
        %v4310 = vadd.f32 %v4059, %v4309
        %4311 = vmatprep.mubr.f32.mxu0 %v3828
        %4312 = vmatmul.mubr.f32.gmra.mrb[0].mxu0 %v3653
        %v4313 = vpop.f32.mrb[0].mxu0
        %v4314 = vadd.f32 %v4063, %v4313
        %v4315 = vpop.f32.mrb[0].mxu0
        %v4316 = vadd.f32 %v4065, %v4315
        %4317 = vmatprep.mubr.f32.mxu0 %v3830
        %4318 = vmatmul.mubr.f32.gmra.mrb[0].mxu0 %v3654
        %v4319 = vpop.f32.mrb[0].mxu0
        %v4320 = vadd.f32 %v4069, %v4319
        %v4321 = vpop.f32.mrb[0].mxu0
        %v4322 = vadd.f32 %v4071, %v4321
        %4323 = vmatprep.mubr.f32.mxu0 %v3832
        %4324 = vmatmul.mubr.f32.gmra.mrb[0].mxu0 %v3655
        %v4325 = vpop.f32.mrb[0].mxu0
        %v4326 = vadd.f32 %v4075, %v4325
        %v4327 = vpop.f32.mrb[0].mxu0
        %v4328 = vadd.f32 %v4077, %v4327
        %4329 = vmatprep.mubr.f32.mxu0 %v3834
        %4330 = vmatmul.mubr.f32.gmra.mrb[0].mxu0 %v3656
        %v4331 = vpop.f32.mrb[0].mxu0
        %v4332 = vadd.f32 %v4081, %v4331
        %v4333 = vpop.f32.mrb[0].mxu0
        %v4334 = vadd.f32 %v4083, %v4333
        %4335 = vmatprep.mubr.f32.mxu0 %v3836
        %4336 = vmatmul.mubr.f32.gmra.mrb[0].mxu0 %v3657
        %v4337 = vpop.f32.mrb[0].mxu0
        %v4338 = vadd.f32 %v4087, %v4337
        %v4339 = vpop.f32.mrb[0].mxu0
        %v4340 = vadd.f32 %v4089, %v4339
        %4341 = vmatprep.mubr.f32.mxu0 %v3838
        %4342 = vmatmul.mubr.f32.gmra.mrb[0].mxu0 %v3658
        %v4343 = vpop.f32.mrb[0].mxu0
        %v4344 = vadd.f32 %v4093, %v4343
        %v4345 = vpop.f32.mrb[0].mxu0
        %v4346 = vadd.f32 %v4095, %v4345
        %4347 = vdwg.mxu0
        %v4348 = vmax.f32 %v4164, 0.0
        %v4349 = vmax.f32 %v4166, 0.0
        %v4350 = vmax.f32 %v4170, 0.0
        %v4351 = vmax.f32 %v4172, 0.0
        %v4352 = vmax.f32 %v4176, 0.0
        %v4353 = vmax.f32 %v4178, 0.0
        %v4354 = vmax.f32 %v4182, 0.0
        %v4355 = vmax.f32 %v4184, 0.0
        %v4356 = vmax.f32 %v4188, 0.0
        %v4357 = vmax.f32 %v4190, 0.0
        %v4358 = vmax.f32 %v4194, 0.0
        %v4359 = vmax.f32 %v4196, 0.0
        %v4360 = vmax.f32 %v4200, 0.0
        %v4361 = vmax.f32 %v4202, 0.0
        %v4362 = vmax.f32 %v4206, 0.0
        %v4363 = vmax.f32 %v4208, 0.0
        %v4364 = vmax.f32 %v4212, 0.0
        %v4365 = vmax.f32 %v4214, 0.0
        %v4366 = vmax.f32 %v4218, 0.0
        %v4367 = vmax.f32 %v4220, 0.0
        %v4368 = vmax.f32 %v4224, 0.0
        %v4369 = vmax.f32 %v4226, 0.0
        %v4370 = vmax.f32 %v4230, 0.0
        %v4371 = vmax.f32 %v4232, 0.0
        %v4372 = vmax.f32 %v4236, 0.0
        %v4373 = vmax.f32 %v4238, 0.0
        %v4374 = vmax.f32 %v4242, 0.0
        %v4375 = vmax.f32 %v4244, 0.0
        %v4376 = vmax.f32 %v4248, 0.0
        %v4377 = vmax.f32 %v4250, 0.0
        %v4378 = vmax.f32 %v4254, 0.0
        %v4379 = vmax.f32 %v4256, 0.0
        %v4380 = vmax.f32 %v4260, 0.0
        %v4381 = vmax.f32 %v4262, 0.0
        %v4382 = vmax.f32 %v4266, 0.0
        %v4383 = vmax.f32 %v4268, 0.0
        %v4384 = vmax.f32 %v4272, 0.0
        %v4385 = vmax.f32 %v4274, 0.0
        %v4386 = vmax.f32 %v4278, 0.0
        %v4387 = vmax.f32 %v4280, 0.0
        %v4388 = vmax.f32 %v4284, 0.0
        %v4389 = vmax.f32 %v4286, 0.0
        %v4390 = vmax.f32 %v4290, 0.0
        %v4391 = vmax.f32 %v4292, 0.0
        %v4392 = vmax.f32 %v4296, 0.0
        %v4393 = vmax.f32 %v4298, 0.0
        %v4394 = vmax.f32 %v4302, 0.0
        %v4395 = vmax.f32 %v4304, 0.0
        %v4396 = vmax.f32 %v4308, 0.0
        %v4397 = vmax.f32 %v4310, 0.0
        %v4398 = vmax.f32 %v4314, 0.0
        %v4399 = vmax.f32 %v4316, 0.0
        %v4400 = vmax.f32 %v4320, 0.0
        %v4401 = vmax.f32 %v4322, 0.0
        %v4402 = vmax.f32 %v4326, 0.0
        %v4403 = vmax.f32 %v4328, 0.0
        %v4404 = vmax.f32 %v4332, 0.0
        %v4405 = vmax.f32 %v4334, 0.0
        %v4406 = vmax.f32 %v4338, 0.0
        %v4407 = vmax.f32 %v4340, 0.0
        %v4408 = vmax.f32 %v4344, 0.0
        %v4409 = vmax.f32 %v4346, 0.0
        %v4472 = vrot.slane %v4348, 2
        %v4473 = vrot.slane %v4350, 2
        %v4474 = vsel %vm746, %v4472, %v4473
        %v4475 = vrot.slane %v4349, 2
        %v4476 = vrot.slane %v4351, 2
        %v4477 = vsel %vm746, %v4475, %v4476
        %v4478 = vrot.slane %v4352, 2
        %v4479 = vsel %vm746, %v4473, %v4478
        %v4480 = vrot.slane %v4353, 2
        %v4481 = vsel %vm746, %v4476, %v4480
        %v4482 = vrot.slane %v4354, 2
        %v4483 = vsel %vm746, %v4478, %v4482
        %v4484 = vrot.slane %v4355, 2
        %v4485 = vsel %vm746, %v4480, %v4484
        %v4486 = vrot.slane %v4356, 2
        %v4487 = vsel %vm746, %v4482, %v4486
        %v4488 = vrot.slane %v4357, 2
        %v4489 = vsel %vm746, %v4484, %v4488
        %v4490 = vrot.slane %v4358, 2
        %v4491 = vsel %vm746, %v4486, %v4490
        %v4492 = vrot.slane %v4359, 2
        %v4493 = vsel %vm746, %v4488, %v4492
        %v4494 = vrot.slane %v4360, 2
        %v4495 = vsel %vm746, %v4490, %v4494
        %v4496 = vrot.slane %v4361, 2
        %v4497 = vsel %vm746, %v4492, %v4496
        %v4498 = vrot.slane %v4362, 2
        %v4499 = vsel %vm746, %v4494, %v4498
        %v4500 = vrot.slane %v4363, 2
        %v4501 = vsel %vm746, %v4496, %v4500
        %v4502 = vrot.slane %v4364, 2
        %v4503 = vsel %vm746, %v4498, %v4502
        %v4504 = vrot.slane %v4365, 2
        %v4505 = vsel %vm746, %v4500, %v4504
        %v4506 = vrot.slane %v4366, 2
        %v4507 = vsel %vm746, %v4502, %v4506
        %v4508 = vrot.slane %v4367, 2
        %v4509 = vsel %vm746, %v4504, %v4508
        %v4510 = vrot.slane %v4368, 2
        %v4511 = vsel %vm746, %v4506, %v4510
        %v4512 = vrot.slane %v4369, 2
        %v4513 = vsel %vm746, %v4508, %v4512
        %v4514 = vrot.slane %v4370, 2
        %v4515 = vsel %vm746, %v4510, %v4514
        %v4516 = vrot.slane %v4371, 2
        %v4517 = vsel %vm746, %v4512, %v4516
        %v4518 = vrot.slane %v4372, 2
        %v4519 = vsel %vm746, %v4514, %v4518
        %v4520 = vrot.slane %v4373, 2
        %v4521 = vsel %vm746, %v4516, %v4520
        %v4522 = vrot.slane %v4374, 2
        %v4523 = vsel %vm746, %v4518, %v4522
        %v4524 = vrot.slane %v4375, 2
        %v4525 = vsel %vm746, %v4520, %v4524
        %v4526 = vrot.slane %v4376, 2
        %v4527 = vsel %vm746, %v4522, %v4526
        %v4528 = vrot.slane %v4377, 2
        %v4529 = vsel %vm746, %v4524, %v4528
        %v4530 = vrot.slane %v4378, 2
        %v4531 = vsel %vm746, %v4526, %v4530
        %v4532 = vrot.slane %v4379, 2
        %v4533 = vsel %vm746, %v4528, %v4532
        %v4534 = vrot.slane %v4380, 2
        %v4535 = vsel %vm746, %v4530, %v4534
        %v4536 = vrot.slane %v4381, 2
        %v4537 = vsel %vm746, %v4532, %v4536
        %v4538 = vrot.slane %v4382, 2
        %v4539 = vsel %vm746, %v4534, %v4538
        %v4540 = vrot.slane %v4383, 2
        %v4541 = vsel %vm746, %v4536, %v4540
        %v4542 = vrot.slane %v4384, 2
        %v4543 = vsel %vm746, %v4538, %v4542
        %v4544 = vrot.slane %v4385, 2
        %v4545 = vsel %vm746, %v4540, %v4544
        %v4546 = vrot.slane %v4386, 2
        %v4547 = vsel %vm746, %v4542, %v4546
        %v4548 = vrot.slane %v4387, 2
        %v4549 = vsel %vm746, %v4544, %v4548
        %v4550 = vrot.slane %v4388, 2
        %v4551 = vsel %vm746, %v4546, %v4550
        %v4552 = vrot.slane %v4389, 2
        %v4553 = vsel %vm746, %v4548, %v4552
        %v4554 = vrot.slane %v4390, 2
        %v4555 = vsel %vm746, %v4550, %v4554
        %v4556 = vrot.slane %v4391, 2
        %v4557 = vsel %vm746, %v4552, %v4556
        %v4558 = vrot.slane %v4392, 2
        %v4559 = vsel %vm746, %v4554, %v4558
        %v4560 = vrot.slane %v4393, 2
        %v4561 = vsel %vm746, %v4556, %v4560
        %v4562 = vrot.slane %v4394, 2
        %v4563 = vsel %vm746, %v4558, %v4562
        %v4564 = vrot.slane %v4395, 2
        %v4565 = vsel %vm746, %v4560, %v4564
        %v4566 = vrot.slane %v4396, 2
        %v4567 = vsel %vm746, %v4562, %v4566
        %v4568 = vrot.slane %v4397, 2
        %v4569 = vsel %vm746, %v4564, %v4568
        %v4570 = vrot.slane %v4398, 2
        %v4571 = vsel %vm746, %v4566, %v4570
        %v4572 = vrot.slane %v4399, 2
        %v4573 = vsel %vm746, %v4568, %v4572
        %v4574 = vrot.slane %v4400, 2
        %v4575 = vsel %vm746, %v4570, %v4574
        %v4576 = vrot.slane %v4401, 2
        %v4577 = vsel %vm746, %v4572, %v4576
        %v4578 = vrot.slane %v4402, 2
        %v4579 = vsel %vm746, %v4574, %v4578
        %v4580 = vrot.slane %v4403, 2
        %v4581 = vsel %vm746, %v4576, %v4580
        %v4582 = vrot.slane %v4404, 2
        %v4583 = vsel %vm746, %v4578, %v4582
        %v4584 = vrot.slane %v4405, 2
        %v4585 = vsel %vm746, %v4580, %v4584
        %v4586 = vrot.slane %v4406, 2
        %v4587 = vsel %vm746, %v4582, %v4586
        %v4588 = vrot.slane %v4407, 2
        %v4589 = vsel %vm746, %v4584, %v4588
        %v4590 = vrot.slane %v4408, 2
        %v4591 = vsel %vm746, %v4586, %v4590
        %v4592 = vrot.slane %v4409, 2
        %v4593 = vsel %vm746, %v4588, %v4592
        %v4656 = vmax.f32 %v4348, %v4474
        %v4657 = vmax.f32 %v4349, %v4477
        %v4658 = vmax.f32 %v4350, %v4479
        %v4659 = vmax.f32 %v4351, %v4481
        %v4660 = vmax.f32 %v4352, %v4483
        %v4661 = vmax.f32 %v4353, %v4485
        %v4662 = vmax.f32 %v4354, %v4487
        %v4663 = vmax.f32 %v4355, %v4489
        %v4664 = vmax.f32 %v4356, %v4491
        %v4665 = vmax.f32 %v4357, %v4493
        %v4666 = vmax.f32 %v4358, %v4495
        %v4667 = vmax.f32 %v4359, %v4497
        %v4668 = vmax.f32 %v4360, %v4499
        %v4669 = vmax.f32 %v4361, %v4501
        %v4670 = vmax.f32 %v4362, %v4503
        %v4671 = vmax.f32 %v4363, %v4505
        %v4672 = vmax.f32 %v4364, %v4507
        %v4673 = vmax.f32 %v4365, %v4509
        %v4674 = vmax.f32 %v4366, %v4511
        %v4675 = vmax.f32 %v4367, %v4513
        %v4676 = vmax.f32 %v4368, %v4515
        %v4677 = vmax.f32 %v4369, %v4517
        %v4678 = vmax.f32 %v4370, %v4519
        %v4679 = vmax.f32 %v4371, %v4521
        %v4680 = vmax.f32 %v4372, %v4523
        %v4681 = vmax.f32 %v4373, %v4525
        %v4682 = vmax.f32 %v4374, %v4527
        %v4683 = vmax.f32 %v4375, %v4529
        %v4684 = vmax.f32 %v4376, %v4531
        %v4685 = vmax.f32 %v4377, %v4533
        %v4686 = vmax.f32 %v4378, %v4535
        %v4687 = vmax.f32 %v4379, %v4537
        %v4688 = vmax.f32 %v4380, %v4539
        %v4689 = vmax.f32 %v4381, %v4541
        %v4690 = vmax.f32 %v4382, %v4543
        %v4691 = vmax.f32 %v4383, %v4545
        %v4692 = vmax.f32 %v4384, %v4547
        %v4693 = vmax.f32 %v4385, %v4549
        %v4694 = vmax.f32 %v4386, %v4551
        %v4695 = vmax.f32 %v4387, %v4553
        %v4696 = vmax.f32 %v4388, %v4555
        %v4697 = vmax.f32 %v4389, %v4557
        %v4698 = vmax.f32 %v4390, %v4559
        %v4699 = vmax.f32 %v4391, %v4561
        %v4700 = vmax.f32 %v4392, %v4563
        %v4701 = vmax.f32 %v4393, %v4565
        %v4702 = vmax.f32 %v4394, %v4567
        %v4703 = vmax.f32 %v4395, %v4569
        %v4704 = vmax.f32 %v4396, %v4571
        %v4705 = vmax.f32 %v4397, %v4573
        %v4706 = vmax.f32 %v4398, %v4575
        %v4707 = vmax.f32 %v4399, %v4577
        %v4708 = vmax.f32 %v4400, %v4579
        %v4709 = vmax.f32 %v4401, %v4581
        %v4710 = vmax.f32 %v4402, %v4583
        %v4711 = vmax.f32 %v4403, %v4585
        %v4712 = vmax.f32 %v4404, %v4587
        %v4713 = vmax.f32 %v4405, %v4589
        %v4714 = vmax.f32 %v4406, %v4591
        %v4715 = vmax.f32 %v4407, %v4593
        %v4716 = vmax.f32 %v4408, %v4590
        %v4717 = vmax.f32 %v4409, %v4592
        %v4718 = vld [vmem:[%s7] sm:$0xff]
        %v4719 = vld [vmem:[%s7 + $0x8] sm:$0xff]
        %v4720 = vld [vmem:[%s7 + $0x10] sm:$0xff]
        %v4721 = vld [vmem:[%s7 + $0x18] sm:$0xff]
        %v4722 = vld [vmem:[%s7 + $0x20] sm:$0xff]
        %v4723 = vld [vmem:[%s7 + $0x28] sm:$0xff]
        %v4724 = vld [vmem:[%s7 + $0x30] sm:$0xff]
        %v4725 = vld [vmem:[%s7 + $0x38] sm:$0xff]
        %v4726 = vld [vmem:[%s7 + $0x40] sm:$0xff]
        %v4727 = vld [vmem:[%s7 + $0x48] sm:$0xff]
        %v4728 = vld [vmem:[%s7 + $0x50] sm:$0xff]
        %v4729 = vld [vmem:[%s7 + $0x58] sm:$0xff]
        %v4730 = vld [vmem:[%s7 + $0x60] sm:$0xff]
        %v4731 = vld [vmem:[%s7 + $0x68] sm:$0xff]
        %v4732 = vld [vmem:[%s7 + $0x70] sm:$0xff]
        %v4733 = vld [vmem:[%s7 + $0x78] sm:$0xff]
        %v4734 = vld [vmem:[%s7 + $0x80] sm:$0xff]
        %v4735 = vld [vmem:[%s7 + $0x88] sm:$0xff]
        %v4736 = vld [vmem:[%s7 + $0x90] sm:$0xff]
        %v4737 = vld [vmem:[%s7 + $0x98] sm:$0xff]
        %v4739 = vsel %vm1196, %v4657, 0
        %v4742 = vsel %vm1196, %v4659, 0
        %v4745 = vsel %vm1196, %v4661, 0
        %v4748 = vsel %vm1196, %v4663, 0
        %v4751 = vsel %vm1196, %v4665, 0
        %v4754 = vsel %vm1196, %v4667, 0
        %v4757 = vsel %vm1196, %v4669, 0
        %v4760 = vsel %vm1196, %v4671, 0
        %v4763 = vsel %vm1196, %v4673, 0
        %v4766 = vsel %vm1196, %v4675, 0
        %v4769 = vsel %vm1196, %v4677, 0
        %v4772 = vsel %vm1196, %v4679, 0
        %v4775 = vsel %vm1196, %v4681, 0
        %v4778 = vsel %vm1196, %v4683, 0
        %v4781 = vsel %vm1196, %v4685, 0
        %v4784 = vsel %vm1196, %v4687, 0
        %v4787 = vsel %vm1196, %v4689, 0
        %v4790 = vsel %vm1196, %v4691, 0
        %v4793 = vsel %vm1196, %v4693, 0
        %v4796 = vsel %vm1196, %v4695, 0
        %v4799 = vsel %vm1196, %v4697, 0
        %v4802 = vsel %vm1196, %v4699, 0
        %v4805 = vsel %vm1196, %v4701, 0
        %v4808 = vsel %vm1196, %v4703, 0
        %v4811 = vsel %vm1196, %v4705, 0
        %v4814 = vsel %vm1196, %v4707, 0
        %v4817 = vsel %vm1196, %v4709, 0
        %v4820 = vsel %vm1196, %v4711, 0
        %v4823 = vsel %vm1196, %v4713, 0
        %v4826 = vsel %vm1196, %v4715, 0
        %v4829 = vsel %vm1196, %v4717, 0
        %4831 = vmatprep.subr.mxu0 0.0
        %4832 = vmatpush1.msra.mxu0 %v4718
        %4833 = vmatprep.subr.mxu0 0.0
        %4834 = vmatpush1.msra.mxu0 %v4719
        %4835 = vmatprep.subr.mxu0 0.0
        %4836 = vmatpush1.msra.mxu0 %v4720
        %4837 = vmatprep.subr.mxu0 0.0
        %4838 = vmatpush1.msra.mxu0 %v4721
        %4839 = vmatprep.subr.mxu0 0.0
        %4840 = vmatpush1.msra.mxu0 %v4722
        %4841 = vmatprep.subr.mxu0 0.0
        %4842 = vmatpush1.msra.mxu0 %v4723
        %4843 = vmatprep.subr.mxu0 0.0
        %4844 = vmatpush1.msra.mxu0 %v4724
        %4845 = vmatprep.subr.mxu0 0.0
        %4846 = vmatpush1.msra.mxu0 %v4725
        %4847 = vmatprep.subr.mxu0 0.0
        %4848 = vmatpush1.msra.mxu0 %v4726
        %4849 = vmatprep.subr.mxu0 0.0
        %4850 = vmatpush1.msra.mxu0 %v4727
        %4851 = vmatprep.subr.mxu0 0.0
        %4852 = vmatpush1.msra.mxu0 %v4728
        %4853 = vmatprep.subr.mxu0 0.0
        %4854 = vmatpush1.msra.mxu0 %v4729
        %4855 = vmatprep.subr.mxu0 0.0
        %4856 = vmatpush1.msra.mxu0 %v4730
        %4857 = vmatprep.subr.mxu0 0.0
        %4858 = vmatpush1.msra.mxu0 %v4731
        %4859 = vmatprep.subr.mxu0 0.0
        %4860 = vmatpush1.msra.mxu0 %v4732
        %4861 = vmatprep.subr.mxu0 0.0
        %4862 = vmatpush1.msra.mxu0 %v4733
        %4863 = vmatprep.subr.mxu0 0.0
        %4864 = vmatpush1.msra.mxu0 %v4734
        %4865 = vmatprep.subr.mxu0 0.0
        %4866 = vmatpush1.msra.mxu0 %v4735
        %4867 = vmatprep.subr.mxu0 0.0
        %4868 = vmatpush1.msra.mxu0 %v4736
        %4869 = vmatprep.subr.mxu0 0.0
        %4870 = vmatpush1.msra.mxu0 %v4737
        %4871 = vmatprep.subr.mxu0 0.0
        %4872 = vmatpush1.msra.mxu0 0.0
        %4873 = vmatprep.subr.mxu0 0.0
        %4874 = vmatpush1.msra.mxu0 0.0
        %4875 = vmatprep.subr.mxu0 0.0
        %4876 = vmatpush1.msra.mxu0 0.0
        %4877 = vmatprep.subr.mxu0 0.0
        %4878 = vmatpush1.msra.mxu0 0.0
        %4879 = vmatprep.subr.mxu0 0.0
        %4880 = vmatpush1.msra.mxu0 0.0
        %4881 = vmatprep.subr.mxu0 0.0
        %4882 = vmatpush1.msra.mxu0 0.0
        %4883 = vmatprep.subr.mxu0 0.0
        %4884 = vmatpush1.msra.mxu0 0.0
        %4885 = vmatprep.subr.mxu0 0.0
        %4886 = vmatpush1.msra.mxu0 0.0
        %4887 = vmatprep.subr.mxu0 0.0
        %4888 = vmatpush1.msra.mxu0 0.0
        %4889 = vmatprep.subr.mxu0 0.0
        %4890 = vmatpush1.msra.mxu0 0.0
        %4891 = vmatprep.subr.mxu0 0.0
        %4892 = vmatpush1.msra.mxu0 0.0
        %4893 = vmatprep.subr.mxu0 0.0
        %4894 = vmatpush1.msra.mxu0 0.0
        %4895 = vmatprep.mubr.f32.mxu0 %v4739
        %4896 = vmatmul.mubr.f32.gmra.mrb[0].mxu0 %v4656
        %v4897 = vpop.f32.mrb[0].mxu0
        %v4898 = vadd.f32 0.0, %v4897
        %v4899 = vpop.f32.mrb[0].mxu0
        %4900 = vmatprep.mubr.f32.mxu0 %v4742
        %4901 = vmatmul.mubr.f32.gmra.mrb[0].mxu0 %v4658
        %v4902 = vpop.f32.mrb[0].mxu0
        %v4903 = vadd.f32 0.0, %v4902
        %v4904 = vpop.f32.mrb[0].mxu0
        %4905 = vmatprep.mubr.f32.mxu0 %v4745
        %4906 = vmatmul.mubr.f32.gmra.mrb[0].mxu0 %v4660
        %v4907 = vpop.f32.mrb[0].mxu0
        %v4908 = vadd.f32 0.0, %v4907
        %v4909 = vpop.f32.mrb[0].mxu0
        %4910 = vmatprep.mubr.f32.mxu0 %v4748
        %4911 = vmatmul.mubr.f32.gmra.mrb[0].mxu0 %v4662
        %v4912 = vpop.f32.mrb[0].mxu0
        %v4913 = vadd.f32 0.0, %v4912
        %v4914 = vpop.f32.mrb[0].mxu0
        %4915 = vmatprep.mubr.f32.mxu0 %v4751
        %4916 = vmatmul.mubr.f32.gmra.mrb[0].mxu0 %v4664
        %v4917 = vpop.f32.mrb[0].mxu0
        %v4918 = vadd.f32 0.0, %v4917
        %v4919 = vpop.f32.mrb[0].mxu0
        %4920 = vmatprep.mubr.f32.mxu0 %v4754
        %4921 = vmatmul.mubr.f32.gmra.mrb[0].mxu0 %v4666
        %v4922 = vpop.f32.mrb[0].mxu0
        %v4923 = vadd.f32 0.0, %v4922
        %v4924 = vpop.f32.mrb[0].mxu0
        %4925 = vmatprep.mubr.f32.mxu0 %v4757
        %4926 = vmatmul.mubr.f32.gmra.mrb[0].mxu0 %v4668
        %v4927 = vpop.f32.mrb[0].mxu0
        %v4928 = vadd.f32 0.0, %v4927
        %v4929 = vpop.f32.mrb[0].mxu0
        %4930 = vmatprep.mubr.f32.mxu0 %v4760
        %4931 = vmatmul.mubr.f32.gmra.mrb[0].mxu0 %v4670
        %v4932 = vpop.f32.mrb[0].mxu0
        %v4933 = vadd.f32 0.0, %v4932
        %v4934 = vpop.f32.mrb[0].mxu0
        %4935 = vmatprep.mubr.f32.mxu0 %v4763
        %4936 = vmatmul.mubr.f32.gmra.mrb[0].mxu0 %v4672
        %v4937 = vpop.f32.mrb[0].mxu0
        %v4938 = vadd.f32 0.0, %v4937
        %v4939 = vpop.f32.mrb[0].mxu0
        %4940 = vmatprep.mubr.f32.mxu0 %v4766
        %4941 = vmatmul.mubr.f32.gmra.mrb[0].mxu0 %v4674
        %v4942 = vpop.f32.mrb[0].mxu0
        %v4943 = vadd.f32 0.0, %v4942
        %v4944 = vpop.f32.mrb[0].mxu0
        %4945 = vmatprep.mubr.f32.mxu0 %v4769
        %4946 = vmatmul.mubr.f32.gmra.mrb[0].mxu0 %v4676
        %v4947 = vpop.f32.mrb[0].mxu0
        %v4948 = vadd.f32 0.0, %v4947
        %v4949 = vpop.f32.mrb[0].mxu0
        %4950 = vmatprep.mubr.f32.mxu0 %v4772
        %4951 = vmatmul.mubr.f32.gmra.mrb[0].mxu0 %v4678
        %v4952 = vpop.f32.mrb[0].mxu0
        %v4953 = vadd.f32 0.0, %v4952
        %v4954 = vpop.f32.mrb[0].mxu0
        %4955 = vmatprep.mubr.f32.mxu0 %v4775
        %4956 = vmatmul.mubr.f32.gmra.mrb[0].mxu0 %v4680
        %v4957 = vpop.f32.mrb[0].mxu0
        %v4958 = vadd.f32 0.0, %v4957
        %v4959 = vpop.f32.mrb[0].mxu0
        %4960 = vmatprep.mubr.f32.mxu0 %v4778
        %4961 = vmatmul.mubr.f32.gmra.mrb[0].mxu0 %v4682
        %v4962 = vpop.f32.mrb[0].mxu0
        %v4963 = vadd.f32 0.0, %v4962
        %v4964 = vpop.f32.mrb[0].mxu0
        %4965 = vmatprep.mubr.f32.mxu0 %v4781
        %4966 = vmatmul.mubr.f32.gmra.mrb[0].mxu0 %v4684
        %v4967 = vpop.f32.mrb[0].mxu0
        %v4968 = vadd.f32 0.0, %v4967
        %v4969 = vpop.f32.mrb[0].mxu0
        %4970 = vmatprep.mubr.f32.mxu0 %v4784
        %4971 = vmatmul.mubr.f32.gmra.mrb[0].mxu0 %v4686
        %v4972 = vpop.f32.mrb[0].mxu0
        %v4973 = vadd.f32 0.0, %v4972
        %v4974 = vpop.f32.mrb[0].mxu0
        %4975 = vmatprep.mubr.f32.mxu0 %v4787
        %4976 = vmatmul.mubr.f32.gmra.mrb[0].mxu0 %v4688
        %v4977 = vpop.f32.mrb[0].mxu0
        %v4978 = vadd.f32 0.0, %v4977
        %v4979 = vpop.f32.mrb[0].mxu0
        %4980 = vmatprep.mubr.f32.mxu0 %v4790
        %4981 = vmatmul.mubr.f32.gmra.mrb[0].mxu0 %v4690
        %v4982 = vpop.f32.mrb[0].mxu0
        %v4983 = vadd.f32 0.0, %v4982
        %v4984 = vpop.f32.mrb[0].mxu0
        %4985 = vmatprep.mubr.f32.mxu0 %v4793
        %4986 = vmatmul.mubr.f32.gmra.mrb[0].mxu0 %v4692
        %v4987 = vpop.f32.mrb[0].mxu0
        %v4988 = vadd.f32 0.0, %v4987
        %v4989 = vpop.f32.mrb[0].mxu0
        %4990 = vmatprep.mubr.f32.mxu0 %v4796
        %4991 = vmatmul.mubr.f32.gmra.mrb[0].mxu0 %v4694
        %v4992 = vpop.f32.mrb[0].mxu0
        %v4993 = vadd.f32 0.0, %v4992
        %v4994 = vpop.f32.mrb[0].mxu0
        %4995 = vmatprep.mubr.f32.mxu0 %v4799
        %4996 = vmatmul.mubr.f32.gmra.mrb[0].mxu0 %v4696
        %v4997 = vpop.f32.mrb[0].mxu0
        %v4998 = vadd.f32 0.0, %v4997
        %v4999 = vpop.f32.mrb[0].mxu0
        %5000 = vmatprep.mubr.f32.mxu0 %v4802
        %5001 = vmatmul.mubr.f32.gmra.mrb[0].mxu0 %v4698
        %v5002 = vpop.f32.mrb[0].mxu0
        %v5003 = vadd.f32 0.0, %v5002
        %v5004 = vpop.f32.mrb[0].mxu0
        %5005 = vmatprep.mubr.f32.mxu0 %v4805
        %5006 = vmatmul.mubr.f32.gmra.mrb[0].mxu0 %v4700
        %v5007 = vpop.f32.mrb[0].mxu0
        %v5008 = vadd.f32 0.0, %v5007
        %v5009 = vpop.f32.mrb[0].mxu0
        %5010 = vmatprep.mubr.f32.mxu0 %v4808
        %5011 = vmatmul.mubr.f32.gmra.mrb[0].mxu0 %v4702
        %v5012 = vpop.f32.mrb[0].mxu0
        %v5013 = vadd.f32 0.0, %v5012
        %v5014 = vpop.f32.mrb[0].mxu0
        %5015 = vmatprep.mubr.f32.mxu0 %v4811
        %5016 = vmatmul.mubr.f32.gmra.mrb[0].mxu0 %v4704
        %v5017 = vpop.f32.mrb[0].mxu0
        %v5018 = vadd.f32 0.0, %v5017
        %v5019 = vpop.f32.mrb[0].mxu0
        %5020 = vmatprep.mubr.f32.mxu0 %v4814
        %5021 = vmatmul.mubr.f32.gmra.mrb[0].mxu0 %v4706
        %v5022 = vpop.f32.mrb[0].mxu0
        %v5023 = vadd.f32 0.0, %v5022
        %v5024 = vpop.f32.mrb[0].mxu0
        %5025 = vmatprep.mubr.f32.mxu0 %v4817
        %5026 = vmatmul.mubr.f32.gmra.mrb[0].mxu0 %v4708
        %v5027 = vpop.f32.mrb[0].mxu0
        %v5028 = vadd.f32 0.0, %v5027
        %v5029 = vpop.f32.mrb[0].mxu0
        %5030 = vmatprep.mubr.f32.mxu0 %v4820
        %5031 = vmatmul.mubr.f32.gmra.mrb[0].mxu0 %v4710
        %v5032 = vpop.f32.mrb[0].mxu0
        %v5033 = vadd.f32 0.0, %v5032
        %v5034 = vpop.f32.mrb[0].mxu0
        %5035 = vmatprep.mubr.f32.mxu0 %v4823
        %5036 = vmatmul.mubr.f32.gmra.mrb[0].mxu0 %v4712
        %v5037 = vpop.f32.mrb[0].mxu0
        %v5038 = vadd.f32 0.0, %v5037
        %v5039 = vpop.f32.mrb[0].mxu0
        %5040 = vmatprep.mubr.f32.mxu0 %v4826
        %5041 = vmatmul.mubr.f32.gmra.mrb[0].mxu0 %v4714
        %v5042 = vpop.f32.mrb[0].mxu0
        %v5043 = vadd.f32 0.0, %v5042
        %v5044 = vpop.f32.mrb[0].mxu0
        %5045 = vmatprep.mubr.f32.mxu0 %v4829
        %5046 = vmatmul.mubr.f32.gmra.mrb[0].mxu0 %v4716
        %v5047 = vpop.f32.mrb[0].mxu0
        %v5048 = vadd.f32 0.0, %v5047
        %v5049 = vpop.f32.mrb[0].mxu0
        %5050 = vdwg.mxu0
        %v5051 = vld [vmem:[%s8] sm:$0xff]
        %v5052 = vld [vmem:[%s8 + $0x8] sm:$0xff]
        %v5053 = vld [vmem:[%s8 + $0x10] sm:$0xff]
        %v5054 = vld [vmem:[%s8 + $0x18] sm:$0xff]
        %v5055 = vld [vmem:[%s8 + $0x20] sm:$0xff]
        %v5056 = vld [vmem:[%s8 + $0x28] sm:$0xff]
        %v5057 = vld [vmem:[%s8 + $0x30] sm:$0xff]
        %v5058 = vld [vmem:[%s8 + $0x38] sm:$0xff]
        %v5059 = vld [vmem:[%s8 + $0x40] sm:$0xff]
        %v5060 = vld [vmem:[%s8 + $0x48] sm:$0xff]
        %v5061 = vld [vmem:[%s8 + $0x50] sm:$0xff]
        %v5062 = vld [vmem:[%s8 + $0x58] sm:$0xff]
        %v5063 = vld [vmem:[%s8 + $0x60] sm:$0xff]
        %v5064 = vld [vmem:[%s8 + $0x68] sm:$0xff]
        %v5065 = vld [vmem:[%s8 + $0x70] sm:$0xff]
        %v5066 = vld [vmem:[%s8 + $0x78] sm:$0xff]
        %v5067 = vld [vmem:[%s8 + $0x80] sm:$0xff]
        %v5068 = vld [vmem:[%s8 + $0x88] sm:$0xff]
        %v5069 = vld [vmem:[%s8 + $0x90] sm:$0xff]
        %v5070 = vld [vmem:[%s8 + $0x98] sm:$0xff]
        %5071 = vmatprep.subr.mxu0 0.0
        %5072 = vmatpush1.msra.mxu0 %v5051
        %5073 = vmatprep.subr.mxu0 0.0
        %5074 = vmatpush1.msra.mxu0 %v5052
        %5075 = vmatprep.subr.mxu0 0.0
        %5076 = vmatpush1.msra.mxu0 %v5053
        %5077 = vmatprep.subr.mxu0 0.0
        %5078 = vmatpush1.msra.mxu0 %v5054
        %5079 = vmatprep.subr.mxu0 0.0
        %5080 = vmatpush1.msra.mxu0 %v5055
        %5081 = vmatprep.subr.mxu0 0.0
        %5082 = vmatpush1.msra.mxu0 %v5056
        %5083 = vmatprep.subr.mxu0 0.0
        %5084 = vmatpush1.msra.mxu0 %v5057
        %5085 = vmatprep.subr.mxu0 0.0
        %5086 = vmatpush1.msra.mxu0 %v5058
        %5087 = vmatprep.subr.mxu0 0.0
        %5088 = vmatpush1.msra.mxu0 %v5059
        %5089 = vmatprep.subr.mxu0 0.0
        %5090 = vmatpush1.msra.mxu0 %v5060
        %5091 = vmatprep.subr.mxu0 0.0
        %5092 = vmatpush1.msra.mxu0 %v5061
        %5093 = vmatprep.subr.mxu0 0.0
        %5094 = vmatpush1.msra.mxu0 %v5062
        %5095 = vmatprep.subr.mxu0 0.0
        %5096 = vmatpush1.msra.mxu0 %v5063
        %5097 = vmatprep.subr.mxu0 0.0
        %5098 = vmatpush1.msra.mxu0 %v5064
        %5099 = vmatprep.subr.mxu0 0.0
        %5100 = vmatpush1.msra.mxu0 %v5065
        %5101 = vmatprep.subr.mxu0 0.0
        %5102 = vmatpush1.msra.mxu0 %v5066
        %5103 = vmatprep.subr.mxu0 0.0
        %5104 = vmatpush1.msra.mxu0 %v5067
        %5105 = vmatprep.subr.mxu0 0.0
        %5106 = vmatpush1.msra.mxu0 %v5068
        %5107 = vmatprep.subr.mxu0 0.0
        %5108 = vmatpush1.msra.mxu0 %v5069
        %5109 = vmatprep.subr.mxu0 0.0
        %5110 = vmatpush1.msra.mxu0 %v5070
        %5111 = vmatprep.subr.mxu0 0.0
        %5112 = vmatpush1.msra.mxu0 0.0
        %5113 = vmatprep.subr.mxu0 0.0
        %5114 = vmatpush1.msra.mxu0 0.0
        %5115 = vmatprep.subr.mxu0 0.0
        %5116 = vmatpush1.msra.mxu0 0.0
        %5117 = vmatprep.subr.mxu0 0.0
        %5118 = vmatpush1.msra.mxu0 0.0
        %5119 = vmatprep.subr.mxu0 0.0
        %5120 = vmatpush1.msra.mxu0 0.0
        %5121 = vmatprep.subr.mxu0 0.0
        %5122 = vmatpush1.msra.mxu0 0.0
        %5123 = vmatprep.subr.mxu0 0.0
        %5124 = vmatpush1.msra.mxu0 0.0
        %5125 = vmatprep.subr.mxu0 0.0
        %5126 = vmatpush1.msra.mxu0 0.0
        %5127 = vmatprep.subr.mxu0 0.0
        %5128 = vmatpush1.msra.mxu0 0.0
        %5129 = vmatprep.subr.mxu0 0.0
        %5130 = vmatpush1.msra.mxu0 0.0
        %5131 = vmatprep.subr.mxu0 0.0
        %5132 = vmatpush1.msra.mxu0 0.0
        %5133 = vmatprep.subr.mxu0 0.0
        %5134 = vmatpush1.msra.mxu0 0.0
        %5135 = vmatprep.mubr.f32.mxu0 %v4739
        %5136 = vmatmul.mubr.f32.gmra.mrb[0].mxu0 %v4656
        %v5137 = vpop.f32.mrb[0].mxu0
        %v5138 = vadd.f32 0.0, %v5137
        %v5139 = vpop.f32.mrb[0].mxu0
        %5140 = vmatprep.mubr.f32.mxu0 %v4742
        %5141 = vmatmul.mubr.f32.gmra.mrb[0].mxu0 %v4658
        %v5142 = vpop.f32.mrb[0].mxu0
        %v5143 = vadd.f32 0.0, %v5142
        %v5144 = vpop.f32.mrb[0].mxu0
        %5145 = vmatprep.mubr.f32.mxu0 %v4745
        %5146 = vmatmul.mubr.f32.gmra.mrb[0].mxu0 %v4660
        %v5147 = vpop.f32.mrb[0].mxu0
        %v5148 = vadd.f32 0.0, %v5147
        %v5149 = vpop.f32.mrb[0].mxu0
        %5150 = vmatprep.mubr.f32.mxu0 %v4748
        %5151 = vmatmul.mubr.f32.gmra.mrb[0].mxu0 %v4662
        %v5152 = vpop.f32.mrb[0].mxu0
        %v5153 = vadd.f32 0.0, %v5152
        %v5154 = vpop.f32.mrb[0].mxu0
        %5155 = vmatprep.mubr.f32.mxu0 %v4751
        %5156 = vmatmul.mubr.f32.gmra.mrb[0].mxu0 %v4664
        %v5157 = vpop.f32.mrb[0].mxu0
        %v5158 = vadd.f32 0.0, %v5157
        %v5159 = vpop.f32.mrb[0].mxu0
        %5160 = vmatprep.mubr.f32.mxu0 %v4754
        %5161 = vmatmul.mubr.f32.gmra.mrb[0].mxu0 %v4666
        %v5162 = vpop.f32.mrb[0].mxu0
        %v5163 = vadd.f32 0.0, %v5162
        %v5164 = vpop.f32.mrb[0].mxu0
        %5165 = vmatprep.mubr.f32.mxu0 %v4757
        %5166 = vmatmul.mubr.f32.gmra.mrb[0].mxu0 %v4668
        %v5167 = vpop.f32.mrb[0].mxu0
        %v5168 = vadd.f32 0.0, %v5167
        %v5169 = vpop.f32.mrb[0].mxu0
        %5170 = vmatprep.mubr.f32.mxu0 %v4760
        %5171 = vmatmul.mubr.f32.gmra.mrb[0].mxu0 %v4670
        %v5172 = vpop.f32.mrb[0].mxu0
        %v5173 = vadd.f32 0.0, %v5172
        %v5174 = vpop.f32.mrb[0].mxu0
        %5175 = vmatprep.mubr.f32.mxu0 %v4763
        %5176 = vmatmul.mubr.f32.gmra.mrb[0].mxu0 %v4672
        %v5177 = vpop.f32.mrb[0].mxu0
        %v5178 = vadd.f32 0.0, %v5177
        %v5179 = vpop.f32.mrb[0].mxu0
        %5180 = vmatprep.mubr.f32.mxu0 %v4766
        %5181 = vmatmul.mubr.f32.gmra.mrb[0].mxu0 %v4674
        %v5182 = vpop.f32.mrb[0].mxu0
        %v5183 = vadd.f32 0.0, %v5182
        %v5184 = vpop.f32.mrb[0].mxu0
        %5185 = vmatprep.mubr.f32.mxu0 %v4769
        %5186 = vmatmul.mubr.f32.gmra.mrb[0].mxu0 %v4676
        %v5187 = vpop.f32.mrb[0].mxu0
        %v5188 = vadd.f32 0.0, %v5187
        %v5189 = vpop.f32.mrb[0].mxu0
        %5190 = vmatprep.mubr.f32.mxu0 %v4772
        %5191 = vmatmul.mubr.f32.gmra.mrb[0].mxu0 %v4678
        %v5192 = vpop.f32.mrb[0].mxu0
        %v5193 = vadd.f32 0.0, %v5192
        %v5194 = vpop.f32.mrb[0].mxu0
        %5195 = vmatprep.mubr.f32.mxu0 %v4775
        %5196 = vmatmul.mubr.f32.gmra.mrb[0].mxu0 %v4680
        %v5197 = vpop.f32.mrb[0].mxu0
        %v5198 = vadd.f32 0.0, %v5197
        %v5199 = vpop.f32.mrb[0].mxu0
        %5200 = vmatprep.mubr.f32.mxu0 %v4778
        %5201 = vmatmul.mubr.f32.gmra.mrb[0].mxu0 %v4682
        %v5202 = vpop.f32.mrb[0].mxu0
        %v5203 = vadd.f32 0.0, %v5202
        %v5204 = vpop.f32.mrb[0].mxu0
        %5205 = vmatprep.mubr.f32.mxu0 %v4781
        %5206 = vmatmul.mubr.f32.gmra.mrb[0].mxu0 %v4684
        %v5207 = vpop.f32.mrb[0].mxu0
        %v5208 = vadd.f32 0.0, %v5207
        %v5209 = vpop.f32.mrb[0].mxu0
        %5210 = vmatprep.mubr.f32.mxu0 %v4784
        %5211 = vmatmul.mubr.f32.gmra.mrb[0].mxu0 %v4686
        %v5212 = vpop.f32.mrb[0].mxu0
        %v5213 = vadd.f32 0.0, %v5212
        %v5214 = vpop.f32.mrb[0].mxu0
        %5215 = vmatprep.mubr.f32.mxu0 %v4787
        %5216 = vmatmul.mubr.f32.gmra.mrb[0].mxu0 %v4688
        %v5217 = vpop.f32.mrb[0].mxu0
        %v5218 = vadd.f32 0.0, %v5217
        %v5219 = vpop.f32.mrb[0].mxu0
        %5220 = vmatprep.mubr.f32.mxu0 %v4790
        %5221 = vmatmul.mubr.f32.gmra.mrb[0].mxu0 %v4690
        %v5222 = vpop.f32.mrb[0].mxu0
        %v5223 = vadd.f32 0.0, %v5222
        %v5224 = vpop.f32.mrb[0].mxu0
        %5225 = vmatprep.mubr.f32.mxu0 %v4793
        %5226 = vmatmul.mubr.f32.gmra.mrb[0].mxu0 %v4692
        %v5227 = vpop.f32.mrb[0].mxu0
        %v5228 = vadd.f32 0.0, %v5227
        %v5229 = vpop.f32.mrb[0].mxu0
        %5230 = vmatprep.mubr.f32.mxu0 %v4796
        %5231 = vmatmul.mubr.f32.gmra.mrb[0].mxu0 %v4694
        %v5232 = vpop.f32.mrb[0].mxu0
        %v5233 = vadd.f32 0.0, %v5232
        %v5234 = vpop.f32.mrb[0].mxu0
        %5235 = vmatprep.mubr.f32.mxu0 %v4799
        %5236 = vmatmul.mubr.f32.gmra.mrb[0].mxu0 %v4696
        %v5237 = vpop.f32.mrb[0].mxu0
        %v5238 = vadd.f32 0.0, %v5237
        %v5239 = vpop.f32.mrb[0].mxu0
        %5240 = vmatprep.mubr.f32.mxu0 %v4802
        %5241 = vmatmul.mubr.f32.gmra.mrb[0].mxu0 %v4698
        %v5242 = vpop.f32.mrb[0].mxu0
        %v5243 = vadd.f32 0.0, %v5242
        %v5244 = vpop.f32.mrb[0].mxu0
        %5245 = vmatprep.mubr.f32.mxu0 %v4805
        %5246 = vmatmul.mubr.f32.gmra.mrb[0].mxu0 %v4700
        %v5247 = vpop.f32.mrb[0].mxu0
        %v5248 = vadd.f32 0.0, %v5247
        %v5249 = vpop.f32.mrb[0].mxu0
        %5250 = vmatprep.mubr.f32.mxu0 %v4808
        %5251 = vmatmul.mubr.f32.gmra.mrb[0].mxu0 %v4702
        %v5252 = vpop.f32.mrb[0].mxu0
        %v5253 = vadd.f32 0.0, %v5252
        %v5254 = vpop.f32.mrb[0].mxu0
        %5255 = vmatprep.mubr.f32.mxu0 %v4811
        %5256 = vmatmul.mubr.f32.gmra.mrb[0].mxu0 %v4704
        %v5257 = vpop.f32.mrb[0].mxu0
        %v5258 = vadd.f32 0.0, %v5257
        %v5259 = vpop.f32.mrb[0].mxu0
        %5260 = vmatprep.mubr.f32.mxu0 %v4814
        %5261 = vmatmul.mubr.f32.gmra.mrb[0].mxu0 %v4706
        %v5262 = vpop.f32.mrb[0].mxu0
        %v5263 = vadd.f32 0.0, %v5262
        %v5264 = vpop.f32.mrb[0].mxu0
        %5265 = vmatprep.mubr.f32.mxu0 %v4817
        %5266 = vmatmul.mubr.f32.gmra.mrb[0].mxu0 %v4708
        %v5267 = vpop.f32.mrb[0].mxu0
        %v5268 = vadd.f32 0.0, %v5267
        %v5269 = vpop.f32.mrb[0].mxu0
        %5270 = vmatprep.mubr.f32.mxu0 %v4820
        %5271 = vmatmul.mubr.f32.gmra.mrb[0].mxu0 %v4710
        %v5272 = vpop.f32.mrb[0].mxu0
        %v5273 = vadd.f32 0.0, %v5272
        %v5274 = vpop.f32.mrb[0].mxu0
        %5275 = vmatprep.mubr.f32.mxu0 %v4823
        %5276 = vmatmul.mubr.f32.gmra.mrb[0].mxu0 %v4712
        %v5277 = vpop.f32.mrb[0].mxu0
        %v5278 = vadd.f32 0.0, %v5277
        %v5279 = vpop.f32.mrb[0].mxu0
        %5280 = vmatprep.mubr.f32.mxu0 %v4826
        %5281 = vmatmul.mubr.f32.gmra.mrb[0].mxu0 %v4714
        %v5282 = vpop.f32.mrb[0].mxu0
        %v5283 = vadd.f32 0.0, %v5282
        %v5284 = vpop.f32.mrb[0].mxu0
        %5285 = vmatprep.mubr.f32.mxu0 %v4829
        %5286 = vmatmul.mubr.f32.gmra.mrb[0].mxu0 %v4716
        %v5287 = vpop.f32.mrb[0].mxu0
        %v5288 = vadd.f32 0.0, %v5287
        %v5289 = vpop.f32.mrb[0].mxu0
        %5290 = vdwg.mxu0
        %v5291 = vmax.f32 %v4898, %v5138
        %v5292 = vmax.f32 %v4903, %v5143
        %v5293 = vmax.f32 %v4908, %v5148
        %v5294 = vmax.f32 %v4913, %v5153
        %v5295 = vmax.f32 %v4918, %v5158
        %v5296 = vmax.f32 %v4923, %v5163
        %v5297 = vmax.f32 %v4928, %v5168
        %v5298 = vmax.f32 %v4933, %v5173
        %v5299 = vmax.f32 %v4938, %v5178
        %v5300 = vmax.f32 %v4943, %v5183
        %v5301 = vmax.f32 %v4948, %v5188
        %v5302 = vmax.f32 %v4953, %v5193
        %v5303 = vmax.f32 %v4958, %v5198
        %v5304 = vmax.f32 %v4963, %v5203
        %v5305 = vmax.f32 %v4968, %v5208
        %v5306 = vmax.f32 %v4973, %v5213
        %v5307 = vmax.f32 %v4978, %v5218
        %v5308 = vmax.f32 %v4983, %v5223
        %v5309 = vmax.f32 %v4988, %v5228
        %v5310 = vmax.f32 %v4993, %v5233
        %v5311 = vmax.f32 %v4998, %v5238
        %v5312 = vmax.f32 %v5003, %v5243
        %v5313 = vmax.f32 %v5008, %v5248
        %v5314 = vmax.f32 %v5013, %v5253
        %v5315 = vmax.f32 %v5018, %v5258
        %v5316 = vmax.f32 %v5023, %v5263
        %v5317 = vmax.f32 %v5028, %v5268
        %v5318 = vmax.f32 %v5033, %v5273
        %v5319 = vmax.f32 %v5038, %v5278
        %v5320 = vmax.f32 %v5043, %v5283
        %v5321 = vmax.f32 %v5048, %v5288
        %v5322 = vld [vmem:[%s9] sm:$0xff]
        %v5323 = vld [vmem:[%s9 + $0x8] sm:$0xff]
        %vm5324 = vcmask 793600
        %v5326 = vsel %vm5324, %v5323, 0
        %vm5328 = vcmask 1040384
        %v5330 = vsel %vm5328, %v5319, 0
        %5332 = vmatprep.subr.mxu0 0.0
        %5333 = vmatpush1.msra.mxu0 %v5291
        %5334 = vmatprep.subr.mxu0 0.0
        %5335 = vmatpush1.msra.mxu0 %v5292
        %5336 = vmatprep.subr.mxu0 0.0
        %5337 = vmatpush1.msra.mxu0 %v5293
        %5338 = vmatprep.subr.mxu0 0.0
        %5339 = vmatpush1.msra.mxu0 %v5294
        %5340 = vmatprep.subr.mxu0 0.0
        %5341 = vmatpush1.msra.mxu0 %v5295
        %5342 = vmatprep.subr.mxu0 0.0
        %5343 = vmatpush1.msra.mxu0 %v5296
        %5344 = vmatprep.subr.mxu0 0.0
        %5345 = vmatpush1.msra.mxu0 %v5297
        %5346 = vmatprep.subr.mxu0 0.0
        %5347 = vmatpush1.msra.mxu0 %v5298
        %5348 = vmatprep.subr.mxu0 0.0
        %5349 = vmatpush1.msra.mxu0 %v5299
        %5350 = vmatprep.subr.mxu0 0.0
        %5351 = vmatpush1.msra.mxu0 %v5300
        %5352 = vmatprep.subr.mxu0 0.0
        %5353 = vmatpush1.msra.mxu0 %v5301
        %5354 = vmatprep.subr.mxu0 0.0
        %5355 = vmatpush1.msra.mxu0 %v5302
        %5356 = vmatprep.subr.mxu0 0.0
        %5357 = vmatpush1.msra.mxu0 %v5303
        %5358 = vmatprep.subr.mxu0 0.0
        %5359 = vmatpush1.msra.mxu0 %v5304
        %5360 = vmatprep.subr.mxu0 0.0
        %5361 = vmatpush1.msra.mxu0 %v5305
        %5362 = vmatprep.subr.mxu0 0.0
        %5363 = vmatpush1.msra.mxu0 %v5306
        %5364 = vmatprep.subr.mxu0 0.0
        %5365 = vmatpush1.msra.mxu0 %v5307
        %5366 = vmatprep.subr.mxu0 0.0
        %5367 = vmatpush1.msra.mxu0 %v5308
        %5368 = vmatprep.subr.mxu0 0.0
        %5369 = vmatpush1.msra.mxu0 %v5309
        %5370 = vmatprep.subr.mxu0 0.0
        %5371 = vmatpush1.msra.mxu0 %v5310
        %5372 = vmatprep.subr.mxu0 0.0
        %5373 = vmatpush1.msra.mxu0 %v5311
        %5374 = vmatprep.subr.mxu0 0.0
        %5375 = vmatpush1.msra.mxu0 %v5312
        %5376 = vmatprep.subr.mxu0 0.0
        %5377 = vmatpush1.msra.mxu0 %v5313
        %5378 = vmatprep.subr.mxu0 0.0
        %5379 = vmatpush1.msra.mxu0 %v5314
        %5380 = vmatprep.subr.mxu0 0.0
        %5381 = vmatpush1.msra.mxu0 %v5315
        %5382 = vmatprep.subr.mxu0 0.0
        %5383 = vmatpush1.msra.mxu0 %v5316
        %5384 = vmatprep.subr.mxu0 0.0
        %5385 = vmatpush1.msra.mxu0 %v5317
        %5386 = vmatprep.subr.mxu0 0.0
        %5387 = vmatpush1.msra.mxu0 %v5318
        %5388 = vmatprep.subr.mxu0 0.0
        %5389 = vmatpush1.msra.mxu0 %v5330
        %5390 = vmatprep.subr.mxu0 0.0
        %5391 = vmatpush1.msra.mxu0 0.0
        %5392 = vmatprep.subr.mxu0 0.0
        %5393 = vmatpush1.msra.mxu0 0.0
        %5394 = vmatprep.subr.mxu0 0.0
        %5395 = vmatpush1.msra.mxu0 0.0
        %5396 = vmatprep.mubr.f32.mxu0 %v5326
        %5397 = vmatmul.mubr.f32.gmra.mrb[0].mxu0 %v5322
        %v5398 = vpop.f32.mrb[0].mxu0
        %v5399 = vadd.f32 0.0, %v5398
        %v5400 = vpop.f32.mrb[0].mxu0
        %5401 = vdwg.mxu0
        %v5430 = vrot.slane %v5291, 4
        %v5431 = vrot.slane %v5292, 4
        %v5432 = vsel %vm1066, %v5430, %v5431
        %v5433 = vrot.slane %v5293, 4
        %v5434 = vsel %vm1066, %v5431, %v5433
        %v5435 = vrot.slane %v5294, 4
        %v5436 = vsel %vm1066, %v5433, %v5435
        %v5437 = vrot.slane %v5295, 4
        %v5438 = vsel %vm1066, %v5435, %v5437
        %v5439 = vrot.slane %v5296, 4
        %v5440 = vsel %vm1066, %v5437, %v5439
        %v5441 = vrot.slane %v5297, 4
        %v5442 = vsel %vm1066, %v5439, %v5441
        %v5443 = vrot.slane %v5298, 4
        %v5444 = vsel %vm1066, %v5441, %v5443
        %v5445 = vrot.slane %v5299, 4
        %v5446 = vsel %vm1066, %v5443, %v5445
        %v5447 = vrot.slane %v5300, 4
        %v5448 = vsel %vm1066, %v5445, %v5447
        %v5449 = vrot.slane %v5301, 4
        %v5450 = vsel %vm1066, %v5447, %v5449
        %v5451 = vrot.slane %v5302, 4
        %v5452 = vsel %vm1066, %v5449, %v5451
        %v5453 = vrot.slane %v5303, 4
        %v5454 = vsel %vm1066, %v5451, %v5453
        %v5455 = vrot.slane %v5304, 4
        %v5456 = vsel %vm1066, %v5453, %v5455
        %v5457 = vrot.slane %v5305, 4
        %v5458 = vsel %vm1066, %v5455, %v5457
        %v5459 = vrot.slane %v5306, 4
        %v5460 = vsel %vm1066, %v5457, %v5459
        %v5461 = vrot.slane %v5307, 4
        %v5462 = vsel %vm1066, %v5459, %v5461
        %v5463 = vrot.slane %v5308, 4
        %v5464 = vsel %vm1066, %v5461, %v5463
        %v5465 = vrot.slane %v5309, 4
        %v5466 = vsel %vm1066, %v5463, %v5465
        %v5467 = vrot.slane %v5310, 4
        %v5468 = vsel %vm1066, %v5465, %v5467
        %v5469 = vrot.slane %v5311, 4
        %v5470 = vsel %vm1066, %v5467, %v5469
        %v5471 = vrot.slane %v5312, 4
        %v5472 = vsel %vm1066, %v5469, %v5471
        %v5473 = vrot.slane %v5313, 4
        %v5474 = vsel %vm1066, %v5471, %v5473
        %v5475 = vrot.slane %v5314, 4
        %v5476 = vsel %vm1066, %v5473, %v5475
        %v5477 = vrot.slane %v5315, 4
        %v5478 = vsel %vm1066, %v5475, %v5477
        %v5479 = vrot.slane %v5316, 4
        %v5480 = vsel %vm1066, %v5477, %v5479
        %v5481 = vrot.slane %v5317, 4
        %v5482 = vsel %vm1066, %v5479, %v5481
        %v5483 = vrot.slane %v5318, 4
        %v5484 = vsel %vm1066, %v5481, %v5483
        %v5485 = vrot.slane %v5319, 4
        %v5486 = vsel %vm1066, %v5483, %v5485
        %v5515 = vsel %vm5328, %v5485, 0
        %5517 = vmatprep.subr.mxu0 0.0
        %5518 = vmatpush1.msra.mxu0 %v5432
        %5519 = vmatprep.subr.mxu0 0.0
        %5520 = vmatpush1.msra.mxu0 %v5434
        %5521 = vmatprep.subr.mxu0 0.0
        %5522 = vmatpush1.msra.mxu0 %v5436
        %5523 = vmatprep.subr.mxu0 0.0
        %5524 = vmatpush1.msra.mxu0 %v5438
        %5525 = vmatprep.subr.mxu0 0.0
        %5526 = vmatpush1.msra.mxu0 %v5440
        %5527 = vmatprep.subr.mxu0 0.0
        %5528 = vmatpush1.msra.mxu0 %v5442
        %5529 = vmatprep.subr.mxu0 0.0
        %5530 = vmatpush1.msra.mxu0 %v5444
        %5531 = vmatprep.subr.mxu0 0.0
        %5532 = vmatpush1.msra.mxu0 %v5446
        %5533 = vmatprep.subr.mxu0 0.0
        %5534 = vmatpush1.msra.mxu0 %v5448
        %5535 = vmatprep.subr.mxu0 0.0
        %5536 = vmatpush1.msra.mxu0 %v5450
        %5537 = vmatprep.subr.mxu0 0.0
        %5538 = vmatpush1.msra.mxu0 %v5452
        %5539 = vmatprep.subr.mxu0 0.0
        %5540 = vmatpush1.msra.mxu0 %v5454
        %5541 = vmatprep.subr.mxu0 0.0
        %5542 = vmatpush1.msra.mxu0 %v5456
        %5543 = vmatprep.subr.mxu0 0.0
        %5544 = vmatpush1.msra.mxu0 %v5458
        %5545 = vmatprep.subr.mxu0 0.0
        %5546 = vmatpush1.msra.mxu0 %v5460
        %5547 = vmatprep.subr.mxu0 0.0
        %5548 = vmatpush1.msra.mxu0 %v5462
        %5549 = vmatprep.subr.mxu0 0.0
        %5550 = vmatpush1.msra.mxu0 %v5464
        %5551 = vmatprep.subr.mxu0 0.0
        %5552 = vmatpush1.msra.mxu0 %v5466
        %5553 = vmatprep.subr.mxu0 0.0
        %5554 = vmatpush1.msra.mxu0 %v5468
        %5555 = vmatprep.subr.mxu0 0.0
        %5556 = vmatpush1.msra.mxu0 %v5470
        %5557 = vmatprep.subr.mxu0 0.0
        %5558 = vmatpush1.msra.mxu0 %v5472
        %5559 = vmatprep.subr.mxu0 0.0
        %5560 = vmatpush1.msra.mxu0 %v5474
        %5561 = vmatprep.subr.mxu0 0.0
        %5562 = vmatpush1.msra.mxu0 %v5476
        %5563 = vmatprep.subr.mxu0 0.0
        %5564 = vmatpush1.msra.mxu0 %v5478
        %5565 = vmatprep.subr.mxu0 0.0
        %5566 = vmatpush1.msra.mxu0 %v5480
        %5567 = vmatprep.subr.mxu0 0.0
        %5568 = vmatpush1.msra.mxu0 %v5482
        %5569 = vmatprep.subr.mxu0 0.0
        %5570 = vmatpush1.msra.mxu0 %v5484
        %5571 = vmatprep.subr.mxu0 0.0
        %5572 = vmatpush1.msra.mxu0 %v5486
        %5573 = vmatprep.subr.mxu0 0.0
        %5574 = vmatpush1.msra.mxu0 %v5515
        %5575 = vmatprep.subr.mxu0 0.0
        %5576 = vmatpush1.msra.mxu0 0.0
        %5577 = vmatprep.subr.mxu0 0.0
        %5578 = vmatpush1.msra.mxu0 0.0
        %5579 = vmatprep.subr.mxu0 0.0
        %5580 = vmatpush1.msra.mxu0 0.0
        %5581 = vmatprep.mubr.f32.mxu0 %v5326
        %5582 = vmatmul.mubr.f32.gmra.mrb[0].mxu0 %v5322
        %v5583 = vpop.f32.mrb[0].mxu0
        %v5584 = vadd.f32 0.0, %v5583
        %v5585 = vpop.f32.mrb[0].mxu0
        %5586 = vdwg.mxu0
        %v5588 = vsel %vm5328, %v5320, 0
        %5590 = vmatprep.subr.mxu0 0.0
        %5591 = vmatpush1.msra.mxu0 %v5292
        %5592 = vmatprep.subr.mxu0 0.0
        %5593 = vmatpush1.msra.mxu0 %v5293
        %5594 = vmatprep.subr.mxu0 0.0
        %5595 = vmatpush1.msra.mxu0 %v5294
        %5596 = vmatprep.subr.mxu0 0.0
        %5597 = vmatpush1.msra.mxu0 %v5295
        %5598 = vmatprep.subr.mxu0 0.0
        %5599 = vmatpush1.msra.mxu0 %v5296
        %5600 = vmatprep.subr.mxu0 0.0
        %5601 = vmatpush1.msra.mxu0 %v5297
        %5602 = vmatprep.subr.mxu0 0.0
        %5603 = vmatpush1.msra.mxu0 %v5298
        %5604 = vmatprep.subr.mxu0 0.0
        %5605 = vmatpush1.msra.mxu0 %v5299
        %5606 = vmatprep.subr.mxu0 0.0
        %5607 = vmatpush1.msra.mxu0 %v5300
        %5608 = vmatprep.subr.mxu0 0.0
        %5609 = vmatpush1.msra.mxu0 %v5301
        %5610 = vmatprep.subr.mxu0 0.0
        %5611 = vmatpush1.msra.mxu0 %v5302
        %5612 = vmatprep.subr.mxu0 0.0
        %5613 = vmatpush1.msra.mxu0 %v5303
        %5614 = vmatprep.subr.mxu0 0.0
        %5615 = vmatpush1.msra.mxu0 %v5304
        %5616 = vmatprep.subr.mxu0 0.0
        %5617 = vmatpush1.msra.mxu0 %v5305
        %5618 = vmatprep.subr.mxu0 0.0
        %5619 = vmatpush1.msra.mxu0 %v5306
        %5620 = vmatprep.subr.mxu0 0.0
        %5621 = vmatpush1.msra.mxu0 %v5307
        %5622 = vmatprep.subr.mxu0 0.0
        %5623 = vmatpush1.msra.mxu0 %v5308
        %5624 = vmatprep.subr.mxu0 0.0
        %5625 = vmatpush1.msra.mxu0 %v5309
        %5626 = vmatprep.subr.mxu0 0.0
        %5627 = vmatpush1.msra.mxu0 %v5310
        %5628 = vmatprep.subr.mxu0 0.0
        %5629 = vmatpush1.msra.mxu0 %v5311
        %5630 = vmatprep.subr.mxu0 0.0
        %5631 = vmatpush1.msra.mxu0 %v5312
        %5632 = vmatprep.subr.mxu0 0.0
        %5633 = vmatpush1.msra.mxu0 %v5313
        %5634 = vmatprep.subr.mxu0 0.0
        %5635 = vmatpush1.msra.mxu0 %v5314
        %5636 = vmatprep.subr.mxu0 0.0
        %5637 = vmatpush1.msra.mxu0 %v5315
        %5638 = vmatprep.subr.mxu0 0.0
        %5639 = vmatpush1.msra.mxu0 %v5316
        %5640 = vmatprep.subr.mxu0 0.0
        %5641 = vmatpush1.msra.mxu0 %v5317
        %5642 = vmatprep.subr.mxu0 0.0
        %5643 = vmatpush1.msra.mxu0 %v5318
        %5644 = vmatprep.subr.mxu0 0.0
        %5645 = vmatpush1.msra.mxu0 %v5319
        %5646 = vmatprep.subr.mxu0 0.0
        %5647 = vmatpush1.msra.mxu0 %v5588
        %5648 = vmatprep.subr.mxu0 0.0
        %5649 = vmatpush1.msra.mxu0 0.0
        %5650 = vmatprep.subr.mxu0 0.0
        %5651 = vmatpush1.msra.mxu0 0.0
        %5652 = vmatprep.subr.mxu0 0.0
        %5653 = vmatpush1.msra.mxu0 0.0
        %5654 = vmatprep.mubr.f32.mxu0 %v5326
        %5655 = vmatmul.mubr.f32.gmra.mrb[0].mxu0 %v5322
        %v5656 = vpop.f32.mrb[0].mxu0
        %v5657 = vadd.f32 0.0, %v5656
        %v5658 = vpop.f32.mrb[0].mxu0
        %5659 = vdwg.mxu0
        %v5660 = vrot.slane %v5320, 4
        %v5661 = vsel %vm1066, %v5485, %v5660
        %v5663 = vsel %vm5328, %v5660, 0
        %5665 = vmatprep.subr.mxu0 0.0
        %5666 = vmatpush1.msra.mxu0 %v5434
        %5667 = vmatprep.subr.mxu0 0.0
        %5668 = vmatpush1.msra.mxu0 %v5436
        %5669 = vmatprep.subr.mxu0 0.0
        %5670 = vmatpush1.msra.mxu0 %v5438
        %5671 = vmatprep.subr.mxu0 0.0
        %5672 = vmatpush1.msra.mxu0 %v5440
        %5673 = vmatprep.subr.mxu0 0.0
        %5674 = vmatpush1.msra.mxu0 %v5442
        %5675 = vmatprep.subr.mxu0 0.0
        %5676 = vmatpush1.msra.mxu0 %v5444
        %5677 = vmatprep.subr.mxu0 0.0
        %5678 = vmatpush1.msra.mxu0 %v5446
        %5679 = vmatprep.subr.mxu0 0.0
        %5680 = vmatpush1.msra.mxu0 %v5448
        %5681 = vmatprep.subr.mxu0 0.0
        %5682 = vmatpush1.msra.mxu0 %v5450
        %5683 = vmatprep.subr.mxu0 0.0
        %5684 = vmatpush1.msra.mxu0 %v5452
        %5685 = vmatprep.subr.mxu0 0.0
        %5686 = vmatpush1.msra.mxu0 %v5454
        %5687 = vmatprep.subr.mxu0 0.0
        %5688 = vmatpush1.msra.mxu0 %v5456
        %5689 = vmatprep.subr.mxu0 0.0
        %5690 = vmatpush1.msra.mxu0 %v5458
        %5691 = vmatprep.subr.mxu0 0.0
        %5692 = vmatpush1.msra.mxu0 %v5460
        %5693 = vmatprep.subr.mxu0 0.0
        %5694 = vmatpush1.msra.mxu0 %v5462
        %5695 = vmatprep.subr.mxu0 0.0
        %5696 = vmatpush1.msra.mxu0 %v5464
        %5697 = vmatprep.subr.mxu0 0.0
        %5698 = vmatpush1.msra.mxu0 %v5466
        %5699 = vmatprep.subr.mxu0 0.0
        %5700 = vmatpush1.msra.mxu0 %v5468
        %5701 = vmatprep.subr.mxu0 0.0
        %5702 = vmatpush1.msra.mxu0 %v5470
        %5703 = vmatprep.subr.mxu0 0.0
        %5704 = vmatpush1.msra.mxu0 %v5472
        %5705 = vmatprep.subr.mxu0 0.0
        %5706 = vmatpush1.msra.mxu0 %v5474
        %5707 = vmatprep.subr.mxu0 0.0
        %5708 = vmatpush1.msra.mxu0 %v5476
        %5709 = vmatprep.subr.mxu0 0.0
        %5710 = vmatpush1.msra.mxu0 %v5478
        %5711 = vmatprep.subr.mxu0 0.0
        %5712 = vmatpush1.msra.mxu0 %v5480
        %5713 = vmatprep.subr.mxu0 0.0
        %5714 = vmatpush1.msra.mxu0 %v5482
        %5715 = vmatprep.subr.mxu0 0.0
        %5716 = vmatpush1.msra.mxu0 %v5484
        %5717 = vmatprep.subr.mxu0 0.0
        %5718 = vmatpush1.msra.mxu0 %v5486
        %5719 = vmatprep.subr.mxu0 0.0
        %5720 = vmatpush1.msra.mxu0 %v5661
        %5721 = vmatprep.subr.mxu0 0.0
        %5722 = vmatpush1.msra.mxu0 %v5663
        %5723 = vmatprep.subr.mxu0 0.0
        %5724 = vmatpush1.msra.mxu0 0.0
        %5725 = vmatprep.subr.mxu0 0.0
        %5726 = vmatpush1.msra.mxu0 0.0
        %5727 = vmatprep.subr.mxu0 0.0
        %5728 = vmatpush1.msra.mxu0 0.0
        %5729 = vmatprep.mubr.f32.mxu0 %v5326
        %5730 = vmatmul.mubr.f32.gmra.mrb[0].mxu0 %v5322
        %v5731 = vpop.f32.mrb[0].mxu0
        %v5732 = vadd.f32 0.0, %v5731
        %v5733 = vpop.f32.mrb[0].mxu0
        %5734 = vdwg.mxu0
        %v5736 = vsel %vm5328, %v5321, 0
        %5738 = vmatprep.subr.mxu0 0.0
        %5739 = vmatpush1.msra.mxu0 %v5293
        %5740 = vmatprep.subr.mxu0 0.0
        %5741 = vmatpush1.msra.mxu0 %v5294
        %5742 = vmatprep.subr.mxu0 0.0
        %5743 = vmatpush1.msra.mxu0 %v5295
        %5744 = vmatprep.subr.mxu0 0.0
        %5745 = vmatpush1.msra.mxu0 %v5296
        %5746 = vmatprep.subr.mxu0 0.0
        %5747 = vmatpush1.msra.mxu0 %v5297
        %5748 = vmatprep.subr.mxu0 0.0
        %5749 = vmatpush1.msra.mxu0 %v5298
        %5750 = vmatprep.subr.mxu0 0.0
        %5751 = vmatpush1.msra.mxu0 %v5299
        %5752 = vmatprep.subr.mxu0 0.0
        %5753 = vmatpush1.msra.mxu0 %v5300
        %5754 = vmatprep.subr.mxu0 0.0
        %5755 = vmatpush1.msra.mxu0 %v5301
        %5756 = vmatprep.subr.mxu0 0.0
        %5757 = vmatpush1.msra.mxu0 %v5302
        %5758 = vmatprep.subr.mxu0 0.0
        %5759 = vmatpush1.msra.mxu0 %v5303
        %5760 = vmatprep.subr.mxu0 0.0
        %5761 = vmatpush1.msra.mxu0 %v5304
        %5762 = vmatprep.subr.mxu0 0.0
        %5763 = vmatpush1.msra.mxu0 %v5305
        %5764 = vmatprep.subr.mxu0 0.0
        %5765 = vmatpush1.msra.mxu0 %v5306
        %5766 = vmatprep.subr.mxu0 0.0
        %5767 = vmatpush1.msra.mxu0 %v5307
        %5768 = vmatprep.subr.mxu0 0.0
        %5769 = vmatpush1.msra.mxu0 %v5308
        %5770 = vmatprep.subr.mxu0 0.0
        %5771 = vmatpush1.msra.mxu0 %v5309
        %5772 = vmatprep.subr.mxu0 0.0
        %5773 = vmatpush1.msra.mxu0 %v5310
        %5774 = vmatprep.subr.mxu0 0.0
        %5775 = vmatpush1.msra.mxu0 %v5311
        %5776 = vmatprep.subr.mxu0 0.0
        %5777 = vmatpush1.msra.mxu0 %v5312
        %5778 = vmatprep.subr.mxu0 0.0
        %5779 = vmatpush1.msra.mxu0 %v5313
        %5780 = vmatprep.subr.mxu0 0.0
        %5781 = vmatpush1.msra.mxu0 %v5314
        %5782 = vmatprep.subr.mxu0 0.0
        %5783 = vmatpush1.msra.mxu0 %v5315
        %5784 = vmatprep.subr.mxu0 0.0
        %5785 = vmatpush1.msra.mxu0 %v5316
        %5786 = vmatprep.subr.mxu0 0.0
        %5787 = vmatpush1.msra.mxu0 %v5317
        %5788 = vmatprep.subr.mxu0 0.0
        %5789 = vmatpush1.msra.mxu0 %v5318
        %5790 = vmatprep.subr.mxu0 0.0
        %5791 = vmatpush1.msra.mxu0 %v5319
        %5792 = vmatprep.subr.mxu0 0.0
        %5793 = vmatpush1.msra.mxu0 %v5320
        %5794 = vmatprep.subr.mxu0 0.0
        %5795 = vmatpush1.msra.mxu0 %v5736
        %5796 = vmatprep.subr.mxu0 0.0
        %5797 = vmatpush1.msra.mxu0 0.0
        %5798 = vmatprep.subr.mxu0 0.0
        %5799 = vmatpush1.msra.mxu0 0.0
        %5800 = vmatprep.subr.mxu0 0.0
        %5801 = vmatpush1.msra.mxu0 0.0
        %5802 = vmatprep.mubr.f32.mxu0 %v5326
        %5803 = vmatmul.mubr.f32.gmra.mrb[0].mxu0 %v5322
        %v5804 = vpop.f32.mrb[0].mxu0
        %v5805 = vadd.f32 0.0, %v5804
        %v5806 = vpop.f32.mrb[0].mxu0
        %5807 = vdwg.mxu0
        %5809 = vrot.lane.b32.xlu0 %v5584, 80
        %v5810 = vpop.permute.xlu0 %5809
        %5813 = vrot.lane.b32.xlu0 %v5657, 32
        %v5814 = vpop.permute.xlu0 %5813
        %5817 = vrot.lane.b32.xlu0 %v5732, 112
        %v5818 = vpop.permute.xlu0 %5817
        %5821 = vrot.lane.b32.xlu0 %v5805, 64
        %v5822 = vpop.permute.xlu0 %5821
        %v5824 = vsel %vm3627, %v5399, %v5810
        %v5825 = vsel %vm1196, %v5810, %v5814
        %vm5826 = vcmask 916480
        %v5827 = vsel %vm5826, %v5825, %v5818
        %v5828 = vsel %vm1163, %v5818, %v5822
        %v5829 = vld [vmem:[%s10] sm:$0xff]
        %v5830 = vld [vmem:[%s10 + $0x8] sm:$0xff]
        %v5831 = vld [vmem:[%s10 + $0x10] sm:$0xff]
        %v5832 = vld [vmem:[%s10 + $0x18] sm:$0xff]
        %v5833 = vld [vmem:[%s10 + $0x20] sm:$0xff]
        %v5834 = vld [vmem:[%s10 + $0x28] sm:$0xff]
        %v5835 = vld [vmem:[%s10 + $0x30] sm:$0xff]
        %v5836 = vld [vmem:[%s10 + $0x38] sm:$0xff]
        %v5837 = vld [vmem:[%s10 + $0x40] sm:$0xff]
        %v5838 = vld [vmem:[%s10 + $0x48] sm:$0xff]
        %v5839 = vld [vmem:[%s10 + $0x50] sm:$0xff]
        %v5840 = vld [vmem:[%s10 + $0x58] sm:$0xff]
        %v5841 = vld [vmem:[%s10 + $0x60] sm:$0xff]
        %v5842 = vld [vmem:[%s10 + $0x68] sm:$0xff]
        %v5843 = vld [vmem:[%s10 + $0x70] sm:$0xff]
        %v5844 = vld [vmem:[%s10 + $0x78] sm:$0xff]
        %v5845 = vld [vmem:[%s10 + $0x80] sm:$0xff]
        %v5846 = vld [vmem:[%s10 + $0x88] sm:$0xff]
        %v5847 = vld [vmem:[%s10 + $0x90] sm:$0xff]
        %v5848 = vld [vmem:[%s10 + $0x98] sm:$0xff]
        %v5849 = vld [vmem:[%s10 + $0xa0] sm:$0xff]
        %v5850 = vld [vmem:[%s10 + $0xa8] sm:$0xff]
        %v5851 = vld [vmem:[%s10 + $0xb0] sm:$0xff]
        %v5852 = vld [vmem:[%s10 + $0xb8] sm:$0xff]
        %v5853 = vld [vmem:[%s10 + $0xc0] sm:$0xff]
        %v5854 = vld [vmem:[%s10 + $0xc8] sm:$0xff]
        %v5855 = vld [vmem:[%s10 + $0xd0] sm:$0xff]
        %v5856 = vld [vmem:[%s10 + $0xd8] sm:$0xff]
        %v5857 = vld [vmem:[%s10 + $0xe0] sm:$0xff]
        %v5858 = vld [vmem:[%s10 + $0xe8] sm:$0xff]
        %v5859 = vld [vmem:[%s10 + $0xf0] sm:$0xff]
        %v5860 = vld [vmem:[%s10 + $0xf8] sm:$0xff]
        %v5861 = vld [vmem:[%s10 + $0x100] sm:$0xff]
        %v5862 = vld [vmem:[%s10 + $0x108] sm:$0xff]
        %v5863 = vld [vmem:[%s10 + $0x110] sm:$0xff]
        %v5864 = vld [vmem:[%s10 + $0x118] sm:$0xff]
        %v5865 = vld [vmem:[%s10 + $0x120] sm:$0xff]
        %v5866 = vld [vmem:[%s10 + $0x128] sm:$0xff]
        %v5867 = vld [vmem:[%s10 + $0x130] sm:$0xff]
        %v5868 = vld [vmem:[%s10 + $0x138] sm:$0xff]
        %v5869 = vld [vmem:[%s10 + $0x140] sm:$0xff]
        %v5870 = vld [vmem:[%s10 + $0x148] sm:$0xff]
        %v5871 = vld [vmem:[%s10 + $0x150] sm:$0xff]
        %v5872 = vld [vmem:[%s10 + $0x158] sm:$0xff]
        %v5873 = vld [vmem:[%s10 + $0x160] sm:$0xff]
        %v5874 = vld [vmem:[%s10 + $0x168] sm:$0xff]
        %v5875 = vld [vmem:[%s10 + $0x170] sm:$0xff]
        %v5876 = vld [vmem:[%s10 + $0x178] sm:$0xff]
        %v5877 = vld [vmem:[%s10 + $0x180] sm:$0xff]
        %v5878 = vld [vmem:[%s10 + $0x188] sm:$0xff]
        %v5879 = vld [vmem:[%s11] sm:$0x1]
        %v5881 = vlaneseq
        %v5882 = vshrl.u32 %v5881, 7
        %v5883 = vsub.s32 0, %v5882
        %v5884 = vrot.slane %v5879, %v5883
        %vm5886 = vcmask 130048
        %v5887 = vsel %vm5886, %v5822, 0
        %5889 = vmatprep.subr.mxu0 0.0
        %5890 = vmatpush1.msra.mxu0 %v5829
        %5891 = vmatprep.subr.mxu0 0.0
        %5892 = vmatpush1.msra.mxu0 %v5830
        %5893 = vmatprep.subr.mxu0 0.0
        %5894 = vmatpush1.msra.mxu0 %v5831
        %5895 = vmatprep.subr.mxu0 0.0
        %5896 = vmatpush1.msra.mxu0 %v5832
        %5897 = vmatprep.subr.mxu0 0.0
        %5898 = vmatpush1.msra.mxu0 %v5833
        %5899 = vmatprep.subr.mxu0 0.0
        %5900 = vmatpush1.msra.mxu0 %v5834
        %5901 = vmatprep.subr.mxu0 0.0
        %5902 = vmatpush1.msra.mxu0 %v5835
        %5903 = vmatprep.subr.mxu0 0.0
        %5904 = vmatpush1.msra.mxu0 %v5836
        %5905 = vmatprep.subr.mxu0 0.0
        %5906 = vmatpush1.msra.mxu0 %v5837
        %5907 = vmatprep.subr.mxu0 0.0
        %5908 = vmatpush1.msra.mxu0 %v5838
        %5909 = vmatprep.subr.mxu0 0.0
        %5910 = vmatpush1.msra.mxu0 %v5839
        %5911 = vmatprep.subr.mxu0 0.0
        %5912 = vmatpush1.msra.mxu0 %v5840
        %5913 = vmatprep.subr.mxu0 0.0
        %5914 = vmatpush1.msra.mxu0 %v5841
        %5915 = vmatprep.subr.mxu0 0.0
        %5916 = vmatpush1.msra.mxu0 %v5842
        %5917 = vmatprep.subr.mxu0 0.0
        %5918 = vmatpush1.msra.mxu0 %v5843
        %5919 = vmatprep.subr.mxu0 0.0
        %5920 = vmatpush1.msra.mxu0 %v5844
        %5921 = vmatprep.subr.mxu0 0.0
        %5922 = vmatpush1.msra.mxu0 %v5845
        %5923 = vmatprep.subr.mxu0 0.0
        %5924 = vmatpush1.msra.mxu0 %v5846
        %5925 = vmatprep.subr.mxu0 0.0
        %5926 = vmatpush1.msra.mxu0 %v5847
        %5927 = vmatprep.subr.mxu0 0.0
        %5928 = vmatpush1.msra.mxu0 %v5848
        %5929 = vmatprep.subr.mxu0 0.0
        %5930 = vmatpush1.msra.mxu0 %v5849
        %5931 = vmatprep.subr.mxu0 0.0
        %5932 = vmatpush1.msra.mxu0 %v5850
        %5933 = vmatprep.subr.mxu0 0.0
        %5934 = vmatpush1.msra.mxu0 %v5851
        %5935 = vmatprep.subr.mxu0 0.0
        %5936 = vmatpush1.msra.mxu0 %v5852
        %5937 = vmatprep.subr.mxu0 0.0
        %5938 = vmatpush1.msra.mxu0 %v5853
        %5939 = vmatprep.subr.mxu0 0.0
        %5940 = vmatpush1.msra.mxu0 %v5854
        %5941 = vmatprep.subr.mxu0 0.0
        %5942 = vmatpush1.msra.mxu0 %v5855
        %5943 = vmatprep.subr.mxu0 0.0
        %5944 = vmatpush1.msra.mxu0 %v5856
        %5945 = vmatprep.subr.mxu0 0.0
        %5946 = vmatpush1.msra.mxu0 %v5857
        %5947 = vmatprep.subr.mxu0 0.0
        %5948 = vmatpush1.msra.mxu0 %v5858
        %5949 = vmatprep.subr.mxu0 0.0
        %5950 = vmatpush1.msra.mxu0 %v5859
        %5951 = vmatprep.subr.mxu0 0.0
        %5952 = vmatpush1.msra.mxu0 %v5860
        %5953 = vmatprep.mubr.f32.mxu0 %v5827
        %5954 = vmatmul.mubr.f32.gmra.mrb[0].mxu0 %v5824
        %v5955 = vpop.f32.mrb[0].mxu0
        %v5956 = vadd.f32 %v5884, %v5955
        %v5957 = vpop.f32.mrb[0].mxu0
        %5958 = vdwg.mxu0
        %5959 = vmatprep.subr.mxu0 0.0
        %5960 = vmatpush1.msra.mxu0 %v5861
        %5961 = vmatprep.subr.mxu0 0.0
        %5962 = vmatpush1.msra.mxu0 %v5862
        %5963 = vmatprep.subr.mxu0 0.0
        %5964 = vmatpush1.msra.mxu0 %v5863
        %5965 = vmatprep.subr.mxu0 0.0
        %5966 = vmatpush1.msra.mxu0 %v5864
        %5967 = vmatprep.subr.mxu0 0.0
        %5968 = vmatpush1.msra.mxu0 %v5865
        %5969 = vmatprep.subr.mxu0 0.0
        %5970 = vmatpush1.msra.mxu0 %v5866
        %5971 = vmatprep.subr.mxu0 0.0
        %5972 = vmatpush1.msra.mxu0 %v5867
        %5973 = vmatprep.subr.mxu0 0.0
        %5974 = vmatpush1.msra.mxu0 %v5868
        %5975 = vmatprep.subr.mxu0 0.0
        %5976 = vmatpush1.msra.mxu0 %v5869
        %5977 = vmatprep.subr.mxu0 0.0
        %5978 = vmatpush1.msra.mxu0 %v5870
        %5979 = vmatprep.subr.mxu0 0.0
        %5980 = vmatpush1.msra.mxu0 %v5871
        %5981 = vmatprep.subr.mxu0 0.0
        %5982 = vmatpush1.msra.mxu0 %v5872
        %5983 = vmatprep.subr.mxu0 0.0
        %5984 = vmatpush1.msra.mxu0 %v5873
        %5985 = vmatprep.subr.mxu0 0.0
        %5986 = vmatpush1.msra.mxu0 %v5874
        %5987 = vmatprep.subr.mxu0 0.0
        %5988 = vmatpush1.msra.mxu0 %v5875
        %5989 = vmatprep.subr.mxu0 0.0
        %5990 = vmatpush1.msra.mxu0 %v5876
        %5991 = vmatprep.subr.mxu0 0.0
        %5992 = vmatpush1.msra.mxu0 %v5877
        %5993 = vmatprep.subr.mxu0 0.0
        %5994 = vmatpush1.msra.mxu0 %v5878
        %5995 = vmatprep.subr.mxu0 0.0
        %5996 = vmatpush1.msra.mxu0 0.0
        %5997 = vmatprep.subr.mxu0 0.0
        %5998 = vmatpush1.msra.mxu0 0.0
        %5999 = vmatprep.subr.mxu0 0.0
        %6000 = vmatpush1.msra.mxu0 0.0
        %6001 = vmatprep.subr.mxu0 0.0
        %6002 = vmatpush1.msra.mxu0 0.0
        %6003 = vmatprep.subr.mxu0 0.0
        %6004 = vmatpush1.msra.mxu0 0.0
        %6005 = vmatprep.subr.mxu0 0.0
        %6006 = vmatpush1.msra.mxu0 0.0
        %6007 = vmatprep.subr.mxu0 0.0
        %6008 = vmatpush1.msra.mxu0 0.0
        %6009 = vmatprep.subr.mxu0 0.0
        %6010 = vmatpush1.msra.mxu0 0.0
        %6011 = vmatprep.subr.mxu0 0.0
        %6012 = vmatpush1.msra.mxu0 0.0
        %6013 = vmatprep.subr.mxu0 0.0
        %6014 = vmatpush1.msra.mxu0 0.0
        %6015 = vmatprep.subr.mxu0 0.0
        %6016 = vmatpush1.msra.mxu0 0.0
        %6017 = vmatprep.subr.mxu0 0.0
        %6018 = vmatpush1.msra.mxu0 0.0
        %6019 = vmatprep.subr.mxu0 0.0
        %6020 = vmatpush1.msra.mxu0 0.0
        %6021 = vmatprep.subr.mxu0 0.0
        %6022 = vmatpush1.msra.mxu0 0.0
        %6023 = vmatprep.mubr.f32.mxu0 %v5887
        %6024 = vmatmul.mubr.f32.gmra.mrb[0].mxu0 %v5828
        %v6025 = vpop.f32.mrb[0].mxu0
        %v6026 = vadd.f32 %v5956, %v6025
        %v6027 = vpop.f32.mrb[0].mxu0
        %6028 = vdwg.mxu0
        %v6029 = vmax.f32 %v6026, 0.0
        %v6030 = vld [vmem:[%s12] sm:$0xff]
        %v6031 = vld [vmem:[%s12 + $0x8] sm:$0xff]
        %v6032 = vld [vmem:[%s12 + $0x10] sm:$0xff]
        %v6033 = vld [vmem:[%s12 + $0x18] sm:$0xff]
        %v6034 = vld [vmem:[%s12 + $0x20] sm:$0xff]
        %v6035 = vld [vmem:[%s12 + $0x28] sm:$0xff]
        %v6036 = vld [vmem:[%s12 + $0x30] sm:$0xff]
        %v6037 = vld [vmem:[%s12 + $0x38] sm:$0xff]
        %v6038 = vld [vmem:[%s12 + $0x40] sm:$0xff]
        %v6039 = vld [vmem:[%s12 + $0x48] sm:$0xff]
        %v6040 = vld [vmem:[%s12 + $0x50] sm:$0xff]
        %v6041 = vld [vmem:[%s12 + $0x58] sm:$0xff]
        %v6042 = vld [vmem:[%s12 + $0x60] sm:$0xff]
        %v6043 = vld [vmem:[%s12 + $0x68] sm:$0xff]
        %v6044 = vld [vmem:[%s12 + $0x70] sm:$0xff]
        %v6045 = vld [vmem:[%s13] sm:$0x1]
        %v6047 = vlaneseq
        %v6048 = vshrl.u32 %v6047, 7
        %v6049 = vsub.s32 0, %v6048
        %v6050 = vrot.slane %v6045, %v6049
        %vm6052 = vcmask 982016
        %v6054 = vsel %vm6052, %v6029, 0
        %6056 = vmatprep.subr.mxu0 0.0
        %6057 = vmatpush1.msra.mxu0 %v6030
        %6058 = vmatprep.subr.mxu0 0.0
        %6059 = vmatpush1.msra.mxu0 %v6031
        %6060 = vmatprep.subr.mxu0 0.0
        %6061 = vmatpush1.msra.mxu0 %v6032
        %6062 = vmatprep.subr.mxu0 0.0
        %6063 = vmatpush1.msra.mxu0 %v6033
        %6064 = vmatprep.subr.mxu0 0.0
        %6065 = vmatpush1.msra.mxu0 %v6034
        %6066 = vmatprep.subr.mxu0 0.0
        %6067 = vmatpush1.msra.mxu0 %v6035
        %6068 = vmatprep.subr.mxu0 0.0
        %6069 = vmatpush1.msra.mxu0 %v6036
        %6070 = vmatprep.subr.mxu0 0.0
        %6071 = vmatpush1.msra.mxu0 %v6037
        %6072 = vmatprep.subr.mxu0 0.0
        %6073 = vmatpush1.msra.mxu0 %v6038
        %6074 = vmatprep.subr.mxu0 0.0
        %6075 = vmatpush1.msra.mxu0 %v6039
        %6076 = vmatprep.subr.mxu0 0.0
        %6077 = vmatpush1.msra.mxu0 %v6040
        %6078 = vmatprep.subr.mxu0 0.0
        %6079 = vmatpush1.msra.mxu0 %v6041
        %6080 = vmatprep.subr.mxu0 0.0
        %6081 = vmatpush1.msra.mxu0 %v6042
        %6082 = vmatprep.subr.mxu0 0.0
        %6083 = vmatpush1.msra.mxu0 %v6043
        %6084 = vmatprep.subr.mxu0 0.0
        %6085 = vmatpush1.msra.mxu0 %v6044
        %6086 = vmatprep.subr.mxu0 0.0
        %6087 = vmatpush1.msra.mxu0 0.0
        %6088 = vmatprep.subr.mxu0 0.0
        %6089 = vmatpush1.msra.mxu0 0.0
        %6090 = vmatprep.subr.mxu0 0.0
        %6091 = vmatpush1.msra.mxu0 0.0
        %6092 = vmatprep.subr.mxu0 0.0
        %6093 = vmatpush1.msra.mxu0 0.0
        %6094 = vmatprep.subr.mxu0 0.0
        %6095 = vmatpush1.msra.mxu0 0.0
        %6096 = vmatprep.subr.mxu0 0.0
        %6097 = vmatpush1.msra.mxu0 0.0
        %6098 = vmatprep.subr.mxu0 0.0
        %6099 = vmatpush1.msra.mxu0 0.0
        %6100 = vmatprep.subr.mxu0 0.0
        %6101 = vmatpush1.msra.mxu0 0.0
        %6102 = vmatprep.subr.mxu0 0.0
        %6103 = vmatpush1.msra.mxu0 0.0
        %6104 = vmatprep.subr.mxu0 0.0
        %6105 = vmatpush1.msra.mxu0 0.0
        %6106 = vmatprep.subr.mxu0 0.0
        %6107 = vmatpush1.msra.mxu0 0.0
        %6108 = vmatprep.subr.mxu0 0.0
        %6109 = vmatpush1.msra.mxu0 0.0
        %6110 = vmatprep.subr.mxu0 0.0
        %6111 = vmatpush1.msra.mxu0 0.0
        %6112 = vmatprep.subr.mxu0 0.0
        %6113 = vmatpush1.msra.mxu0 0.0
        %6114 = vmatprep.subr.mxu0 0.0
        %6115 = vmatpush1.msra.mxu0 0.0
        %6116 = vmatprep.subr.mxu0 0.0
        %6117 = vmatpush1.msra.mxu0 0.0
        %6118 = vmatprep.subr.mxu0 0.0
        %6119 = vmatpush1.msra.mxu0 0.0
        %6120 = vmatprep.mubr.f32.mxu0 0.0
        %6121 = vmatmul.mubr.f32.gmra.mrb[0].mxu0 %v6054
        %v6122 = vpop.f32.mrb[0].mxu0
        %v6123 = vadd.f32 %v6050, %v6122
        %v6124 = vpop.f32.mrb[0].mxu0
        %6125 = vdwg.mxu0
        %v6126 = vmax.f32 %v6123, 0.0
        %v6127 = vld [vmem:[%s14] sm:$0xff]
        %v6128 = vld [vmem:[%s14 + $0x8] sm:$0xff]
        %v6129 = vld [vmem:[%s14 + $0x10] sm:$0xff]
        %v6130 = vld [vmem:[%s14 + $0x18] sm:$0xff]
        %v6131 = vld [vmem:[%s14 + $0x20] sm:$0xff]
        %v6132 = vld [vmem:[%s14 + $0x28] sm:$0xff]
        %v6133 = vld [vmem:[%s14 + $0x30] sm:$0xff]
        %v6134 = vld [vmem:[%s14 + $0x38] sm:$0xff]
        %v6135 = vld [vmem:[%s14 + $0x40] sm:$0xff]
        %v6136 = vld [vmem:[%s14 + $0x48] sm:$0xff]
        %v6137 = vld [vmem:[%s14 + $0x50] sm:$0xf]
        %v6138 = vld [vmem:[%s15] sm:$0x1]
        %v6140 = vlaneseq
        %v6141 = vshrl.u32 %v6140, 7
        %v6142 = vsub.s32 0, %v6141
        %v6143 = vrot.slane %v6138, %v6142
        %v6146 = vsel %vm3532, %v6126, 0
        %v6149 = vsel %vm1066, %v6137, 0
        %6151 = vmatprep.subr.mxu0 0.0
        %6152 = vmatpush1.msra.mxu0 %v6127
        %6153 = vmatprep.subr.mxu0 0.0
        %6154 = vmatpush1.msra.mxu0 %v6128
        %6155 = vmatprep.subr.mxu0 0.0
        %6156 = vmatpush1.msra.mxu0 %v6129
        %6157 = vmatprep.subr.mxu0 0.0
        %6158 = vmatpush1.msra.mxu0 %v6130
        %6159 = vmatprep.subr.mxu0 0.0
        %6160 = vmatpush1.msra.mxu0 %v6131
        %6161 = vmatprep.subr.mxu0 0.0
        %6162 = vmatpush1.msra.mxu0 %v6132
        %6163 = vmatprep.subr.mxu0 0.0
        %6164 = vmatpush1.msra.mxu0 %v6133
        %6165 = vmatprep.subr.mxu0 0.0
        %6166 = vmatpush1.msra.mxu0 %v6134
        %6167 = vmatprep.subr.mxu0 0.0
        %6168 = vmatpush1.msra.mxu0 %v6135
        %6169 = vmatprep.subr.mxu0 0.0
        %6170 = vmatpush1.msra.mxu0 %v6136
        %6171 = vmatprep.subr.mxu0 0.0
        %6172 = vmatpush1.msra.mxu0 %v6149
        %6173 = vmatprep.subr.mxu0 0.0
        %6174 = vmatpush1.msra.mxu0 0.0
        %6175 = vmatprep.subr.mxu0 0.0
        %6176 = vmatpush1.msra.mxu0 0.0
        %6177 = vmatprep.subr.mxu0 0.0
        %6178 = vmatpush1.msra.mxu0 0.0
        %6179 = vmatprep.subr.mxu0 0.0
        %6180 = vmatpush1.msra.mxu0 0.0
        %6181 = vmatprep.subr.mxu0 0.0
        %6182 = vmatpush1.msra.mxu0 0.0
        %6183 = vmatprep.subr.mxu0 0.0
        %6184 = vmatpush1.msra.mxu0 0.0
        %6185 = vmatprep.subr.mxu0 0.0
        %6186 = vmatpush1.msra.mxu0 0.0
        %6187 = vmatprep.subr.mxu0 0.0
        %6188 = vmatpush1.msra.mxu0 0.0
        %6189 = vmatprep.subr.mxu0 0.0
        %6190 = vmatpush1.msra.mxu0 0.0
        %6191 = vmatprep.subr.mxu0 0.0
        %6192 = vmatpush1.msra.mxu0 0.0
        %6193 = vmatprep.subr.mxu0 0.0
        %6194 = vmatpush1.msra.mxu0 0.0
        %6195 = vmatprep.subr.mxu0 0.0
        %6196 = vmatpush1.msra.mxu0 0.0
        %6197 = vmatprep.subr.mxu0 0.0
        %6198 = vmatpush1.msra.mxu0 0.0
        %6199 = vmatprep.subr.mxu0 0.0
        %6200 = vmatpush1.msra.mxu0 0.0
        %6201 = vmatprep.subr.mxu0 0.0
        %6202 = vmatpush1.msra.mxu0 0.0
        %6203 = vmatprep.subr.mxu0 0.0
        %6204 = vmatpush1.msra.mxu0 0.0
        %6205 = vmatprep.subr.mxu0 0.0
        %6206 = vmatpush1.msra.mxu0 0.0
        %6207 = vmatprep.subr.mxu0 0.0
        %6208 = vmatpush1.msra.mxu0 0.0
        %6209 = vmatprep.subr.mxu0 0.0
        %6210 = vmatpush1.msra.mxu0 0.0
        %6211 = vmatprep.subr.mxu0 0.0
        %6212 = vmatpush1.msra.mxu0 0.0
        %6213 = vmatprep.subr.mxu0 0.0
        %6214 = vmatpush1.msra.mxu0 0.0
        %6215 = vmatprep.mubr.f32.mxu0 0.0
        %6216 = vmatmul.mubr.f32.gmra.mrb[0].mxu0 %v6146
        %v6217 = vpop.f32.mrb[0].mxu0
        %v6218 = vadd.f32 %v6143, %v6217
        %v6219 = vpop.f32.mrb[0].mxu0
        %6220 = vdwg.mxu0
        %vm6221 = vcmask 80896
        %v6222 = vsel %vm6221, %v6218, -inf
        %6223 = vmax.xlane.f32.xlu0 %v6222
        %v6224 = vpop.xlane.xlu0 %6223
        %v6225 = vsub.f32 %v6218, %v6224
        %v6226 = vmul.f32 %v6225, 1.442695
        %v6227 = vpow.pop %v6226
        %v6228 = vsel %vm6221, %v6227, 0.0
        %6229 = vadd.xlane.f32.xlu0 %v6228
        %v6230 = vpop.xlane.xlu0 %6229
        %v6231 = vlog2.pop %v6230
        %v6232 = vmul.f32 %v6231, 0.6931472
        %v6233 = vsub.f32 %v6225, %v6232
        %6234 = vst.msk [vmem:[%s515] sm:$0xff] %vm6221, %v6233
        %s6235 = sand.u32 %s379, 1
        %s6236 = scalar_lea.sflag [#allocation3], %s6235
        %s6237 = sand.u32 %s379, 1
        %s6238 = smul.addr %s6237, 8
        %s6239 = scalar_lea.vmem [#allocation2], %s6238
        // Predicated region
        $region85: #{tpu_custom_call.1} parent=83 // pred_check
          %p6240 = pneg %p389
        $region86: #{tpu_custom_call.1} parent=83 // pred_check_branch
          %6242 = sbr.rel (%p6240) target = $region88
        $region87: #{tpu_custom_call.1} parent=83 // pred_region
          %s6244 = ssub.s32 128, 128
          %6245 = vsyncadd %s6236, %s6244
          %s6246 = smul.addr %s30, 128
          %s6247 = scalar_lea.hbm %s16, %s6246
          %s6249 = sshll.u32 %s6239, 4
          %s6250 = int_to_ptr.vmem [resolvable:$true] %s6249
          %6252 = dma.vmem_to_hbm [thread:$0]  %s6250, 128, %s6247, %s6236
        $region88: #{tpu_custom_call.1} parent=83 // pred_fallthru
          _
      $region84: #{tpu_custom_call.1} parent=5 // pred_fallthru
        _
      %p6253 = scmp.le.s32.totalorder 2, %s25
      // Predicated region
      $region89: #{tpu_custom_call.1} parent=5 // pred_check
        %p6254 = pneg %p6253
      $region90: #{tpu_custom_call.1} parent=5 // pred_check_branch
        %6256 = sbr.rel (%p6254) target = $region92
      $region91: #{tpu_custom_call.1} parent=5 // pred_region
        %s6257 = ssub.s32 %s25, 2
        // Predicated region
        $region93: #{tpu_custom_call.1} parent=91 // pred_check
          %p6258 = pneg %p395
        $region94: #{tpu_custom_call.1} parent=91 // pred_check_branch
          %6260 = sbr.rel (%p6258) target = $region96
        $region95: #{tpu_custom_call.1} parent=91 // pred_region
          %s6261 = sand.u32 %s380, 1
          %s6262 = scalar_lea.sflag [#allocation3], %s6261
          %s6263 = sand.u32 %s380, 1
          %s6264 = smul.addr %s6263, 8
          %s6265 = scalar_lea.vmem [#allocation2], %s6264
          %6266 = dma.done %s6262, 128
        $region96: #{tpu_custom_call.1} parent=91 // pred_fallthru
          _
      $region92: #{tpu_custom_call.1} parent=5 // pred_fallthru
        _
    $region6: #{tpu_custom_call.1} parent=1 // loop_footer
      %s29 = sadd.s32 1, %s25
    $region7: #{tpu_custom_call.1} parent=1 // loop_footer_branch
      %24 = sbr.rel target = $region3
    $region8: #{tpu_custom_call.1} parent=1 // loop_exit
      _
    %6267 = vsyncpa [#allocation3], 1
    %s6268 = scalar_lea.sflag [#allocation3], 1
    %6269 = vsyncpa %s6268, 1

</llo_original>
